<compile_context>
chip_gen: v7x
topology: tpu7x:2x2x1
jax: 0.10.0
libtpu: 0.0.40
codegen_flags: <defaults>
</compile_context>

<pallas_src>
import functools

import jax
import jax.numpy as jnp
from jax import lax
from jax.experimental import pallas as pl
from jax.experimental.pallas import tpu as pltpu


def _round_up(x, m):
    return (x + m - 1) // m * m


def _cdiv(a, b):
    return -(-a // b)


def _reflect_index(n, p):
    i = jnp.arange(n + 2 * p, dtype=jnp.int32) - p
    i = jnp.abs(i)
    return jnp.where(i >= n, 2 * (n - 1) - i, i)


def _cond_conv_kernel(xa_ref, xb_ref, w_ref, scale_ref, shift_ref, o_ref,
                      xbuf_ref, col_ref, stats_ref, *,
                      kh, kw, w_pad, w_out, n_wide, tm, c_in, eps, act, inv_p):
    """Row-tiled fused conv + instance-norm + style affine + ReLU.

    Grid = (B, 2, n_tiles).
      phase p=0: conv per tile -> accumulate per-channel sum / sumsq into stats_ref.
      phase p=1: conv per tile -> normalize with batch stats -> affine -> relu -> write.

    xa_ref/xb_ref : [1, TM, C_in]        row tile t and tile t+1 (halo), bf16
    w_ref         : [kh*kw*C_in, C_out_pad]  im2col-ordered weights, bf16
    scale_ref     : [1, C_out_pad]       instnorm_weight * gamma[style]
    shift_ref     : [1, C_out_pad]       instnorm_bias  * gamma[style] + beta[style]
    o_ref         : [1, TM, C_out_pad]   output tile (written in phase 1 only)
    xbuf_ref      : [2*TM, C_in]         scratch: joined tile + halo rows
    col_ref       : [TM, kh*kw*C_in]     scratch: per-tile im2col LHS
    stats_ref     : [8, C_out_pad]       scratch: row0 = sum, row1 = sum of squares (f32)
    """
    p = pl.program_id(1)
    t = pl.program_id(2)

    # Join the two row blocks so shifted windows may cross the tile boundary.
    xbuf_ref[pl.ds(0, tm), :] = xa_ref[0]
    xbuf_ref[pl.ds(tm, tm), :] = xb_ref[0]

    # Per-tile im2col: contraction K = kh*kw*C_in, so a single matmul does the conv tile.
    for dy in range(kh):
        for dx in range(kw):
            i = dy * kw + dx
            col_ref[:, pl.ds(i * c_in, c_in)] = xbuf_ref[pl.ds(dy * w_pad + dx, tm), :]

    acc = jnp.dot(col_ref[...], w_ref[...], preferred_element_type=jnp.float32)

    @pl.when(jnp.logical_and(p == 0, t == 0))
    def _():
        stats_ref[...] = jnp.zeros_like(stats_ref)

    @pl.when(p == 0)
    def _():
        # Wide row r is valid iff its column ox = r % W_pad < W_out and r < n_wide.
        r = t * tm + lax.broadcasted_iota(jnp.int32, (tm, 1), 0)
        valid = jnp.logical_and((r % w_pad) < w_out, r < n_wide)
        am = jnp.where(valid, acc, 0.0)
        stats_ref[0:1, :] += jnp.sum(am, axis=0, keepdims=True)
        stats_ref[1:2, :] += jnp.sum(am * acc, axis=0, keepdims=True)

    @pl.when(p == 1)
    def _():
        mean = stats_ref[0:1, :] * inv_p
        var = stats_ref[1:2, :] * inv_p - mean * mean          # biased variance (PyTorch IN)
        inv_std = lax.rsqrt(var + eps)                         # EUP, off the VALU path
        k = inv_std * scale_ref[...]
        b = shift_ref[...] - mean * k
        y = acc * k + b                                        # single fused epilogue pass
        if act:
            y = jnp.maximum(y, 0.0)
        o_ref[0] = y.astype(o_ref.dtype)


def cond_convolution(x, conv_weight, conv_bias, in_weight, in_bias,
                     gamma, beta, style_no, *, padding, stride=1, act=True,
                     style_no2=None, alpha=None, eps=1e-5, tile_rows=256,
                     return_nchw=True):
    """JAX/Pallas equivalent of CondConvolution.forward (NCHW in / NCHW out).

    x:            [B, C_in, H, W]
    conv_weight:  [C_out, C_in, kh, kw]
    conv_bias:    [C_out]  (unused: cancelled exactly by instance-norm mean subtraction)
    in_weight/in_bias: [C_out]  InstanceNorm2d affine parameters
    gamma/beta:   [num_styles, C_out]
    """
    del conv_bias  # per-channel constant removed exactly by the instance-norm mean subtraction

    if stride != 1:
        # TODO(synk): stride > 1 needs a strided im2col row mapping; only stride=1 implemented.
        raise NotImplementedError("Pallas CondConvolution kernel implements stride=1 only")

    B, C_in, H, W = x.shape
    C_out, c_in_w, kh, kw = conv_weight.shape
    assert c_in_w == C_in

    H_pad, W_pad = H + 2 * padding, W + 2 * padding
    H_out, W_out = H_pad - kh + 1, W_pad - kw + 1
    n_wide = H_out * W_pad                        # "wide" rows; cols ox >= W_out are garbage
    halo = (kh - 1) * W_pad + (kw - 1)

    TM = max(min(n_wide, tile_rows), halo, 8)     # tile of wide output rows
    TM = _round_up(TM, 8)
    n_tiles = _cdiv(n_wide, TM)
    n_x = (n_tiles + 1) * TM                      # tile t also loads tile t+1 as halo
    K_total = kh * kw * C_in
    C_out_pad = _round_up(C_out, 128)             # lane-dense output channels
    # TODO(synk): for C_out << 128 the lane padding inflates output writes; a spatial-lane
    # layout (channels on sublanes) would avoid it but needs a different conv formulation.

    # --- input prep: reflection pad + NHWC flatten + bf16 cast via a single gather ---
    # TODO(synk): move the reflection gather into the kernel (scalar-prefetched row table +
    # manual DMA) to avoid materializing the padded copy in HBM.
    yi = _reflect_index(H, padding)
    xi = _reflect_index(W, padding)
    flat_idx = (yi[:, None] * W + xi[None, :]).reshape(-1)            # [H_pad*W_pad]
    x_flat = jnp.take(x.reshape(B, C_in, H * W), flat_idx, axis=2)    # [B, C_in, H_pad*W_pad]
    x_flat = jnp.transpose(x_flat, (0, 2, 1)).astype(jnp.bfloat16)    # [B, H_pad*W_pad, C_in]
    x_flat = jnp.pad(x_flat, ((0, 0), (0, n_x - H_pad * W_pad), (0, 0)))

    # --- weights in im2col order, bf16 for the MXU, lane-padded C_out ---
    w2 = jnp.transpose(conv_weight, (2, 3, 1, 0)).reshape(K_total, C_out)
    w2 = jnp.pad(w2, ((0, 0), (0, C_out_pad - C_out))).astype(jnp.bfloat16)

    # --- fold InstanceNorm affine into the style affine: (xhat*w+b)*g+bt = xhat*(w*g)+(b*g+bt) ---
    if (alpha is not None) and (style_no2 is not None):
        g_row = alpha * gamma[style_no] + (1.0 - alpha) * gamma[style_no2]
        b_row = alpha * beta[style_no] + (1.0 - alpha) * beta[style_no2]
    else:
        g_row = gamma[style_no]
        b_row = beta[style_no]
    scale = (in_weight * g_row).astype(jnp.float32)
    shift = (in_bias * g_row + b_row).astype(jnp.float32)
    scale = jnp.pad(scale, (0, C_out_pad - C_out)).reshape(1, C_out_pad)
    shift = jnp.pad(shift, (0, C_out_pad - C_out)).reshape(1, C_out_pad)

    kernel = functools.partial(
        _cond_conv_kernel, kh=kh, kw=kw, w_pad=W_pad, w_out=W_out, n_wide=n_wide,
        tm=TM, c_in=C_in, eps=float(eps), act=act, inv_p=1.0 / float(H_out * W_out))

    # --- VMEM budget from actual tile/scratch bytes (image-size independent) ---
    lane = 128
    ci_l = _round_up(C_in, lane)
    k_l = _round_up(K_total, lane)
    blk = (2 * 2 * TM * ci_l * 2                  # two x views, double-buffered, bf16
           + 2 * K_total * C_out_pad * 2          # weights
           + 2 * 2 * 8 * C_out_pad * 4            # scale / shift
           + 2 * TM * C_out_pad * 4)              # output tile, double-buffered
    scr = 2 * TM * ci_l * 2 + TM * k_l * 2 + 8 * C_out_pad * 4
    tmp = 8 * TM * C_out_pad * 4                  # acc / epilogue temporaries headroom
    vmem_limit = min(max(int(1.5 * (blk + scr + tmp)), 32 * 1024 * 1024), 64 * 1024 * 1024)

    out_wide = pl.pallas_call(
        kernel,
        out_shape=jax.ShapeDtypeStruct((B, n_tiles * TM, C_out_pad), jnp.float32),
        grid_spec=pltpu.PrefetchScalarGridSpec(
            num_scalar_prefetch=0,
            grid=(B, 2, n_tiles),                 # (batch, phase[stats|normalize], row tile)
            in_specs=[
                pl.BlockSpec((1, TM, C_in), lambda b, p, t: (b, t, 0)),
                pl.BlockSpec((1, TM, C_in), lambda b, p, t: (b, t + 1, 0)),
                pl.BlockSpec((K_total, C_out_pad), lambda b, p, t: (0, 0)),
                pl.BlockSpec((1, C_out_pad), lambda b, p, t: (0, 0)),
                pl.BlockSpec((1, C_out_pad), lambda b, p, t: (0, 0)),
            ],
            # Phase 0 never writes: parking its output index on block 0 (p*t == 0) keeps
            # that block resident, so each output tile is written back to HBM exactly once
            # and always carries phase-1 (normalized) data.
            out_specs=pl.BlockSpec((1, TM, C_out_pad), lambda b, p, t: (b, p * t, 0)),
            scratch_shapes=[
                pltpu.VMEM((2 * TM, C_in), jnp.bfloat16),     # joined tile + halo rows
                pltpu.VMEM((TM, K_total), jnp.bfloat16),      # per-tile im2col LHS
                pltpu.VMEM((8, C_out_pad), jnp.float32),      # per-batch sum / sumsq
            ]),
        compiler_params=pltpu.CompilerParams(
            # TODO(synk): on v7x with B=1 one TensorCore is idle; splitting row tiles across
            # cores needs CMEM-shared stats or a separate stats pass.
            dimension_semantics=("parallel", "arbitrary", "arbitrary"),
            vmem_limit_bytes=vmem_limit),
    )(x_flat, x_flat, w2, scale, shift)

    # un-pad: drop tile padding rows, garbage wide columns and padded channels; back to NCHW.
    out = out_wide[:, :n_wide, :].reshape(B, H_out, W_pad, C_out_pad)[:, :, :W_out, :C_out]
    if return_nchw:
        out = jnp.transpose(out, (0, 3, 1, 2))
    return out


def _reference(x, conv_w, conv_b, in_w, in_b, gamma, beta, style_no, *,
               padding, stride, act, eps=1e-5):
    """Pure-JAX reference matching the PyTorch module (includes the conv bias)."""
    x_p = jnp.pad(x, ((0, 0), (0, 0), (padding, padding), (padding, padding)),
                  mode="reflect")
    y = lax.conv_general_dilated(x_p, conv_w, window_strides=(stride, stride),
                                 padding="VALID",
                                 dimension_numbers=("NCHW", "OIHW", "NCHW"))
    y = y + conv_b.reshape(1, -1, 1, 1)
    mean = jnp.mean(y, axis=(2, 3), keepdims=True)
    var = jnp.mean((y - mean) ** 2, axis=(2, 3), keepdims=True)     # biased
    y = (y - mean) * lax.rsqrt(var + eps)
    y = y * in_w.reshape(1, -1, 1, 1) + in_b.reshape(1, -1, 1, 1)
    y = y * gamma[style_no].reshape(1, -1, 1, 1) + beta[style_no].reshape(1, -1, 1, 1)
    if act:
        y = jnp.maximum(y, 0.0)
    return y


if __name__ == "__main__":
    key = jax.random.PRNGKey(0)
    B, C_in, H, W = 2, 4, 16, 16
    C_out, k, padding, stride = 8, 3, 1, 1
    num_styles = 4
    ks = jax.random.split(key, 6)

    x = jax.random.normal(ks[0], (B, C_in, H, W), jnp.float32)
    conv_w = 0.01 * jax.random.normal(ks[1], (C_out, C_in, k, k), jnp.float32)
    conv_b = 0.1 * jax.random.normal(ks[2], (C_out,), jnp.float32)
    in_w = jnp.ones((C_out,), jnp.float32)      # InstanceNorm2d affine init (weight=1)
    in_b = jnp.zeros((C_out,), jnp.float32)     # InstanceNorm2d affine init (bias=0)
    gamma = 1.0 + 0.1 * jax.random.normal(ks[3], (num_styles, C_out), jnp.float32)
    beta = 0.1 * jax.random.normal(ks[4], (num_styles, C_out), jnp.float32)
    style_no = 1

    # tile_rows=256 with this shape gives n_wide=288 -> 2 row tiles, exercising the
    # multi-tile stats accumulation and the last-tile row/column masking.
    out = cond_convolution(x, conv_w, conv_b, in_w, in_b, gamma, beta, style_no,
                           padding=padding, stride=stride, act=True, tile_rows=256)
    out = jax.block_until_ready(out)

    ref = _reference(x, conv_w, conv_b, in_w, in_b, gamma, beta, style_no,
                     padding=padding, stride=stride, act=True)
    ref = jax.block_until_ready(ref)

    assert out.shape == ref.shape, (out.shape, ref.shape)
    max_err = float(jnp.max(jnp.abs(out - ref)))
    # bf16 MXU inputs -> tolerance loosened vs. the f32 version (was 2e-4).
    if not bool(jnp.allclose(out, ref, atol=5e-2, rtol=5e-2)):
        raise AssertionError(f"Pallas CondConvolution mismatch vs reference, max abs err={max_err}")
    print("KERNEL_OK")
</pallas_src>

<mosaic_0001>
module attributes {stable_mosaic.version = 11 : i64} {
  func.func @_cond_conv_kernel(%arg0: i32, %arg1: i32, %arg2: i32, %arg3: memref<1x256x4xbf16, #tpu.memory_space<vmem>>, %arg4: memref<1x256x4xbf16, #tpu.memory_space<vmem>>, %arg5: memref<36x128xbf16, #tpu.memory_space<vmem>>, %arg6: memref<1x128xf32, #tpu.memory_space<vmem>>, %arg7: memref<1x128xf32, #tpu.memory_space<vmem>>, %arg8: memref<1x256x128xf32, #tpu.memory_space<vmem>>, %arg9: memref<512x4xbf16, #tpu.memory_space<vmem>>, %arg10: memref<256x36xbf16, #tpu.memory_space<vmem>>, %arg11: memref<8x128xf32, #tpu.memory_space<vmem>>) attributes {dimension_semantics = [#tpu.dimension_semantics<parallel>, #tpu.dimension_semantics<arbitrary>, #tpu.dimension_semantics<arbitrary>], iteration_bounds = array<i64: 2, 2, 2>, scalar_prefetch = 0 : i64, scratch_operands = 3 : i64, tpu.core_type = #tpu.core_type<tc>, window_params = [{transform_indices = @transform_0, window_bounds = array<i64: 1, 256, 4>}, {transform_indices = @transform_1, window_bounds = array<i64: 1, 256, 4>}, {pipeline_mode = #tpu.pipeline_mode<synchronous>, transform_indices = @transform_2, window_bounds = array<i64: 36, 128>}, {pipeline_mode = #tpu.pipeline_mode<synchronous>, transform_indices = @transform_3, window_bounds = array<i64: 1, 128>}, {pipeline_mode = #tpu.pipeline_mode<synchronous>, transform_indices = @transform_4, window_bounds = array<i64: 1, 128>}, {transform_indices = @transform_5, window_bounds = array<i64: 1, 256, 128>}]} {
    %c0 = arith.constant 0 : index
    %c0_0 = arith.constant 0 : index
    %c0_1 = arith.constant 0 : index
    %0 = vector.load %arg3[%c0, %c0_0, %c0_1] : memref<1x256x4xbf16, #tpu.memory_space<vmem>>, vector<1x256x4xbf16>
    %1 = vector.shape_cast %0 : vector<1x256x4xbf16> to vector<256x4xbf16>
    %c0_2 = arith.constant 0 : index
    %c0_3 = arith.constant 0 : index
    %2 = vector.load %arg9[%c0_2, %c0_3] : memref<512x4xbf16, #tpu.memory_space<vmem>>, vector<256x4xbf16>
    tpu.vector_store %arg9[%c0_2, %c0_3], %1 {strides = array<i32>} : memref<512x4xbf16, #tpu.memory_space<vmem>>, vector<256x4xbf16>,
    %c0_4 = arith.constant 0 : index
    %c0_5 = arith.constant 0 : index
    %c0_6 = arith.constant 0 : index
    %3 = vector.load %arg4[%c0_4, %c0_5, %c0_6] : memref<1x256x4xbf16, #tpu.memory_space<vmem>>, vector<1x256x4xbf16>
    %4 = vector.shape_cast %3 : vector<1x256x4xbf16> to vector<256x4xbf16>
    %c256 = arith.constant 256 : index
    %c0_7 = arith.constant 0 : index
    %5 = vector.load %arg9[%c256, %c0_7] : memref<512x4xbf16, #tpu.memory_space<vmem>>, vector<256x4xbf16>
    tpu.vector_store %arg9[%c256, %c0_7], %4 {strides = array<i32>} : memref<512x4xbf16, #tpu.memory_space<vmem>>, vector<256x4xbf16>,
    %c0_8 = arith.constant 0 : index
    %c0_9 = arith.constant 0 : index
    %6 = vector.load %arg9[%c0_8, %c0_9] : memref<512x4xbf16, #tpu.memory_space<vmem>>, vector<256x4xbf16>
    %c0_10 = arith.constant 0 : index
    %c0_11 = arith.constant 0 : index
    %7 = vector.load %arg10[%c0_10, %c0_11] : memref<256x36xbf16, #tpu.memory_space<vmem>>, vector<256x4xbf16>
    tpu.vector_store %arg10[%c0_10, %c0_11], %6 {strides = array<i32>} : memref<256x36xbf16, #tpu.memory_space<vmem>>, vector<256x4xbf16>,
    %c1 = arith.constant 1 : index
    %c0_12 = arith.constant 0 : index
    %8 = vector.load %arg9[%c1, %c0_12] : memref<512x4xbf16, #tpu.memory_space<vmem>>, vector<256x4xbf16>
    %c0_13 = arith.constant 0 : index
    %c4 = arith.constant 4 : index
    %9 = vector.load %arg10[%c0_13, %c4] : memref<256x36xbf16, #tpu.memory_space<vmem>>, vector<256x4xbf16>
    tpu.vector_store %arg10[%c0_13, %c4], %8 {strides = array<i32>} : memref<256x36xbf16, #tpu.memory_space<vmem>>, vector<256x4xbf16>,
    %c2 = arith.constant 2 : index
    %c0_14 = arith.constant 0 : index
    %10 = vector.load %arg9[%c2, %c0_14] : memref<512x4xbf16, #tpu.memory_space<vmem>>, vector<256x4xbf16>
    %c0_15 = arith.constant 0 : index
    %c8 = arith.constant 8 : index
    %11 = vector.load %arg10[%c0_15, %c8] : memref<256x36xbf16, #tpu.memory_space<vmem>>, vector<256x4xbf16>
    tpu.vector_store %arg10[%c0_15, %c8], %10 {strides = array<i32>} : memref<256x36xbf16, #tpu.memory_space<vmem>>, vector<256x4xbf16>,
    %c18 = arith.constant 18 : index
    %c0_16 = arith.constant 0 : index
    %12 = vector.load %arg9[%c18, %c0_16] : memref<512x4xbf16, #tpu.memory_space<vmem>>, vector<256x4xbf16>
    %c0_17 = arith.constant 0 : index
    %c12 = arith.constant 12 : index
    %13 = vector.load %arg10[%c0_17, %c12] : memref<256x36xbf16, #tpu.memory_space<vmem>>, vector<256x4xbf16>
    tpu.vector_store %arg10[%c0_17, %c12], %12 {strides = array<i32>} : memref<256x36xbf16, #tpu.memory_space<vmem>>, vector<256x4xbf16>,
    %c19 = arith.constant 19 : index
    %c0_18 = arith.constant 0 : index
    %14 = vector.load %arg9[%c19, %c0_18] : memref<512x4xbf16, #tpu.memory_space<vmem>>, vector<256x4xbf16>
    %c0_19 = arith.constant 0 : index
    %c16 = arith.constant 16 : index
    %15 = vector.load %arg10[%c0_19, %c16] : memref<256x36xbf16, #tpu.memory_space<vmem>>, vector<256x4xbf16>
    tpu.vector_store %arg10[%c0_19, %c16], %14 {strides = array<i32>} : memref<256x36xbf16, #tpu.memory_space<vmem>>, vector<256x4xbf16>,
    %c20 = arith.constant 20 : index
    %c0_20 = arith.constant 0 : index
    %16 = vector.load %arg9[%c20, %c0_20] : memref<512x4xbf16, #tpu.memory_space<vmem>>, vector<256x4xbf16>
    %c0_21 = arith.constant 0 : index
    %c20_22 = arith.constant 20 : index
    %17 = vector.load %arg10[%c0_21, %c20_22] : memref<256x36xbf16, #tpu.memory_space<vmem>>, vector<256x4xbf16>
    tpu.vector_store %arg10[%c0_21, %c20_22], %16 {strides = array<i32>} : memref<256x36xbf16, #tpu.memory_space<vmem>>, vector<256x4xbf16>,
    %c36 = arith.constant 36 : index
    %c0_23 = arith.constant 0 : index
    %18 = vector.load %arg9[%c36, %c0_23] : memref<512x4xbf16, #tpu.memory_space<vmem>>, vector<256x4xbf16>
    %c0_24 = arith.constant 0 : index
    %c24 = arith.constant 24 : index
    %19 = vector.load %arg10[%c0_24, %c24] : memref<256x36xbf16, #tpu.memory_space<vmem>>, vector<256x4xbf16>
    tpu.vector_store %arg10[%c0_24, %c24], %18 {strides = array<i32>} : memref<256x36xbf16, #tpu.memory_space<vmem>>, vector<256x4xbf16>,
    %c37 = arith.constant 37 : index
    %c0_25 = arith.constant 0 : index
    %20 = vector.load %arg9[%c37, %c0_25] : memref<512x4xbf16, #tpu.memory_space<vmem>>, vector<256x4xbf16>
    %c0_26 = arith.constant 0 : index
    %c28 = arith.constant 28 : index
    %21 = vector.load %arg10[%c0_26, %c28] : memref<256x36xbf16, #tpu.memory_space<vmem>>, vector<256x4xbf16>
    tpu.vector_store %arg10[%c0_26, %c28], %20 {strides = array<i32>} : memref<256x36xbf16, #tpu.memory_space<vmem>>, vector<256x4xbf16>,
    %c38 = arith.constant 38 : index
    %c0_27 = arith.constant 0 : index
    %22 = vector.load %arg9[%c38, %c0_27] : memref<512x4xbf16, #tpu.memory_space<vmem>>, vector<256x4xbf16>
    %c0_28 = arith.constant 0 : index
    %c32 = arith.constant 32 : index
    %23 = vector.load %arg10[%c0_28, %c32] : memref<256x36xbf16, #tpu.memory_space<vmem>>, vector<256x4xbf16>
    tpu.vector_store %arg10[%c0_28, %c32], %22 {strides = array<i32>} : memref<256x36xbf16, #tpu.memory_space<vmem>>, vector<256x4xbf16>,
    %c0_29 = arith.constant 0 : index
    %c0_30 = arith.constant 0 : index
    %24 = vector.load %arg10[%c0_29, %c0_30] : memref<256x36xbf16, #tpu.memory_space<vmem>>, vector<256x36xbf16>
    %c0_31 = arith.constant 0 : index
    %c0_32 = arith.constant 0 : index
    %25 = vector.load %arg5[%c0_31, %c0_32] : memref<36x128xbf16, #tpu.memory_space<vmem>>, vector<36x128xbf16>
    %cst = arith.constant dense<0.000000e+00> : vector<256x128xf32>
    %26 = tpu.matmul %24, %25, %cst {dimension_numbers = #tpu.dot_dimension_numbers<[1], [0], [0], [1], [0, 0, 1, 1], [], []>} : vector<256x36xbf16>, vector<36x128xbf16>, vector<256x128xf32> -> vector<256x128xf32>
    %c0_i32 = arith.constant 0 : i32
    %27 = arith.cmpi eq, %arg1, %c0_i32 : i32
    %c0_i32_33 = arith.constant 0 : i32
    %28 = arith.cmpi eq, %arg2, %c0_i32_33 : i32
    %29 = arith.andi %27, %28 : i1
    %30 = arith.extui %29 : i1 to i32
    %c0_i32_34 = arith.constant 0 : i32
    %31 = arith.cmpi ne, %30, %c0_i32_34 : i32
    scf.if %31 {
      %cst_38 = arith.constant 0.000000e+00 : f32
      %38 = vector.broadcast %cst_38 : f32 to vector<8x128xf32>
      %c0_39 = arith.constant 0 : index
      %c0_40 = arith.constant 0 : index
      %39 = vector.load %arg11[%c0_39, %c0_40] : memref<8x128xf32, #tpu.memory_space<vmem>>, vector<8x128xf32>
      tpu.vector_store %arg11[%c0_39, %c0_40], %38 {strides = array<i32>} : memref<8x128xf32, #tpu.memory_space<vmem>>, vector<8x128xf32>,
    } else {
    }
    %c0_i32_35 = arith.constant 0 : i32
    %32 = arith.cmpi eq, %arg1, %c0_i32_35 : i32
    %33 = arith.extui %32 : i1 to i32
    %c0_i32_36 = arith.constant 0 : i32
    %34 = arith.cmpi ne, %33, %c0_i32_36 : i32
    scf.if %34 {
      %c256_i32 = arith.constant 256 : i32
      %38 = arith.muli %arg2, %c256_i32 : i32
      %39 = tpu.iota {dimensions = array<i32: 0>} : vector<256x1xi32>
      %40 = vector.broadcast %38 : i32 to vector<256x1xi32>
      %41 = arith.addi %40, %39 : vector<256x1xi32>
      %c18_i32 = arith.constant 18 : i32
      %c0_i32_38 = arith.constant 0 : i32
      %42 = arith.cmpi eq, %c18_i32, %c0_i32_38 : i32
      %c1_i32_39 = arith.constant 1 : i32
      %43 = arith.select %42, %c1_i32_39, %c18_i32 : i32
      %44 = vector.broadcast %43 : i32 to vector<256x1xi32>
      %45 = arith.remsi %41, %44 : vector<256x1xi32>
      %c0_i32_40 = arith.constant 0 : i32
      %46 = vector.broadcast %c0_i32_40 : i32 to vector<256x1xi32>
      %47 = arith.cmpi ne, %45, %46 : vector<256x1xi32>
      %c0_i32_41 = arith.constant 0 : i32
      %48 = vector.broadcast %c0_i32_41 : i32 to vector<256x1xi32>
      %49 = arith.cmpi slt, %45, %48 : vector<256x1xi32>
      %c0_i32_42 = arith.constant 0 : i32
      %50 = arith.cmpi slt, %43, %c0_i32_42 : i32
      %51 = vector.broadcast %50 : i1 to vector<256x1xi1>
      %52 = vector.broadcast %51 : vector<256x1xi1> to vector<256x1xi1>
      %53 = arith.xori %49, %52 : vector<256x1xi1>
      %54 = arith.andi %53, %47 : vector<256x1xi1>
      %55 = vector.broadcast %43 : i32 to vector<256x1xi32>
      %56 = arith.addi %45, %55 : vector<256x1xi32>
      %57 = arith.select %54, %56, %45 : vector<256x1xi1>, vector<256x1xi32>
      %c16_i32 = arith.constant 16 : i32
      %58 = vector.broadcast %c16_i32 : i32 to vector<256x1xi32>
      %59 = arith.cmpi slt, %57, %58 : vector<256x1xi32>
      %c288_i32 = arith.constant 288 : i32
      %60 = vector.broadcast %c288_i32 : i32 to vector<256x1xi32>
      %61 = arith.cmpi slt, %41, %60 : vector<256x1xi32>
      %62 = arith.andi %59, %61 : vector<256x1xi1>
      %cst_43 = arith.constant 0.000000e+00 : f32
      %63 = vector.shape_cast %62 : vector<256x1xi1> to vector<256x1xi1>
      %64 = vector.broadcast %63 : vector<256x1xi1> to vector<256x128xi1>
      %65 = vector.broadcast %cst_43 : f32 to vector<256x128xf32>
      %66 = arith.select %64, %26, %65 : vector<256x128xi1>, vector<256x128xf32>
      %c0_44 = arith.constant 0 : index
      %c0_45 = arith.constant 0 : index
      %67 = vector.load %arg11[%c0_44, %c0_45] : memref<8x128xf32, #tpu.memory_space<vmem>>, vector<1x128xf32>
      %cst_46 = arith.constant dense<0.000000e+00> : vector<128xf32>
      %68 = vector.multi_reduction <add>, %66, %cst_46 [0] : vector<256x128xf32> to vector<128xf32>
      %69 = vector.shape_cast %68 : vector<128xf32> to vector<1x128xf32>
      %70 = arith.addf %67, %69 : vector<1x128xf32>
      %c0_47 = arith.constant 0 : index
      %c0_48 = arith.constant 0 : index
      %71 = vector.load %arg11[%c0_47, %c0_48] : memref<8x128xf32, #tpu.memory_space<vmem>>, vector<1x128xf32>
      tpu.vector_store %arg11[%c0_47, %c0_48], %70 {strides = array<i32>} : memref<8x128xf32, #tpu.memory_space<vmem>>, vector<1x128xf32>,
      %c1_49 = arith.constant 1 : index
      %c0_50 = arith.constant 0 : index
      %72 = vector.load %arg11[%c1_49, %c0_50] : memref<8x128xf32, #tpu.memory_space<vmem>>, vector<1x128xf32>
      %73 = arith.mulf %66, %26 : vector<256x128xf32>
      %cst_51 = arith.constant dense<0.000000e+00> : vector<128xf32>
      %74 = vector.multi_reduction <add>, %73, %cst_51 [0] : vector<256x128xf32> to vector<128xf32>
      %75 = vector.shape_cast %74 : vector<128xf32> to vector<1x128xf32>
      %76 = arith.addf %72, %75 : vector<1x128xf32>
      %c1_52 = arith.constant 1 : index
      %c0_53 = arith.constant 0 : index
      %77 = vector.load %arg11[%c1_52, %c0_53] : memref<8x128xf32, #tpu.memory_space<vmem>>, vector<1x128xf32>
      tpu.vector_store %arg11[%c1_52, %c0_53], %76 {strides = array<i32>} : memref<8x128xf32, #tpu.memory_space<vmem>>, vector<1x128xf32>,
    } else {
    }
    %c1_i32 = arith.constant 1 : i32
    %35 = arith.cmpi eq, %arg1, %c1_i32 : i32
    %36 = arith.extui %35 : i1 to i32
    %c0_i32_37 = arith.constant 0 : i32
    %37 = arith.cmpi ne, %36, %c0_i32_37 : i32
    scf.if %37 {
      %c0_38 = arith.constant 0 : index
      %c0_39 = arith.constant 0 : index
      %38 = vector.load %arg11[%c0_38, %c0_39] : memref<8x128xf32, #tpu.memory_space<vmem>>, vector<1x128xf32>
      %cst_40 = arith.constant 3.906250e-03 : f32
      %39 = vector.broadcast %cst_40 : f32 to vector<1x128xf32>
      %40 = arith.mulf %38, %39 : vector<1x128xf32>
      %c1_41 = arith.constant 1 : index
      %c0_42 = arith.constant 0 : index
      %41 = vector.load %arg11[%c1_41, %c0_42] : memref<8x128xf32, #tpu.memory_space<vmem>>, vector<1x128xf32>
      %cst_43 = arith.constant 3.906250e-03 : f32
      %42 = vector.broadcast %cst_43 : f32 to vector<1x128xf32>
      %43 = arith.mulf %41, %42 : vector<1x128xf32>
      %44 = arith.mulf %40, %40 : vector<1x128xf32>
      %45 = arith.subf %43, %44 : vector<1x128xf32>
      %cst_44 = arith.constant 9.99999974E-6 : f32
      %46 = vector.broadcast %cst_44 : f32 to vector<1x128xf32>
      %47 = arith.addf %45, %46 : vector<1x128xf32>
      %48 = math.rsqrt %47 : vector<1x128xf32>
      %c0_45 = arith.constant 0 : index
      %c0_46 = arith.constant 0 : index
      %49 = vector.load %arg6[%c0_45, %c0_46] : memref<1x128xf32, #tpu.memory_space<vmem>>, vector<1x128xf32>
      %50 = arith.mulf %48, %49 : vector<1x128xf32>
      %c0_47 = arith.constant 0 : index
      %c0_48 = arith.constant 0 : index
      %51 = vector.load %arg7[%c0_47, %c0_48] : memref<1x128xf32, #tpu.memory_space<vmem>>, vector<1x128xf32>
      %52 = arith.mulf %40, %50 : vector<1x128xf32>
      %53 = arith.subf %51, %52 : vector<1x128xf32>
      %54 = vector.broadcast %50 : vector<1x128xf32> to vector<256x128xf32>
      %55 = arith.mulf %26, %54 : vector<256x128xf32>
      %56 = vector.broadcast %53 : vector<1x128xf32> to vector<256x128xf32>
      %57 = arith.addf %55, %56 : vector<256x128xf32>
      %cst_49 = arith.constant 0.000000e+00 : f32
      %58 = vector.broadcast %cst_49 : f32 to vector<256x128xf32>
      %59 = arith.maximumf %57, %58 : vector<256x128xf32>
      %c0_50 = arith.constant 0 : index
      %c0_51 = arith.constant 0 : index
      %c0_52 = arith.constant 0 : index
      %60 = vector.load %arg8[%c0_50, %c0_51, %c0_52] : memref<1x256x128xf32, #tpu.memory_space<vmem>>, vector<1x256x128xf32>
      %61 = vector.shape_cast %60 : vector<1x256x128xf32> to vector<256x128xf32>
      %62 = vector.shape_cast %59 : vector<256x128xf32> to vector<1x256x128xf32>
      tpu.vector_store %arg8[%c0_50, %c0_51, %c0_52], %62 {strides = array<i32>} : memref<1x256x128xf32, #tpu.memory_space<vmem>>, vector<1x256x128xf32>,
    } else {
    }
    return
  }
  func.func @transform_0(%arg0: i32, %arg1: i32, %arg2: i32) -> (i32, i32, i32) {
    %c0_i32 = arith.constant 0 : i32
    %c0_i32_0 = arith.constant 0 : i32
    return %arg0, %arg2, %c0_i32 : i32, i32, i32
  }
  func.func @transform_1(%arg0: i32, %arg1: i32, %arg2: i32) -> (i32, i32, i32) {
    %c1_i32 = arith.constant 1 : i32
    %0 = arith.addi %arg2, %c1_i32 : i32
    %c0_i32 = arith.constant 0 : i32
    %c0_i32_0 = arith.constant 0 : i32
    return %arg0, %0, %c0_i32 : i32, i32, i32
  }
  func.func @transform_2(%arg0: i32, %arg1: i32, %arg2: i32) -> (i32, i32) {
    %c0_i32 = arith.constant 0 : i32
    %c0_i32_0 = arith.constant 0 : i32
    %c0_i32_1 = arith.constant 0 : i32
    return %c0_i32, %c0_i32_0 : i32, i32
  }
  func.func @transform_3(%arg0: i32, %arg1: i32, %arg2: i32) -> (i32, i32) {
    %c0_i32 = arith.constant 0 : i32
    %c0_i32_0 = arith.constant 0 : i32
    %c0_i32_1 = arith.constant 0 : i32
    return %c0_i32, %c0_i32_0 : i32, i32
  }
  func.func @transform_4(%arg0: i32, %arg1: i32, %arg2: i32) -> (i32, i32) {
    %c0_i32 = arith.constant 0 : i32
    %c0_i32_0 = arith.constant 0 : i32
    %c0_i32_1 = arith.constant 0 : i32
    return %c0_i32, %c0_i32_0 : i32, i32
  }
  func.func @transform_5(%arg0: i32, %arg1: i32, %arg2: i32) -> (i32, i32, i32) {
    %0 = arith.muli %arg1, %arg2 : i32
    %c0_i32 = arith.constant 0 : i32
    %c0_i32_0 = arith.constant 0 : i32
    return %arg0, %0, %c0_i32 : i32, i32, i32
  }
}

</mosaic_0001>

<llo_original>
// kernel: tpu_custom_call.1
$region0: #{tpu_custom_call.1}
  #allocation0 [shape = 'u32[]', space=smem, size = 0x4, offset = 0x4, fixed_abs, tag = 'smem constant byte address 0x4 - core index']
  #allocation1 [shape = 'u32[144,128]{1,0:T(1,128)}', space=vmem, size = 0x12000, scoped, tag = 'internal scratch']
  #allocation2 [shape = 'bf16[512,4]{1,0:T(16,128)(2,1)}', space=vmem, size = 0x20000, scoped, tag = 'scratch operand']
  #allocation3 [shape = 'bf16[256,36]{1,0:T(16,128)(2,1)}', space=vmem, size = 0x10000, scoped, tag = 'scratch operand']
  #allocation4 [shape = 'f32[8,128]{1,0:T(8,128)}', space=vmem, size = 0x1000, scoped, tag = 'scratch operand']
  %s0 = inlined_call_operand.vmem [shape: bf16[2,768,4], index: 0, kind: input, shape index: {}]
  %s1 = inlined_call_operand.vmem [shape: bf16[2,768,4], index: 1, kind: input, shape index: {}]
  %s2 = inlined_call_operand.vmem [shape: bf16[36,128], index: 2, kind: input, shape index: {}]
  %s3 = inlined_call_operand.vmem [shape: f32[1,128], index: 3, kind: input, shape index: {}]
  %s4 = inlined_call_operand.vmem [shape: f32[1,128], index: 4, kind: input, shape index: {}]
  %s5 = inlined_call_operand.hbm [shape: f32[2,512,128], index: 5, kind: output, shape index: {}]
  %s6 = sld [smem:[#allocation0]]
  $region65: #{tpu_custom_call.1} parent=0
    _
  %s8 = ssub.s32 1, %s6
  %s9 = scalar_select 0, %s8, %s6
  $region1: #{tpu_custom_call.1} parent=0
    #allocation5 [shape = 'u8[262144]{0}', space=vmem, size = 0x40000, scoped, tag = 'output window, operand 0']
    #allocation6 [shape = 's32[2]{0}', space=sflag, size = 0x8, scoped, tag = 'scoped memory for tpu_custom_call.1']
    %10 = vsyncpa [#allocation6], 0
    %s11 = scalar_lea.sflag [#allocation6], 1
    %12 = vsyncpa %s11, 0
    loop: start=0, step=1, limit=10
    $region2: #{tpu_custom_call.1} parent=1 // loop_pre_header
      _
    $region3: #{tpu_custom_call.1} parent=1 // loop_header
      %s14 = sphi 0, %s18
      %p15 = scmp.ge.s32.totalorder %s14, 10
      %s21 = sphi 0, %s40
      %s22 = sphi 0, %s36
      %s23 = sphi 0, %s32
      %s24 = sphi 0, %s21
      %s25 = sphi 0, %s22
      %s26 = sphi 0, %s23
      %s27 = sphi 0, %s24
      %s28 = sphi 0, %s25
      %s29 = sphi 0, %s26
      %s45 = sphi 0, %s47
      %s48 = sphi 0, %s45
      %s49 = sphi 0, %s48
      %s65 = sphi 0, %s49
      %s75 = sphi 0, %s77
      %s78 = sphi 0, %s75
      %s79 = sphi 0, %s78
      %s95 = sphi 0, %s79
      %s99 = sphi 0, %s99
      %s101 = sphi 0, %s99
      %s102 = sphi 0, %s101
      %s116 = sphi 0, %s102
      %s120 = sphi 0, %s120
      %s122 = sphi 0, %s120
      %s123 = sphi 0, %s122
      %s137 = sphi 0, %s123
      %s141 = sphi 0, %s141
      %s143 = sphi 0, %s141
      %s144 = sphi 0, %s143
      %s158 = sphi 0, %s144
      %s168 = sphi 0, %s170
      %s171 = sphi 0, %s168
      %s172 = sphi 0, %s171
      %s188 = sphi 0, %s172
    $region4: #{tpu_custom_call.1} parent=1 // loop_header_branch
      %17 = sbr.rel (%p15) target = $region8
    $region5: #{tpu_custom_call.1} parent=1 // loop_body
      %s19 = ssub.s32 %s14, 1
      %s20 = ssub.s32 %s14, 2
      %s30 = sadd.s32 1, %s23
      %p31 = scmp.ge.s32.totalorder %s30, 2
      %s32 = scalar_select %p31, 0, %s30
      %s33 = sadd.s32 1, %s22
      %s34 = scalar_select %p31, %s33, %s22
      %p35 = scmp.ge.s32.totalorder %s34, 2
      %s36 = scalar_select %p35, 0, %s34
      %s37 = sadd.s32 1, %s21
      %s38 = scalar_select %p35, %s37, %s21
      %p39 = scmp.ge.s32.totalorder %s38, 2
      %s40 = scalar_select %p39, 0, %s38
      %s41 = ssub.s32 %s21, %s40
      %s42 = ssub.s32 %s23, %s32
      %s43 = sor.u32 %s41, %s42
      %p44 = scmp.eq.s32.totalorder %s43, 0
      %s46 = sadd.s32 %s45, 1
      %s47 = scalar_select %p44, %s45, %s46
      %p50 = pneg %p44
      %p51 = scmp.eq.s32.totalorder %s14, 7
      %p52 = por %p50, %p51
      %p53 = scmp.ne.s32.totalorder %s45, %s48
      %p54 = scmp.eq.s32.totalorder %s14, 0
      %p55 = por %p53, %p54
      %p56 = scmp.ne.s32.totalorder %s45, %s48
      %p57 = scmp.eq.s32.totalorder %s19, 7
      %p58 = por %p56, %p57
      %p59 = scmp.ne.s32.totalorder %s48, %s49
      %p60 = scmp.eq.s32.totalorder %s19, 0
      %p61 = por %p59, %p60
      %p62 = scmp.ne.s32.totalorder %s48, %s49
      %p63 = scmp.eq.s32.totalorder %s20, 7
      %p64 = por %p62, %p63
      %p66 = scmp.ne.s32.totalorder %s49, %s65
      %p67 = scmp.eq.s32.totalorder %s20, 0
      %p68 = por %p66, %p67
      %s69 = sadd.s32 %s23, 1
      %s70 = sadd.s32 %s32, 1
      %s71 = ssub.s32 %s21, %s40
      %s72 = ssub.s32 %s69, %s70
      %s73 = sor.u32 %s71, %s72
      %p74 = scmp.eq.s32.totalorder %s73, 0
      %s76 = sadd.s32 %s75, 1
      %s77 = scalar_select %p74, %s75, %s76
      %p80 = pneg %p74
      %p81 = scmp.eq.s32.totalorder %s14, 7
      %p82 = por %p80, %p81
      %p83 = scmp.ne.s32.totalorder %s75, %s78
      %p84 = scmp.eq.s32.totalorder %s14, 0
      %p85 = por %p83, %p84
      %p86 = scmp.ne.s32.totalorder %s75, %s78
      %p87 = scmp.eq.s32.totalorder %s19, 7
      %p88 = por %p86, %p87
      %p89 = scmp.ne.s32.totalorder %s78, %s79
      %p90 = scmp.eq.s32.totalorder %s19, 0
      %p91 = por %p89, %p90
      %p92 = scmp.ne.s32.totalorder %s78, %s79
      %p93 = scmp.eq.s32.totalorder %s20, 7
      %p94 = por %p92, %p93
      %p96 = scmp.ne.s32.totalorder %s79, %s95
      %p97 = scmp.eq.s32.totalorder %s20, 0
      %p98 = por %p96, %p97
      %s100 = sadd.s32 %s99, 1
      %p103 = scmp.eq.s32.totalorder %s14, 7
      %p104 = scmp.ne.s32.totalorder %s99, %s101
      %p105 = scmp.eq.s32.totalorder %s14, 0
      %p106 = por %p104, %p105
      %p107 = scmp.ne.s32.totalorder %s99, %s101
      %p108 = scmp.eq.s32.totalorder %s19, 7
      %p109 = por %p107, %p108
      %p110 = scmp.ne.s32.totalorder %s101, %s102
      %p111 = scmp.eq.s32.totalorder %s19, 0
      %p112 = por %p110, %p111
      %p113 = scmp.ne.s32.totalorder %s101, %s102
      %p114 = scmp.eq.s32.totalorder %s20, 7
      %p115 = por %p113, %p114
      %p117 = scmp.ne.s32.totalorder %s102, %s116
      %p118 = scmp.eq.s32.totalorder %s20, 0
      %p119 = por %p117, %p118
      %s121 = sadd.s32 %s120, 1
      %p124 = scmp.eq.s32.totalorder %s14, 7
      %p125 = scmp.ne.s32.totalorder %s120, %s122
      %p126 = scmp.eq.s32.totalorder %s14, 0
      %p127 = por %p125, %p126
      %p128 = scmp.ne.s32.totalorder %s120, %s122
      %p129 = scmp.eq.s32.totalorder %s19, 7
      %p130 = por %p128, %p129
      %p131 = scmp.ne.s32.totalorder %s122, %s123
      %p132 = scmp.eq.s32.totalorder %s19, 0
      %p133 = por %p131, %p132
      %p134 = scmp.ne.s32.totalorder %s122, %s123
      %p135 = scmp.eq.s32.totalorder %s20, 7
      %p136 = por %p134, %p135
      %p138 = scmp.ne.s32.totalorder %s123, %s137
      %p139 = scmp.eq.s32.totalorder %s20, 0
      %p140 = por %p138, %p139
      %s142 = sadd.s32 %s141, 1
      %p145 = scmp.eq.s32.totalorder %s14, 7
      %p146 = scmp.ne.s32.totalorder %s141, %s143
      %p147 = scmp.eq.s32.totalorder %s14, 0
      %p148 = por %p146, %p147
      %p149 = scmp.ne.s32.totalorder %s141, %s143
      %p150 = scmp.eq.s32.totalorder %s19, 7
      %p151 = por %p149, %p150
      %p152 = scmp.ne.s32.totalorder %s143, %s144
      %p153 = scmp.eq.s32.totalorder %s19, 0
      %p154 = por %p152, %p153
      %p155 = scmp.ne.s32.totalorder %s143, %s144
      %p156 = scmp.eq.s32.totalorder %s20, 7
      %p157 = por %p155, %p156
      %p159 = scmp.ne.s32.totalorder %s144, %s158
      %p160 = scmp.eq.s32.totalorder %s20, 0
      %p161 = por %p159, %p160
      %s162 = smul.u32 %s22, %s23
      %s163 = smul.u32 %s36, %s32
      %s164 = ssub.s32 %s21, %s40
      %s165 = ssub.s32 %s162, %s163
      %s166 = sor.u32 %s164, %s165
      %p167 = scmp.eq.s32.totalorder %s166, 0
      %s169 = sadd.s32 %s168, 1
      %s170 = scalar_select %p167, %s168, %s169
      %p173 = pneg %p167
      %p174 = scmp.eq.s32.totalorder %s14, 7
      %p175 = por %p173, %p174
      %p176 = scmp.ne.s32.totalorder %s168, %s171
      %p177 = scmp.eq.s32.totalorder %s14, 0
      %p178 = por %p176, %p177
      %p179 = scmp.ne.s32.totalorder %s168, %s171
      %p180 = scmp.eq.s32.totalorder %s19, 7
      %p181 = por %p179, %p180
      %p182 = scmp.ne.s32.totalorder %s171, %s172
      %p183 = scmp.eq.s32.totalorder %s19, 0
      %p184 = por %p182, %p183
      %p185 = scmp.ne.s32.totalorder %s171, %s172
      %p186 = scmp.eq.s32.totalorder %s20, 7
      %p187 = por %p185, %p186
      %p189 = scmp.ne.s32.totalorder %s172, %s188
      %p190 = scmp.eq.s32.totalorder %s20, 0
      %p191 = por %p189, %p190
      %p192 = scmp.le.s32.totalorder 1, %s14
      %p193 = scmp.lt.s32.totalorder %s14, 9
      %p194 = pnand %p192, %p193
      %p195 = pneg %p194
      // Predicated region
      $region9: #{tpu_custom_call.1} parent=5 // pred_check
        _
      $region10: #{tpu_custom_call.1} parent=5 // pred_check_branch
        %197 = sbr.rel (%p194) target = $region12
      $region11: #{tpu_custom_call.1} parent=5 // pred_region
        %s198 = ssub.s32 %s14, 1
        // Predicated region
        $region13: #{tpu_custom_call.1} parent=11 // pred_check
          %p199 = pneg %p112
        $region14: #{tpu_custom_call.1} parent=11 // pred_check_branch
          %201 = sbr.rel (%p199) target = $region16
        $region15: #{tpu_custom_call.1} parent=11 // pred_region
          _
        $region16: #{tpu_custom_call.1} parent=11 // pred_fallthru
          _
        // Predicated region
        $region17: #{tpu_custom_call.1} parent=11 // pred_check
          %p202 = pneg %p133
        $region18: #{tpu_custom_call.1} parent=11 // pred_check_branch
          %204 = sbr.rel (%p202) target = $region20
        $region19: #{tpu_custom_call.1} parent=11 // pred_region
          _
        $region20: #{tpu_custom_call.1} parent=11 // pred_fallthru
          _
        // Predicated region
        $region21: #{tpu_custom_call.1} parent=11 // pred_check
          %p205 = pneg %p154
        $region22: #{tpu_custom_call.1} parent=11 // pred_check_branch
          %207 = sbr.rel (%p205) target = $region24
        $region23: #{tpu_custom_call.1} parent=11 // pred_region
          _
        $region24: #{tpu_custom_call.1} parent=11 // pred_fallthru
          _
      $region12: #{tpu_custom_call.1} parent=5 // pred_fallthru
        _
      %p208 = scmp.lt.s32.totalorder %s14, 8
      // Predicated region
      $region25: #{tpu_custom_call.1} parent=5 // pred_check
        %p209 = pneg %p208
      $region26: #{tpu_custom_call.1} parent=5 // pred_check_branch
        %211 = sbr.rel (%p209) target = $region28
      $region27: #{tpu_custom_call.1} parent=5 // pred_region
        // Predicated region
        $region29: #{tpu_custom_call.1} parent=27 // pred_check
          %p212 = pneg %p55
        $region30: #{tpu_custom_call.1} parent=27 // pred_check_branch
          %214 = sbr.rel (%p212) target = $region32
        $region31: #{tpu_custom_call.1} parent=27 // pred_region
          %s215 = smul.u32 32, %s23
          %p216 = scmp.lt.s32.totalorder %s21, 1
          %s217 = scalar_select %p216, %s21, 1
          %p218 = scmp.lt.s32.totalorder %s215, 95
          %s219 = scalar_select %p218, %s215, 95
          %s220 = smul.addr %s217, 96
          %s221 = sadd.s32 %s219, %s220
          %s222 = smul.addr %s221, 4
          %s223 = scalar_lea.vmem %s0, %s222
          %s224 = smul.u32 32, %s23
        $region32: #{tpu_custom_call.1} parent=27 // pred_fallthru
          _
        // Predicated region
        $region33: #{tpu_custom_call.1} parent=27 // pred_check
          %p225 = pneg %p85
        $region34: #{tpu_custom_call.1} parent=27 // pred_check_branch
          %227 = sbr.rel (%p225) target = $region36
        $region35: #{tpu_custom_call.1} parent=27 // pred_region
          %s228 = sadd.s32 %s23, 1
          %s229 = smul.u32 32, %s228
          %p230 = scmp.lt.s32.totalorder %s21, 1
          %s231 = scalar_select %p230, %s21, 1
          %p232 = scmp.lt.s32.totalorder %s229, 95
          %s233 = scalar_select %p232, %s229, 95
          %s234 = smul.addr %s231, 96
          %s235 = sadd.s32 %s233, %s234
          %s236 = smul.addr %s235, 4
          %s237 = scalar_lea.vmem %s1, %s236
          %s238 = sadd.s32 %s23, 1
          %s239 = smul.u32 32, %s238
        $region36: #{tpu_custom_call.1} parent=27 // pred_fallthru
          _
      $region28: #{tpu_custom_call.1} parent=5 // pred_fallthru
        _
      %p240 = scmp.le.s32.totalorder 1, %s14
      %p241 = scmp.lt.s32.totalorder %s14, 9
      %p242 = pnand %p240, %p241
      %p243 = pneg %p242
      // Predicated region
      $region37: #{tpu_custom_call.1} parent=5 // pred_check
        _
      $region38: #{tpu_custom_call.1} parent=5 // pred_check_branch
        %245 = sbr.rel (%p242) target = $region40
      $region39: #{tpu_custom_call.1} parent=5 // pred_region
        %s246 = ssub.s32 %s14, 1
        %s247 = smul.u32 32, %s26
        %p248 = scmp.lt.s32.totalorder %s24, 1
        %s249 = scalar_select %p248, %s24, 1
        %p250 = scmp.lt.s32.totalorder %s247, 95
        %s251 = scalar_select %p250, %s247, 95
        %s252 = smul.addr %s249, 96
        %s253 = sadd.s32 %s251, %s252
        %s254 = smul.addr %s253, 4
        %s255 = scalar_lea.vmem %s0, %s254
        %p256 = pneg %p61
        %p257 = pneg %p58
        %s258 = sadd.s32 %s26, 1
        %s259 = smul.u32 32, %s258
        %p260 = scmp.lt.s32.totalorder %s24, 1
        %s261 = scalar_select %p260, %s24, 1
        %p262 = scmp.lt.s32.totalorder %s259, 95
        %s263 = scalar_select %p262, %s259, 95
        %s264 = smul.addr %s261, 96
        %s265 = sadd.s32 %s263, %s264
        %s266 = smul.addr %s265, 4
        %s267 = scalar_lea.vmem %s1, %s266
        %p268 = pneg %p91
        %p269 = pneg %p88
        %p270 = pneg %p112
        %p271 = pneg %p109
        %p272 = pneg %p133
        %p273 = pneg %p130
        %p274 = pneg %p154
        %p275 = pneg %p151
        %p276 = pneg %p184
        %p277 = pneg %p181
        %s278 = sand.u32 %s171, 1
        %s279 = scalar_lea.sflag [#allocation6], %s278
        %s280 = sand.u32 %s171, 1
        %s281 = smul.addr %s280, 256
        %s282 = scalar_lea.vmem [#allocation5], %s281
        %s283 = smul.u32 32, %s26
        %p284 = scmp.lt.s32.totalorder %s24, 1
        %s285 = scalar_select %p284, %s24, 1
        %p286 = scmp.lt.s32.totalorder %s283, 95
        %s287 = scalar_select %p286, %s283, 95
        %s288 = smul.addr %s285, 96
        %s289 = sadd.s32 %s287, %s288
        %s290 = smul.addr %s289, 4
        %s291 = scalar_lea.vmem %s0, %s290
        %s292 = smul.u32 32, %s26
        %s293 = sadd.s32 %s26, 1
        %s294 = smul.u32 32, %s293
        %p295 = scmp.lt.s32.totalorder %s24, 1
        %s296 = scalar_select %p295, %s24, 1
        %p297 = scmp.lt.s32.totalorder %s294, 95
        %s298 = scalar_select %p297, %s294, 95
        %s299 = smul.addr %s296, 96
        %s300 = sadd.s32 %s298, %s299
        %s301 = smul.addr %s300, 4
        %s302 = scalar_lea.vmem %s1, %s301
        %s303 = sadd.s32 %s26, 1
        %s304 = smul.u32 32, %s303
        %s305 = smul.u32 %s25, %s26
        %s306 = smul.u32 32, %s305
        %v308 = vld [vmem:[%s291] sm:$0xf]
        %v309 = vld [vmem:[%s291 + $0x4] sm:$0xf]
        %v310 = vld [vmem:[%s291 + $0x8] sm:$0xf]
        %v311 = vld [vmem:[%s291 + $0xc] sm:$0xf]
        %v312 = vld [vmem:[%s291 + $0x10] sm:$0xf]
        %v313 = vld [vmem:[%s291 + $0x14] sm:$0xf]
        %v314 = vld [vmem:[%s291 + $0x18] sm:$0xf]
        %v315 = vld [vmem:[%s291 + $0x1c] sm:$0xf]
        %v316 = vld [vmem:[%s291 + $0x20] sm:$0xf]
        %v317 = vld [vmem:[%s291 + $0x24] sm:$0xf]
        %v318 = vld [vmem:[%s291 + $0x28] sm:$0xf]
        %v319 = vld [vmem:[%s291 + $0x2c] sm:$0xf]
        %v320 = vld [vmem:[%s291 + $0x30] sm:$0xf]
        %v321 = vld [vmem:[%s291 + $0x34] sm:$0xf]
        %v322 = vld [vmem:[%s291 + $0x38] sm:$0xf]
        %v323 = vld [vmem:[%s291 + $0x3c] sm:$0xf]
        %v324 = vld [vmem:[%s291 + $0x40] sm:$0xf]
        %v325 = vld [vmem:[%s291 + $0x44] sm:$0xf]
        %v326 = vld [vmem:[%s291 + $0x48] sm:$0xf]
        %v327 = vld [vmem:[%s291 + $0x4c] sm:$0xf]
        %v328 = vld [vmem:[%s291 + $0x50] sm:$0xf]
        %v329 = vld [vmem:[%s291 + $0x54] sm:$0xf]
        %v330 = vld [vmem:[%s291 + $0x58] sm:$0xf]
        %v331 = vld [vmem:[%s291 + $0x5c] sm:$0xf]
        %v332 = vld [vmem:[%s291 + $0x60] sm:$0xf]
        %v333 = vld [vmem:[%s291 + $0x64] sm:$0xf]
        %v334 = vld [vmem:[%s291 + $0x68] sm:$0xf]
        %v335 = vld [vmem:[%s291 + $0x6c] sm:$0xf]
        %v336 = vld [vmem:[%s291 + $0x70] sm:$0xf]
        %v337 = vld [vmem:[%s291 + $0x74] sm:$0xf]
        %v338 = vld [vmem:[%s291 + $0x78] sm:$0xf]
        %v339 = vld [vmem:[%s291 + $0x7c] sm:$0xf]
        %v372 = vunpack.c.l.b16 %v308
        %v373 = vunpack.c.l.b16 %v309
        %v374 = vunpack.c.l.b16 %v310
        %v375 = vunpack.c.l.b16 %v311
        %v376 = vunpack.c.l.b16 %v312
        %v377 = vunpack.c.l.b16 %v313
        %v378 = vunpack.c.l.b16 %v314
        %v379 = vunpack.c.l.b16 %v315
        %v380 = vunpack.c.l.b16 %v316
        %v381 = vunpack.c.l.b16 %v317
        %v382 = vunpack.c.l.b16 %v318
        %v383 = vunpack.c.l.b16 %v319
        %v384 = vunpack.c.l.b16 %v320
        %v385 = vunpack.c.l.b16 %v321
        %v386 = vunpack.c.l.b16 %v322
        %v387 = vunpack.c.l.b16 %v323
        %v388 = vunpack.c.l.b16 %v324
        %v389 = vunpack.c.l.b16 %v325
        %v390 = vunpack.c.l.b16 %v326
        %v391 = vunpack.c.l.b16 %v327
        %v392 = vunpack.c.l.b16 %v328
        %v393 = vunpack.c.l.b16 %v329
        %v394 = vunpack.c.l.b16 %v330
        %v395 = vunpack.c.l.b16 %v331
        %v396 = vunpack.c.l.b16 %v332
        %v397 = vunpack.c.l.b16 %v333
        %v398 = vunpack.c.l.b16 %v334
        %v399 = vunpack.c.l.b16 %v335
        %v400 = vunpack.c.l.b16 %v336
        %v401 = vunpack.c.l.b16 %v337
        %v402 = vunpack.c.l.b16 %v338
        %v403 = vunpack.c.l.b16 %v339
        %v404 = vpack.c.b16 %v373, %v372
        %v405 = vpack.c.b16 %v375, %v374
        %v406 = vpack.c.b16 %v377, %v376
        %v407 = vpack.c.b16 %v379, %v378
        %v408 = vpack.c.b16 %v381, %v380
        %v409 = vpack.c.b16 %v383, %v382
        %v410 = vpack.c.b16 %v385, %v384
        %v411 = vpack.c.b16 %v387, %v386
        %v412 = vpack.c.b16 %v389, %v388
        %v413 = vpack.c.b16 %v391, %v390
        %v414 = vpack.c.b16 %v393, %v392
        %v415 = vpack.c.b16 %v395, %v394
        %v416 = vpack.c.b16 %v397, %v396
        %v417 = vpack.c.b16 %v399, %v398
        %v418 = vpack.c.b16 %v401, %v400
        %v419 = vpack.c.b16 %v403, %v402
        %vm436 = vcmask 31744
        %437 = vst.msk [vmem:[#allocation2] sm:$0xff] %vm436, %v404
        %438 = vst.msk [vmem:[#allocation2 + $0x8] sm:$0xff] %vm436, %v405
        %439 = vst.msk [vmem:[#allocation2 + $0x10] sm:$0xff] %vm436, %v406
        %440 = vst.msk [vmem:[#allocation2 + $0x18] sm:$0xff] %vm436, %v407
        %441 = vst.msk [vmem:[#allocation2 + $0x20] sm:$0xff] %vm436, %v408
        %442 = vst.msk [vmem:[#allocation2 + $0x28] sm:$0xff] %vm436, %v409
        %443 = vst.msk [vmem:[#allocation2 + $0x30] sm:$0xff] %vm436, %v410
        %444 = vst.msk [vmem:[#allocation2 + $0x38] sm:$0xff] %vm436, %v411
        %445 = vst.msk [vmem:[#allocation2 + $0x40] sm:$0xff] %vm436, %v412
        %446 = vst.msk [vmem:[#allocation2 + $0x48] sm:$0xff] %vm436, %v413
        %447 = vst.msk [vmem:[#allocation2 + $0x50] sm:$0xff] %vm436, %v414
        %448 = vst.msk [vmem:[#allocation2 + $0x58] sm:$0xff] %vm436, %v415
        %449 = vst.msk [vmem:[#allocation2 + $0x60] sm:$0xff] %vm436, %v416
        %450 = vst.msk [vmem:[#allocation2 + $0x68] sm:$0xff] %vm436, %v417
        %451 = vst.msk [vmem:[#allocation2 + $0x70] sm:$0xff] %vm436, %v418
        %452 = vst.msk [vmem:[#allocation2 + $0x78] sm:$0xff] %vm436, %v419
        %v453 = vld [vmem:[%s302] sm:$0xf]
        %v454 = vld [vmem:[%s302 + $0x4] sm:$0xf]
        %v455 = vld [vmem:[%s302 + $0x8] sm:$0xf]
        %v456 = vld [vmem:[%s302 + $0xc] sm:$0xf]
        %v457 = vld [vmem:[%s302 + $0x10] sm:$0xf]
        %v458 = vld [vmem:[%s302 + $0x14] sm:$0xf]
        %v459 = vld [vmem:[%s302 + $0x18] sm:$0xf]
        %v460 = vld [vmem:[%s302 + $0x1c] sm:$0xf]
        %v461 = vld [vmem:[%s302 + $0x20] sm:$0xf]
        %v462 = vld [vmem:[%s302 + $0x24] sm:$0xf]
        %v463 = vld [vmem:[%s302 + $0x28] sm:$0xf]
        %v464 = vld [vmem:[%s302 + $0x2c] sm:$0xf]
        %v465 = vld [vmem:[%s302 + $0x30] sm:$0xf]
        %v466 = vld [vmem:[%s302 + $0x34] sm:$0xf]
        %v467 = vld [vmem:[%s302 + $0x38] sm:$0xf]
        %v468 = vld [vmem:[%s302 + $0x3c] sm:$0xf]
        %v469 = vld [vmem:[%s302 + $0x40] sm:$0xf]
        %v470 = vld [vmem:[%s302 + $0x44] sm:$0xf]
        %v471 = vld [vmem:[%s302 + $0x48] sm:$0xf]
        %v472 = vld [vmem:[%s302 + $0x4c] sm:$0xf]
        %v473 = vld [vmem:[%s302 + $0x50] sm:$0xf]
        %v474 = vld [vmem:[%s302 + $0x54] sm:$0xf]
        %v475 = vld [vmem:[%s302 + $0x58] sm:$0xf]
        %v476 = vld [vmem:[%s302 + $0x5c] sm:$0xf]
        %v477 = vld [vmem:[%s302 + $0x60] sm:$0xf]
        %v478 = vld [vmem:[%s302 + $0x64] sm:$0xf]
        %v479 = vld [vmem:[%s302 + $0x68] sm:$0xf]
        %v480 = vld [vmem:[%s302 + $0x6c] sm:$0xf]
        %v481 = vld [vmem:[%s302 + $0x70] sm:$0xf]
        %v482 = vld [vmem:[%s302 + $0x74] sm:$0xf]
        %v483 = vld [vmem:[%s302 + $0x78] sm:$0xf]
        %v484 = vld [vmem:[%s302 + $0x7c] sm:$0xf]
        %v517 = vunpack.c.l.b16 %v453
        %v518 = vunpack.c.l.b16 %v454
        %v519 = vunpack.c.l.b16 %v455
        %v520 = vunpack.c.l.b16 %v456
        %v521 = vunpack.c.l.b16 %v457
        %v522 = vunpack.c.l.b16 %v458
        %v523 = vunpack.c.l.b16 %v459
        %v524 = vunpack.c.l.b16 %v460
        %v525 = vunpack.c.l.b16 %v461
        %v526 = vunpack.c.l.b16 %v462
        %v527 = vunpack.c.l.b16 %v463
        %v528 = vunpack.c.l.b16 %v464
        %v529 = vunpack.c.l.b16 %v465
        %v530 = vunpack.c.l.b16 %v466
        %v531 = vunpack.c.l.b16 %v467
        %v532 = vunpack.c.l.b16 %v468
        %v533 = vunpack.c.l.b16 %v469
        %v534 = vunpack.c.l.b16 %v470
        %v535 = vunpack.c.l.b16 %v471
        %v536 = vunpack.c.l.b16 %v472
        %v537 = vunpack.c.l.b16 %v473
        %v538 = vunpack.c.l.b16 %v474
        %v539 = vunpack.c.l.b16 %v475
        %v540 = vunpack.c.l.b16 %v476
        %v541 = vunpack.c.l.b16 %v477
        %v542 = vunpack.c.l.b16 %v478
        %v543 = vunpack.c.l.b16 %v479
        %v544 = vunpack.c.l.b16 %v480
        %v545 = vunpack.c.l.b16 %v481
        %v546 = vunpack.c.l.b16 %v482
        %v547 = vunpack.c.l.b16 %v483
        %v548 = vunpack.c.l.b16 %v484
        %v549 = vpack.c.b16 %v518, %v517
        %v550 = vpack.c.b16 %v520, %v519
        %v551 = vpack.c.b16 %v522, %v521
        %v552 = vpack.c.b16 %v524, %v523
        %v553 = vpack.c.b16 %v526, %v525
        %v554 = vpack.c.b16 %v528, %v527
        %v555 = vpack.c.b16 %v530, %v529
        %v556 = vpack.c.b16 %v532, %v531
        %v557 = vpack.c.b16 %v534, %v533
        %v558 = vpack.c.b16 %v536, %v535
        %v559 = vpack.c.b16 %v538, %v537
        %v560 = vpack.c.b16 %v540, %v539
        %v561 = vpack.c.b16 %v542, %v541
        %v562 = vpack.c.b16 %v544, %v543
        %v563 = vpack.c.b16 %v546, %v545
        %v564 = vpack.c.b16 %v548, %v547
        %581 = vst.msk [vmem:[#allocation2 + $0x80] sm:$0xff] %vm436, %v549
        %582 = vst.msk [vmem:[#allocation2 + $0x88] sm:$0xff] %vm436, %v550
        %583 = vst.msk [vmem:[#allocation2 + $0x90] sm:$0xff] %vm436, %v551
        %584 = vst.msk [vmem:[#allocation2 + $0x98] sm:$0xff] %vm436, %v552
        %585 = vst.msk [vmem:[#allocation2 + $0xa0] sm:$0xff] %vm436, %v553
        %586 = vst.msk [vmem:[#allocation2 + $0xa8] sm:$0xff] %vm436, %v554
        %587 = vst.msk [vmem:[#allocation2 + $0xb0] sm:$0xff] %vm436, %v555
        %588 = vst.msk [vmem:[#allocation2 + $0xb8] sm:$0xff] %vm436, %v556
        %589 = vst.msk [vmem:[#allocation2 + $0xc0] sm:$0xff] %vm436, %v557
        %590 = vst.msk [vmem:[#allocation2 + $0xc8] sm:$0xff] %vm436, %v558
        %591 = vst.msk [vmem:[#allocation2 + $0xd0] sm:$0xff] %vm436, %v559
        %592 = vst.msk [vmem:[#allocation2 + $0xd8] sm:$0xff] %vm436, %v560
        %593 = vst.msk [vmem:[#allocation2 + $0xe0] sm:$0xff] %vm436, %v561
        %594 = vst.msk [vmem:[#allocation2 + $0xe8] sm:$0xff] %vm436, %v562
        %595 = vst.msk [vmem:[#allocation2 + $0xf0] sm:$0xff] %vm436, %v563
        %596 = vst.msk [vmem:[#allocation2 + $0xf8] sm:$0xff] %vm436, %v564
        %v597 = vld [vmem:[#allocation2] sm:$0xff]
        %v598 = vld [vmem:[#allocation2 + $0x8] sm:$0xff]
        %v599 = vld [vmem:[#allocation2 + $0x10] sm:$0xff]
        %v600 = vld [vmem:[#allocation2 + $0x18] sm:$0xff]
        %v601 = vld [vmem:[#allocation2 + $0x20] sm:$0xff]
        %v602 = vld [vmem:[#allocation2 + $0x28] sm:$0xff]
        %v603 = vld [vmem:[#allocation2 + $0x30] sm:$0xff]
        %v604 = vld [vmem:[#allocation2 + $0x38] sm:$0xff]
        %v605 = vld [vmem:[#allocation2 + $0x40] sm:$0xff]
        %v606 = vld [vmem:[#allocation2 + $0x48] sm:$0xff]
        %v607 = vld [vmem:[#allocation2 + $0x50] sm:$0xff]
        %v608 = vld [vmem:[#allocation2 + $0x58] sm:$0xff]
        %v609 = vld [vmem:[#allocation2 + $0x60] sm:$0xff]
        %v610 = vld [vmem:[#allocation2 + $0x68] sm:$0xff]
        %v611 = vld [vmem:[#allocation2 + $0x70] sm:$0xff]
        %v612 = vld [vmem:[#allocation2 + $0x78] sm:$0xff]
        %613 = vst.msk [vmem:[#allocation3] sm:$0xff] %vm436, %v597
        %614 = vst.msk [vmem:[#allocation3 + $0x8] sm:$0xff] %vm436, %v598
        %615 = vst.msk [vmem:[#allocation3 + $0x10] sm:$0xff] %vm436, %v599
        %616 = vst.msk [vmem:[#allocation3 + $0x18] sm:$0xff] %vm436, %v600
        %617 = vst.msk [vmem:[#allocation3 + $0x20] sm:$0xff] %vm436, %v601
        %618 = vst.msk [vmem:[#allocation3 + $0x28] sm:$0xff] %vm436, %v602
        %619 = vst.msk [vmem:[#allocation3 + $0x30] sm:$0xff] %vm436, %v603
        %620 = vst.msk [vmem:[#allocation3 + $0x38] sm:$0xff] %vm436, %v604
        %621 = vst.msk [vmem:[#allocation3 + $0x40] sm:$0xff] %vm436, %v605
        %622 = vst.msk [vmem:[#allocation3 + $0x48] sm:$0xff] %vm436, %v606
        %623 = vst.msk [vmem:[#allocation3 + $0x50] sm:$0xff] %vm436, %v607
        %624 = vst.msk [vmem:[#allocation3 + $0x58] sm:$0xff] %vm436, %v608
        %625 = vst.msk [vmem:[#allocation3 + $0x60] sm:$0xff] %vm436, %v609
        %626 = vst.msk [vmem:[#allocation3 + $0x68] sm:$0xff] %vm436, %v610
        %627 = vst.msk [vmem:[#allocation3 + $0x70] sm:$0xff] %vm436, %v611
        %628 = vst.msk [vmem:[#allocation3 + $0x78] sm:$0xff] %vm436, %v612
        %v629 = vld [vmem:[#allocation2] sm:$0xff]
        %v630 = vld [vmem:[#allocation2 + $0x8] sm:$0xff]
        %v631 = vld [vmem:[#allocation2 + $0x10] sm:$0xff]
        %v632 = vld [vmem:[#allocation2 + $0x18] sm:$0xff]
        %v633 = vld [vmem:[#allocation2 + $0x20] sm:$0xff]
        %v634 = vld [vmem:[#allocation2 + $0x28] sm:$0xff]
        %v635 = vld [vmem:[#allocation2 + $0x30] sm:$0xff]
        %v636 = vld [vmem:[#allocation2 + $0x38] sm:$0xff]
        %v637 = vld [vmem:[#allocation2 + $0x40] sm:$0xff]
        %v638 = vld [vmem:[#allocation2 + $0x48] sm:$0xff]
        %v639 = vld [vmem:[#allocation2 + $0x50] sm:$0xff]
        %v640 = vld [vmem:[#allocation2 + $0x58] sm:$0xff]
        %v641 = vld [vmem:[#allocation2 + $0x60] sm:$0xff]
        %v642 = vld [vmem:[#allocation2 + $0x68] sm:$0xff]
        %v643 = vld [vmem:[#allocation2 + $0x70] sm:$0xff]
        %v644 = vld [vmem:[#allocation2 + $0x78] sm:$0xff]
        %v645 = vld [vmem:[#allocation2 + $0x80] sm:$0x1]
        %vm646 = vsmask.f32 7424
        %v648 = vshrl.u32 %v629, 16
        %v650 = vshll.u32 %v629, 16
        %v652 = vrot.slane %v650, 1
        %v653 = vor.u32 %v648, %v652
        %v655 = vshll.u32 %v630, 16
        %v657 = vrot.slane %v655, 1
        %v658 = vsel %vm646, %v653, %v657
        %v659 = vshrl.u32 %v630, 16
        %v661 = vor.u32 %v659, %v657
        %v663 = vshll.u32 %v631, 16
        %v665 = vrot.slane %v663, 1
        %v666 = vsel %vm646, %v661, %v665
        %v667 = vshrl.u32 %v631, 16
        %v669 = vor.u32 %v667, %v665
        %v671 = vshll.u32 %v632, 16
        %v673 = vrot.slane %v671, 1
        %v674 = vsel %vm646, %v669, %v673
        %v675 = vshrl.u32 %v632, 16
        %v677 = vor.u32 %v675, %v673
        %v679 = vshll.u32 %v633, 16
        %v681 = vrot.slane %v679, 1
        %v682 = vsel %vm646, %v677, %v681
        %v683 = vshrl.u32 %v633, 16
        %v685 = vor.u32 %v683, %v681
        %v687 = vshll.u32 %v634, 16
        %v689 = vrot.slane %v687, 1
        %v690 = vsel %vm646, %v685, %v689
        %v691 = vshrl.u32 %v634, 16
        %v693 = vor.u32 %v691, %v689
        %v695 = vshll.u32 %v635, 16
        %v697 = vrot.slane %v695, 1
        %v698 = vsel %vm646, %v693, %v697
        %v699 = vshrl.u32 %v635, 16
        %v701 = vor.u32 %v699, %v697
        %v703 = vshll.u32 %v636, 16
        %v705 = vrot.slane %v703, 1
        %v706 = vsel %vm646, %v701, %v705
        %v707 = vshrl.u32 %v636, 16
        %v709 = vor.u32 %v707, %v705
        %v711 = vshll.u32 %v637, 16
        %v713 = vrot.slane %v711, 1
        %v714 = vsel %vm646, %v709, %v713
        %v715 = vshrl.u32 %v637, 16
        %v717 = vor.u32 %v715, %v713
        %v719 = vshll.u32 %v638, 16
        %v721 = vrot.slane %v719, 1
        %v722 = vsel %vm646, %v717, %v721
        %v723 = vshrl.u32 %v638, 16
        %v725 = vor.u32 %v723, %v721
        %v727 = vshll.u32 %v639, 16
        %v729 = vrot.slane %v727, 1
        %v730 = vsel %vm646, %v725, %v729
        %v731 = vshrl.u32 %v639, 16
        %v733 = vor.u32 %v731, %v729
        %v735 = vshll.u32 %v640, 16
        %v737 = vrot.slane %v735, 1
        %v738 = vsel %vm646, %v733, %v737
        %v739 = vshrl.u32 %v640, 16
        %v741 = vor.u32 %v739, %v737
        %v743 = vshll.u32 %v641, 16
        %v745 = vrot.slane %v743, 1
        %v746 = vsel %vm646, %v741, %v745
        %v747 = vshrl.u32 %v641, 16
        %v749 = vor.u32 %v747, %v745
        %v751 = vshll.u32 %v642, 16
        %v753 = vrot.slane %v751, 1
        %v754 = vsel %vm646, %v749, %v753
        %v755 = vshrl.u32 %v642, 16
        %v757 = vor.u32 %v755, %v753
        %v759 = vshll.u32 %v643, 16
        %v761 = vrot.slane %v759, 1
        %v762 = vsel %vm646, %v757, %v761
        %v763 = vshrl.u32 %v643, 16
        %v765 = vor.u32 %v763, %v761
        %v767 = vshll.u32 %v644, 16
        %v769 = vrot.slane %v767, 1
        %v770 = vsel %vm646, %v765, %v769
        %v771 = vshrl.u32 %v644, 16
        %v773 = vor.u32 %v771, %v769
        %v775 = vshll.u32 %v645, 16
        %v777 = vrot.slane %v775, 1
        %v778 = vsel %vm646, %v773, %v777
        %779 = vrot.lane.b32.xlu0 %v658, 4
        %v780 = vpop.permute.xlu0 %779
        %781 = vrot.lane.b32.xlu0 %v666, 4
        %v782 = vpop.permute.xlu0 %781
        %783 = vrot.lane.b32.xlu0 %v674, 4
        %v784 = vpop.permute.xlu0 %783
        %785 = vrot.lane.b32.xlu0 %v682, 4
        %v786 = vpop.permute.xlu0 %785
        %787 = vrot.lane.b32.xlu0 %v690, 4
        %v788 = vpop.permute.xlu0 %787
        %789 = vrot.lane.b32.xlu0 %v698, 4
        %v790 = vpop.permute.xlu0 %789
        %791 = vrot.lane.b32.xlu0 %v706, 4
        %v792 = vpop.permute.xlu0 %791
        %793 = vrot.lane.b32.xlu0 %v714, 4
        %v794 = vpop.permute.xlu0 %793
        %795 = vrot.lane.b32.xlu0 %v722, 4
        %v796 = vpop.permute.xlu0 %795
        %797 = vrot.lane.b32.xlu0 %v730, 4
        %v798 = vpop.permute.xlu0 %797
        %799 = vrot.lane.b32.xlu0 %v738, 4
        %v800 = vpop.permute.xlu0 %799
        %801 = vrot.lane.b32.xlu0 %v746, 4
        %v802 = vpop.permute.xlu0 %801
        %803 = vrot.lane.b32.xlu0 %v754, 4
        %v804 = vpop.permute.xlu0 %803
        %805 = vrot.lane.b32.xlu0 %v762, 4
        %v806 = vpop.permute.xlu0 %805
        %807 = vrot.lane.b32.xlu0 %v770, 4
        %v808 = vpop.permute.xlu0 %807
        %809 = vrot.lane.b32.xlu0 %v778, 4
        %v810 = vpop.permute.xlu0 %809
        %vm827 = vcmask 64544
        %828 = vst.msk [vmem:[#allocation3] sm:$0xff] %vm827, %v780
        %829 = vst.msk [vmem:[#allocation3 + $0x8] sm:$0xff] %vm827, %v782
        %830 = vst.msk [vmem:[#allocation3 + $0x10] sm:$0xff] %vm827, %v784
        %831 = vst.msk [vmem:[#allocation3 + $0x18] sm:$0xff] %vm827, %v786
        %832 = vst.msk [vmem:[#allocation3 + $0x20] sm:$0xff] %vm827, %v788
        %833 = vst.msk [vmem:[#allocation3 + $0x28] sm:$0xff] %vm827, %v790
        %834 = vst.msk [vmem:[#allocation3 + $0x30] sm:$0xff] %vm827, %v792
        %835 = vst.msk [vmem:[#allocation3 + $0x38] sm:$0xff] %vm827, %v794
        %836 = vst.msk [vmem:[#allocation3 + $0x40] sm:$0xff] %vm827, %v796
        %837 = vst.msk [vmem:[#allocation3 + $0x48] sm:$0xff] %vm827, %v798
        %838 = vst.msk [vmem:[#allocation3 + $0x50] sm:$0xff] %vm827, %v800
        %839 = vst.msk [vmem:[#allocation3 + $0x58] sm:$0xff] %vm827, %v802
        %840 = vst.msk [vmem:[#allocation3 + $0x60] sm:$0xff] %vm827, %v804
        %841 = vst.msk [vmem:[#allocation3 + $0x68] sm:$0xff] %vm827, %v806
        %842 = vst.msk [vmem:[#allocation3 + $0x70] sm:$0xff] %vm827, %v808
        %843 = vst.msk [vmem:[#allocation3 + $0x78] sm:$0xff] %vm827, %v810
        %v844 = vld [vmem:[#allocation2] sm:$0xfe]
        %v845 = vld [vmem:[#allocation2 + $0x8] sm:$0xff]
        %v846 = vld [vmem:[#allocation2 + $0x10] sm:$0xff]
        %v847 = vld [vmem:[#allocation2 + $0x18] sm:$0xff]
        %v848 = vld [vmem:[#allocation2 + $0x20] sm:$0xff]
        %v849 = vld [vmem:[#allocation2 + $0x28] sm:$0xff]
        %v850 = vld [vmem:[#allocation2 + $0x30] sm:$0xff]
        %v851 = vld [vmem:[#allocation2 + $0x38] sm:$0xff]
        %v852 = vld [vmem:[#allocation2 + $0x40] sm:$0xff]
        %v853 = vld [vmem:[#allocation2 + $0x48] sm:$0xff]
        %v854 = vld [vmem:[#allocation2 + $0x50] sm:$0xff]
        %v855 = vld [vmem:[#allocation2 + $0x58] sm:$0xff]
        %v856 = vld [vmem:[#allocation2 + $0x60] sm:$0xff]
        %v857 = vld [vmem:[#allocation2 + $0x68] sm:$0xff]
        %v858 = vld [vmem:[#allocation2 + $0x70] sm:$0xff]
        %v859 = vld [vmem:[#allocation2 + $0x78] sm:$0xff]
        %v860 = vld [vmem:[#allocation2 + $0x80] sm:$0x1]
        %vm878 = vcmask 1046528
        %v879 = vrot.slane %v844, 1
        %v880 = vrot.slane %v845, 1
        %v881 = vsel %vm878, %v879, %v880
        %v882 = vrot.slane %v846, 1
        %v883 = vsel %vm878, %v880, %v882
        %v884 = vrot.slane %v847, 1
        %v885 = vsel %vm878, %v882, %v884
        %v886 = vrot.slane %v848, 1
        %v887 = vsel %vm878, %v884, %v886
        %v888 = vrot.slane %v849, 1
        %v889 = vsel %vm878, %v886, %v888
        %v890 = vrot.slane %v850, 1
        %v891 = vsel %vm878, %v888, %v890
        %v892 = vrot.slane %v851, 1
        %v893 = vsel %vm878, %v890, %v892
        %v894 = vrot.slane %v852, 1
        %v895 = vsel %vm878, %v892, %v894
        %v896 = vrot.slane %v853, 1
        %v897 = vsel %vm878, %v894, %v896
        %v898 = vrot.slane %v854, 1
        %v899 = vsel %vm878, %v896, %v898
        %v900 = vrot.slane %v855, 1
        %v901 = vsel %vm878, %v898, %v900
        %v902 = vrot.slane %v856, 1
        %v903 = vsel %vm878, %v900, %v902
        %v904 = vrot.slane %v857, 1
        %v905 = vsel %vm878, %v902, %v904
        %v906 = vrot.slane %v858, 1
        %v907 = vsel %vm878, %v904, %v906
        %v908 = vrot.slane %v859, 1
        %v909 = vsel %vm878, %v906, %v908
        %v910 = vrot.slane %v860, 1
        %v911 = vsel %vm878, %v908, %v910
        %912 = vrot.lane.b32.xlu0 %v881, 8
        %v913 = vpop.permute.xlu0 %912
        %914 = vrot.lane.b32.xlu0 %v883, 8
        %v915 = vpop.permute.xlu0 %914
        %916 = vrot.lane.b32.xlu0 %v885, 8
        %v917 = vpop.permute.xlu0 %916
        %918 = vrot.lane.b32.xlu0 %v887, 8
        %v919 = vpop.permute.xlu0 %918
        %920 = vrot.lane.b32.xlu0 %v889, 8
        %v921 = vpop.permute.xlu0 %920
        %922 = vrot.lane.b32.xlu0 %v891, 8
        %v923 = vpop.permute.xlu0 %922
        %924 = vrot.lane.b32.xlu0 %v893, 8
        %v925 = vpop.permute.xlu0 %924
        %926 = vrot.lane.b32.xlu0 %v895, 8
        %v927 = vpop.permute.xlu0 %926
        %928 = vrot.lane.b32.xlu0 %v897, 8
        %v929 = vpop.permute.xlu0 %928
        %930 = vrot.lane.b32.xlu0 %v899, 8
        %v931 = vpop.permute.xlu0 %930
        %932 = vrot.lane.b32.xlu0 %v901, 8
        %v933 = vpop.permute.xlu0 %932
        %934 = vrot.lane.b32.xlu0 %v903, 8
        %v935 = vpop.permute.xlu0 %934
        %936 = vrot.lane.b32.xlu0 %v905, 8
        %v937 = vpop.permute.xlu0 %936
        %938 = vrot.lane.b32.xlu0 %v907, 8
        %v939 = vpop.permute.xlu0 %938
        %940 = vrot.lane.b32.xlu0 %v909, 8
        %v941 = vpop.permute.xlu0 %940
        %942 = vrot.lane.b32.xlu0 %v911, 8
        %v943 = vpop.permute.xlu0 %942
        %vm960 = vcmask 97344
        %961 = vst.msk [vmem:[#allocation3] sm:$0xff] %vm960, %v913
        %962 = vst.msk [vmem:[#allocation3 + $0x8] sm:$0xff] %vm960, %v915
        %963 = vst.msk [vmem:[#allocation3 + $0x10] sm:$0xff] %vm960, %v917
        %964 = vst.msk [vmem:[#allocation3 + $0x18] sm:$0xff] %vm960, %v919
        %965 = vst.msk [vmem:[#allocation3 + $0x20] sm:$0xff] %vm960, %v921
        %966 = vst.msk [vmem:[#allocation3 + $0x28] sm:$0xff] %vm960, %v923
        %967 = vst.msk [vmem:[#allocation3 + $0x30] sm:$0xff] %vm960, %v925
        %968 = vst.msk [vmem:[#allocation3 + $0x38] sm:$0xff] %vm960, %v927
        %969 = vst.msk [vmem:[#allocation3 + $0x40] sm:$0xff] %vm960, %v929
        %970 = vst.msk [vmem:[#allocation3 + $0x48] sm:$0xff] %vm960, %v931
        %971 = vst.msk [vmem:[#allocation3 + $0x50] sm:$0xff] %vm960, %v933
        %972 = vst.msk [vmem:[#allocation3 + $0x58] sm:$0xff] %vm960, %v935
        %973 = vst.msk [vmem:[#allocation3 + $0x60] sm:$0xff] %vm960, %v937
        %974 = vst.msk [vmem:[#allocation3 + $0x68] sm:$0xff] %vm960, %v939
        %975 = vst.msk [vmem:[#allocation3 + $0x70] sm:$0xff] %vm960, %v941
        %976 = vst.msk [vmem:[#allocation3 + $0x78] sm:$0xff] %vm960, %v943
        %v977 = vld [vmem:[#allocation2 + $0x8] sm:$0xfe]
        %v978 = vld [vmem:[#allocation2 + $0x10] sm:$0xff]
        %v979 = vld [vmem:[#allocation2 + $0x18] sm:$0xff]
        %v980 = vld [vmem:[#allocation2 + $0x20] sm:$0xff]
        %v981 = vld [vmem:[#allocation2 + $0x28] sm:$0xff]
        %v982 = vld [vmem:[#allocation2 + $0x30] sm:$0xff]
        %v983 = vld [vmem:[#allocation2 + $0x38] sm:$0xff]
        %v984 = vld [vmem:[#allocation2 + $0x40] sm:$0xff]
        %v985 = vld [vmem:[#allocation2 + $0x48] sm:$0xff]
        %v986 = vld [vmem:[#allocation2 + $0x50] sm:$0xff]
        %v987 = vld [vmem:[#allocation2 + $0x58] sm:$0xff]
        %v988 = vld [vmem:[#allocation2 + $0x60] sm:$0xff]
        %v989 = vld [vmem:[#allocation2 + $0x68] sm:$0xff]
        %v990 = vld [vmem:[#allocation2 + $0x70] sm:$0xff]
        %v991 = vld [vmem:[#allocation2 + $0x78] sm:$0xff]
        %v992 = vld [vmem:[#allocation2 + $0x80] sm:$0xff]
        %v993 = vld [vmem:[#allocation2 + $0x88] sm:$0x1]
        %v1011 = vrot.slane %v977, 1
        %v1012 = vrot.slane %v978, 1
        %v1013 = vsel %vm878, %v1011, %v1012
        %v1014 = vrot.slane %v979, 1
        %v1015 = vsel %vm878, %v1012, %v1014
        %v1016 = vrot.slane %v980, 1
        %v1017 = vsel %vm878, %v1014, %v1016
        %v1018 = vrot.slane %v981, 1
        %v1019 = vsel %vm878, %v1016, %v1018
        %v1020 = vrot.slane %v982, 1
        %v1021 = vsel %vm878, %v1018, %v1020
        %v1022 = vrot.slane %v983, 1
        %v1023 = vsel %vm878, %v1020, %v1022
        %v1024 = vrot.slane %v984, 1
        %v1025 = vsel %vm878, %v1022, %v1024
        %v1026 = vrot.slane %v985, 1
        %v1027 = vsel %vm878, %v1024, %v1026
        %v1028 = vrot.slane %v986, 1
        %v1029 = vsel %vm878, %v1026, %v1028
        %v1030 = vrot.slane %v987, 1
        %v1031 = vsel %vm878, %v1028, %v1030
        %v1032 = vrot.slane %v988, 1
        %v1033 = vsel %vm878, %v1030, %v1032
        %v1034 = vrot.slane %v989, 1
        %v1035 = vsel %vm878, %v1032, %v1034
        %v1036 = vrot.slane %v990, 1
        %v1037 = vsel %vm878, %v1034, %v1036
        %v1038 = vrot.slane %v991, 1
        %v1039 = vsel %vm878, %v1036, %v1038
        %v1040 = vrot.slane %v992, 1
        %v1041 = vsel %vm878, %v1038, %v1040
        %v1042 = vrot.slane %v993, 1
        %v1043 = vsel %vm878, %v1040, %v1042
        %1044 = vrot.lane.b32.xlu0 %v1013, 12
        %v1045 = vpop.permute.xlu0 %1044
        %1046 = vrot.lane.b32.xlu0 %v1015, 12
        %v1047 = vpop.permute.xlu0 %1046
        %1048 = vrot.lane.b32.xlu0 %v1017, 12
        %v1049 = vpop.permute.xlu0 %1048
        %1050 = vrot.lane.b32.xlu0 %v1019, 12
        %v1051 = vpop.permute.xlu0 %1050
        %1052 = vrot.lane.b32.xlu0 %v1021, 12
        %v1053 = vpop.permute.xlu0 %1052
        %1054 = vrot.lane.b32.xlu0 %v1023, 12
        %v1055 = vpop.permute.xlu0 %1054
        %1056 = vrot.lane.b32.xlu0 %v1025, 12
        %v1057 = vpop.permute.xlu0 %1056
        %1058 = vrot.lane.b32.xlu0 %v1027, 12
        %v1059 = vpop.permute.xlu0 %1058
        %1060 = vrot.lane.b32.xlu0 %v1029, 12
        %v1061 = vpop.permute.xlu0 %1060
        %1062 = vrot.lane.b32.xlu0 %v1031, 12
        %v1063 = vpop.permute.xlu0 %1062
        %1064 = vrot.lane.b32.xlu0 %v1033, 12
        %v1065 = vpop.permute.xlu0 %1064
        %1066 = vrot.lane.b32.xlu0 %v1035, 12
        %v1067 = vpop.permute.xlu0 %1066
        %1068 = vrot.lane.b32.xlu0 %v1037, 12
        %v1069 = vpop.permute.xlu0 %1068
        %1070 = vrot.lane.b32.xlu0 %v1039, 12
        %v1071 = vpop.permute.xlu0 %1070
        %1072 = vrot.lane.b32.xlu0 %v1041, 12
        %v1073 = vpop.permute.xlu0 %1072
        %1074 = vrot.lane.b32.xlu0 %v1043, 12
        %v1075 = vpop.permute.xlu0 %1074
        %vm1092 = vcmask 130144
        %1093 = vst.msk [vmem:[#allocation3] sm:$0xff] %vm1092, %v1045
        %1094 = vst.msk [vmem:[#allocation3 + $0x8] sm:$0xff] %vm1092, %v1047
        %1095 = vst.msk [vmem:[#allocation3 + $0x10] sm:$0xff] %vm1092, %v1049
        %1096 = vst.msk [vmem:[#allocation3 + $0x18] sm:$0xff] %vm1092, %v1051
        %1097 = vst.msk [vmem:[#allocation3 + $0x20] sm:$0xff] %vm1092, %v1053
        %1098 = vst.msk [vmem:[#allocation3 + $0x28] sm:$0xff] %vm1092, %v1055
        %1099 = vst.msk [vmem:[#allocation3 + $0x30] sm:$0xff] %vm1092, %v1057
        %1100 = vst.msk [vmem:[#allocation3 + $0x38] sm:$0xff] %vm1092, %v1059
        %1101 = vst.msk [vmem:[#allocation3 + $0x40] sm:$0xff] %vm1092, %v1061
        %1102 = vst.msk [vmem:[#allocation3 + $0x48] sm:$0xff] %vm1092, %v1063
        %1103 = vst.msk [vmem:[#allocation3 + $0x50] sm:$0xff] %vm1092, %v1065
        %1104 = vst.msk [vmem:[#allocation3 + $0x58] sm:$0xff] %vm1092, %v1067
        %1105 = vst.msk [vmem:[#allocation3 + $0x60] sm:$0xff] %vm1092, %v1069
        %1106 = vst.msk [vmem:[#allocation3 + $0x68] sm:$0xff] %vm1092, %v1071
        %1107 = vst.msk [vmem:[#allocation3 + $0x70] sm:$0xff] %vm1092, %v1073
        %1108 = vst.msk [vmem:[#allocation3 + $0x78] sm:$0xff] %vm1092, %v1075
        %v1109 = vld [vmem:[#allocation2 + $0x8] sm:$0xfe]
        %v1110 = vld [vmem:[#allocation2 + $0x10] sm:$0xff]
        %v1111 = vld [vmem:[#allocation2 + $0x18] sm:$0xff]
        %v1112 = vld [vmem:[#allocation2 + $0x20] sm:$0xff]
        %v1113 = vld [vmem:[#allocation2 + $0x28] sm:$0xff]
        %v1114 = vld [vmem:[#allocation2 + $0x30] sm:$0xff]
        %v1115 = vld [vmem:[#allocation2 + $0x38] sm:$0xff]
        %v1116 = vld [vmem:[#allocation2 + $0x40] sm:$0xff]
        %v1117 = vld [vmem:[#allocation2 + $0x48] sm:$0xff]
        %v1118 = vld [vmem:[#allocation2 + $0x50] sm:$0xff]
        %v1119 = vld [vmem:[#allocation2 + $0x58] sm:$0xff]
        %v1120 = vld [vmem:[#allocation2 + $0x60] sm:$0xff]
        %v1121 = vld [vmem:[#allocation2 + $0x68] sm:$0xff]
        %v1122 = vld [vmem:[#allocation2 + $0x70] sm:$0xff]
        %v1123 = vld [vmem:[#allocation2 + $0x78] sm:$0xff]
        %v1124 = vld [vmem:[#allocation2 + $0x80] sm:$0xff]
        %v1125 = vld [vmem:[#allocation2 + $0x88] sm:$0x3]
        %vm1126 = vsmask.f32 6400
        %v1128 = vshrl.u32 %v1109, 16
        %v1130 = vrot.slane %v1128, 1
        %v1131 = vshll.u32 %v1109, 16
        %v1133 = vrot.slane %v1131, 2
        %v1134 = vor.u32 %v1130, %v1133
        %v1136 = vshrl.u32 %v1110, 16
        %v1138 = vrot.slane %v1136, 1
        %v1139 = vshll.u32 %v1110, 16
        %v1141 = vrot.slane %v1139, 2
        %v1142 = vor.u32 %v1138, %v1141
        %v1143 = vsel %vm1126, %v1134, %v1142
        %v1145 = vshrl.u32 %v1111, 16
        %v1147 = vrot.slane %v1145, 1
        %v1148 = vshll.u32 %v1111, 16
        %v1150 = vrot.slane %v1148, 2
        %v1151 = vor.u32 %v1147, %v1150
        %v1152 = vsel %vm1126, %v1142, %v1151
        %v1154 = vshrl.u32 %v1112, 16
        %v1156 = vrot.slane %v1154, 1
        %v1157 = vshll.u32 %v1112, 16
        %v1159 = vrot.slane %v1157, 2
        %v1160 = vor.u32 %v1156, %v1159
        %v1161 = vsel %vm1126, %v1151, %v1160
        %v1163 = vshrl.u32 %v1113, 16
        %v1165 = vrot.slane %v1163, 1
        %v1166 = vshll.u32 %v1113, 16
        %v1168 = vrot.slane %v1166, 2
        %v1169 = vor.u32 %v1165, %v1168
        %v1170 = vsel %vm1126, %v1160, %v1169
        %v1172 = vshrl.u32 %v1114, 16
        %v1174 = vrot.slane %v1172, 1
        %v1175 = vshll.u32 %v1114, 16
        %v1177 = vrot.slane %v1175, 2
        %v1178 = vor.u32 %v1174, %v1177
        %v1179 = vsel %vm1126, %v1169, %v1178
        %v1181 = vshrl.u32 %v1115, 16
        %v1183 = vrot.slane %v1181, 1
        %v1184 = vshll.u32 %v1115, 16
        %v1186 = vrot.slane %v1184, 2
        %v1187 = vor.u32 %v1183, %v1186
        %v1188 = vsel %vm1126, %v1178, %v1187
        %v1190 = vshrl.u32 %v1116, 16
        %v1192 = vrot.slane %v1190, 1
        %v1193 = vshll.u32 %v1116, 16
        %v1195 = vrot.slane %v1193, 2
        %v1196 = vor.u32 %v1192, %v1195
        %v1197 = vsel %vm1126, %v1187, %v1196
        %v1199 = vshrl.u32 %v1117, 16
        %v1201 = vrot.slane %v1199, 1
        %v1202 = vshll.u32 %v1117, 16
        %v1204 = vrot.slane %v1202, 2
        %v1205 = vor.u32 %v1201, %v1204
        %v1206 = vsel %vm1126, %v1196, %v1205
        %v1208 = vshrl.u32 %v1118, 16
        %v1210 = vrot.slane %v1208, 1
        %v1211 = vshll.u32 %v1118, 16
        %v1213 = vrot.slane %v1211, 2
        %v1214 = vor.u32 %v1210, %v1213
        %v1215 = vsel %vm1126, %v1205, %v1214
        %v1217 = vshrl.u32 %v1119, 16
        %v1219 = vrot.slane %v1217, 1
        %v1220 = vshll.u32 %v1119, 16
        %v1222 = vrot.slane %v1220, 2
        %v1223 = vor.u32 %v1219, %v1222
        %v1224 = vsel %vm1126, %v1214, %v1223
        %v1226 = vshrl.u32 %v1120, 16
        %v1228 = vrot.slane %v1226, 1
        %v1229 = vshll.u32 %v1120, 16
        %v1231 = vrot.slane %v1229, 2
        %v1232 = vor.u32 %v1228, %v1231
        %v1233 = vsel %vm1126, %v1223, %v1232
        %v1235 = vshrl.u32 %v1121, 16
        %v1237 = vrot.slane %v1235, 1
        %v1238 = vshll.u32 %v1121, 16
        %v1240 = vrot.slane %v1238, 2
        %v1241 = vor.u32 %v1237, %v1240
        %v1242 = vsel %vm1126, %v1232, %v1241
        %v1244 = vshrl.u32 %v1122, 16
        %v1246 = vrot.slane %v1244, 1
        %v1247 = vshll.u32 %v1122, 16
        %v1249 = vrot.slane %v1247, 2
        %v1250 = vor.u32 %v1246, %v1249
        %v1251 = vsel %vm1126, %v1241, %v1250
        %v1253 = vshrl.u32 %v1123, 16
        %v1255 = vrot.slane %v1253, 1
        %v1256 = vshll.u32 %v1123, 16
        %v1258 = vrot.slane %v1256, 2
        %v1259 = vor.u32 %v1255, %v1258
        %v1260 = vsel %vm1126, %v1250, %v1259
        %v1262 = vshrl.u32 %v1124, 16
        %v1264 = vrot.slane %v1262, 1
        %v1265 = vshll.u32 %v1124, 16
        %v1267 = vrot.slane %v1265, 2
        %v1268 = vor.u32 %v1264, %v1267
        %v1269 = vsel %vm1126, %v1259, %v1268
        %v1271 = vshrl.u32 %v1125, 16
        %v1273 = vrot.slane %v1271, 1
        %v1274 = vshll.u32 %v1125, 16
        %v1276 = vrot.slane %v1274, 2
        %v1277 = vor.u32 %v1273, %v1276
        %v1278 = vsel %vm1126, %v1268, %v1277
        %1279 = vrot.lane.b32.xlu0 %v1143, 16
        %v1280 = vpop.permute.xlu0 %1279
        %1281 = vrot.lane.b32.xlu0 %v1152, 16
        %v1282 = vpop.permute.xlu0 %1281
        %1283 = vrot.lane.b32.xlu0 %v1161, 16
        %v1284 = vpop.permute.xlu0 %1283
        %1285 = vrot.lane.b32.xlu0 %v1170, 16
        %v1286 = vpop.permute.xlu0 %1285
        %1287 = vrot.lane.b32.xlu0 %v1179, 16
        %v1288 = vpop.permute.xlu0 %1287
        %1289 = vrot.lane.b32.xlu0 %v1188, 16
        %v1290 = vpop.permute.xlu0 %1289
        %1291 = vrot.lane.b32.xlu0 %v1197, 16
        %v1292 = vpop.permute.xlu0 %1291
        %1293 = vrot.lane.b32.xlu0 %v1206, 16
        %v1294 = vpop.permute.xlu0 %1293
        %1295 = vrot.lane.b32.xlu0 %v1215, 16
        %v1296 = vpop.permute.xlu0 %1295
        %1297 = vrot.lane.b32.xlu0 %v1224, 16
        %v1298 = vpop.permute.xlu0 %1297
        %1299 = vrot.lane.b32.xlu0 %v1233, 16
        %v1300 = vpop.permute.xlu0 %1299
        %1301 = vrot.lane.b32.xlu0 %v1242, 16
        %v1302 = vpop.permute.xlu0 %1301
        %1303 = vrot.lane.b32.xlu0 %v1251, 16
        %v1304 = vpop.permute.xlu0 %1303
        %1305 = vrot.lane.b32.xlu0 %v1260, 16
        %v1306 = vpop.permute.xlu0 %1305
        %1307 = vrot.lane.b32.xlu0 %v1269, 16
        %v1308 = vpop.permute.xlu0 %1307
        %1309 = vrot.lane.b32.xlu0 %v1278, 16
        %v1310 = vpop.permute.xlu0 %1309
        %vm1327 = vcmask 162944
        %1328 = vst.msk [vmem:[#allocation3] sm:$0xff] %vm1327, %v1280
        %1329 = vst.msk [vmem:[#allocation3 + $0x8] sm:$0xff] %vm1327, %v1282
        %1330 = vst.msk [vmem:[#allocation3 + $0x10] sm:$0xff] %vm1327, %v1284
        %1331 = vst.msk [vmem:[#allocation3 + $0x18] sm:$0xff] %vm1327, %v1286
        %1332 = vst.msk [vmem:[#allocation3 + $0x20] sm:$0xff] %vm1327, %v1288
        %1333 = vst.msk [vmem:[#allocation3 + $0x28] sm:$0xff] %vm1327, %v1290
        %1334 = vst.msk [vmem:[#allocation3 + $0x30] sm:$0xff] %vm1327, %v1292
        %1335 = vst.msk [vmem:[#allocation3 + $0x38] sm:$0xff] %vm1327, %v1294
        %1336 = vst.msk [vmem:[#allocation3 + $0x40] sm:$0xff] %vm1327, %v1296
        %1337 = vst.msk [vmem:[#allocation3 + $0x48] sm:$0xff] %vm1327, %v1298
        %1338 = vst.msk [vmem:[#allocation3 + $0x50] sm:$0xff] %vm1327, %v1300
        %1339 = vst.msk [vmem:[#allocation3 + $0x58] sm:$0xff] %vm1327, %v1302
        %1340 = vst.msk [vmem:[#allocation3 + $0x60] sm:$0xff] %vm1327, %v1304
        %1341 = vst.msk [vmem:[#allocation3 + $0x68] sm:$0xff] %vm1327, %v1306
        %1342 = vst.msk [vmem:[#allocation3 + $0x70] sm:$0xff] %vm1327, %v1308
        %1343 = vst.msk [vmem:[#allocation3 + $0x78] sm:$0xff] %vm1327, %v1310
        %v1344 = vld [vmem:[#allocation2 + $0x8] sm:$0xfc]
        %v1345 = vld [vmem:[#allocation2 + $0x10] sm:$0xff]
        %v1346 = vld [vmem:[#allocation2 + $0x18] sm:$0xff]
        %v1347 = vld [vmem:[#allocation2 + $0x20] sm:$0xff]
        %v1348 = vld [vmem:[#allocation2 + $0x28] sm:$0xff]
        %v1349 = vld [vmem:[#allocation2 + $0x30] sm:$0xff]
        %v1350 = vld [vmem:[#allocation2 + $0x38] sm:$0xff]
        %v1351 = vld [vmem:[#allocation2 + $0x40] sm:$0xff]
        %v1352 = vld [vmem:[#allocation2 + $0x48] sm:$0xff]
        %v1353 = vld [vmem:[#allocation2 + $0x50] sm:$0xff]
        %v1354 = vld [vmem:[#allocation2 + $0x58] sm:$0xff]
        %v1355 = vld [vmem:[#allocation2 + $0x60] sm:$0xff]
        %v1356 = vld [vmem:[#allocation2 + $0x68] sm:$0xff]
        %v1357 = vld [vmem:[#allocation2 + $0x70] sm:$0xff]
        %v1358 = vld [vmem:[#allocation2 + $0x78] sm:$0xff]
        %v1359 = vld [vmem:[#allocation2 + $0x80] sm:$0xff]
        %v1360 = vld [vmem:[#allocation2 + $0x88] sm:$0x3]
        %vm1378 = vcmask 1045504
        %v1379 = vrot.slane %v1344, 2
        %v1380 = vrot.slane %v1345, 2
        %v1381 = vsel %vm1378, %v1379, %v1380
        %v1382 = vrot.slane %v1346, 2
        %v1383 = vsel %vm1378, %v1380, %v1382
        %v1384 = vrot.slane %v1347, 2
        %v1385 = vsel %vm1378, %v1382, %v1384
        %v1386 = vrot.slane %v1348, 2
        %v1387 = vsel %vm1378, %v1384, %v1386
        %v1388 = vrot.slane %v1349, 2
        %v1389 = vsel %vm1378, %v1386, %v1388
        %v1390 = vrot.slane %v1350, 2
        %v1391 = vsel %vm1378, %v1388, %v1390
        %v1392 = vrot.slane %v1351, 2
        %v1393 = vsel %vm1378, %v1390, %v1392
        %v1394 = vrot.slane %v1352, 2
        %v1395 = vsel %vm1378, %v1392, %v1394
        %v1396 = vrot.slane %v1353, 2
        %v1397 = vsel %vm1378, %v1394, %v1396
        %v1398 = vrot.slane %v1354, 2
        %v1399 = vsel %vm1378, %v1396, %v1398
        %v1400 = vrot.slane %v1355, 2
        %v1401 = vsel %vm1378, %v1398, %v1400
        %v1402 = vrot.slane %v1356, 2
        %v1403 = vsel %vm1378, %v1400, %v1402
        %v1404 = vrot.slane %v1357, 2
        %v1405 = vsel %vm1378, %v1402, %v1404
        %v1406 = vrot.slane %v1358, 2
        %v1407 = vsel %vm1378, %v1404, %v1406
        %v1408 = vrot.slane %v1359, 2
        %v1409 = vsel %vm1378, %v1406, %v1408
        %v1410 = vrot.slane %v1360, 2
        %v1411 = vsel %vm1378, %v1408, %v1410
        %1412 = vrot.lane.b32.xlu0 %v1381, 20
        %v1413 = vpop.permute.xlu0 %1412
        %1414 = vrot.lane.b32.xlu0 %v1383, 20
        %v1415 = vpop.permute.xlu0 %1414
        %1416 = vrot.lane.b32.xlu0 %v1385, 20
        %v1417 = vpop.permute.xlu0 %1416
        %1418 = vrot.lane.b32.xlu0 %v1387, 20
        %v1419 = vpop.permute.xlu0 %1418
        %1420 = vrot.lane.b32.xlu0 %v1389, 20
        %v1421 = vpop.permute.xlu0 %1420
        %1422 = vrot.lane.b32.xlu0 %v1391, 20
        %v1423 = vpop.permute.xlu0 %1422
        %1424 = vrot.lane.b32.xlu0 %v1393, 20
        %v1425 = vpop.permute.xlu0 %1424
        %1426 = vrot.lane.b32.xlu0 %v1395, 20
        %v1427 = vpop.permute.xlu0 %1426
        %1428 = vrot.lane.b32.xlu0 %v1397, 20
        %v1429 = vpop.permute.xlu0 %1428
        %1430 = vrot.lane.b32.xlu0 %v1399, 20
        %v1431 = vpop.permute.xlu0 %1430
        %1432 = vrot.lane.b32.xlu0 %v1401, 20
        %v1433 = vpop.permute.xlu0 %1432
        %1434 = vrot.lane.b32.xlu0 %v1403, 20
        %v1435 = vpop.permute.xlu0 %1434
        %1436 = vrot.lane.b32.xlu0 %v1405, 20
        %v1437 = vpop.permute.xlu0 %1436
        %1438 = vrot.lane.b32.xlu0 %v1407, 20
        %v1439 = vpop.permute.xlu0 %1438
        %1440 = vrot.lane.b32.xlu0 %v1409, 20
        %v1441 = vpop.permute.xlu0 %1440
        %1442 = vrot.lane.b32.xlu0 %v1411, 20
        %v1443 = vpop.permute.xlu0 %1442
        %vm1460 = vcmask 195744
        %1461 = vst.msk [vmem:[#allocation3] sm:$0xff] %vm1460, %v1413
        %1462 = vst.msk [vmem:[#allocation3 + $0x8] sm:$0xff] %vm1460, %v1415
        %1463 = vst.msk [vmem:[#allocation3 + $0x10] sm:$0xff] %vm1460, %v1417
        %1464 = vst.msk [vmem:[#allocation3 + $0x18] sm:$0xff] %vm1460, %v1419
        %1465 = vst.msk [vmem:[#allocation3 + $0x20] sm:$0xff] %vm1460, %v1421
        %1466 = vst.msk [vmem:[#allocation3 + $0x28] sm:$0xff] %vm1460, %v1423
        %1467 = vst.msk [vmem:[#allocation3 + $0x30] sm:$0xff] %vm1460, %v1425
        %1468 = vst.msk [vmem:[#allocation3 + $0x38] sm:$0xff] %vm1460, %v1427
        %1469 = vst.msk [vmem:[#allocation3 + $0x40] sm:$0xff] %vm1460, %v1429
        %1470 = vst.msk [vmem:[#allocation3 + $0x48] sm:$0xff] %vm1460, %v1431
        %1471 = vst.msk [vmem:[#allocation3 + $0x50] sm:$0xff] %vm1460, %v1433
        %1472 = vst.msk [vmem:[#allocation3 + $0x58] sm:$0xff] %vm1460, %v1435
        %1473 = vst.msk [vmem:[#allocation3 + $0x60] sm:$0xff] %vm1460, %v1437
        %1474 = vst.msk [vmem:[#allocation3 + $0x68] sm:$0xff] %vm1460, %v1439
        %1475 = vst.msk [vmem:[#allocation3 + $0x70] sm:$0xff] %vm1460, %v1441
        %1476 = vst.msk [vmem:[#allocation3 + $0x78] sm:$0xff] %vm1460, %v1443
        %v1477 = vld [vmem:[#allocation2 + $0x10] sm:$0xfc]
        %v1478 = vld [vmem:[#allocation2 + $0x18] sm:$0xff]
        %v1479 = vld [vmem:[#allocation2 + $0x20] sm:$0xff]
        %v1480 = vld [vmem:[#allocation2 + $0x28] sm:$0xff]
        %v1481 = vld [vmem:[#allocation2 + $0x30] sm:$0xff]
        %v1482 = vld [vmem:[#allocation2 + $0x38] sm:$0xff]
        %v1483 = vld [vmem:[#allocation2 + $0x40] sm:$0xff]
        %v1484 = vld [vmem:[#allocation2 + $0x48] sm:$0xff]
        %v1485 = vld [vmem:[#allocation2 + $0x50] sm:$0xff]
        %v1486 = vld [vmem:[#allocation2 + $0x58] sm:$0xff]
        %v1487 = vld [vmem:[#allocation2 + $0x60] sm:$0xff]
        %v1488 = vld [vmem:[#allocation2 + $0x68] sm:$0xff]
        %v1489 = vld [vmem:[#allocation2 + $0x70] sm:$0xff]
        %v1490 = vld [vmem:[#allocation2 + $0x78] sm:$0xff]
        %v1491 = vld [vmem:[#allocation2 + $0x80] sm:$0xff]
        %v1492 = vld [vmem:[#allocation2 + $0x88] sm:$0xff]
        %v1493 = vld [vmem:[#allocation2 + $0x90] sm:$0x3]
        %v1511 = vrot.slane %v1477, 2
        %v1512 = vrot.slane %v1478, 2
        %v1513 = vsel %vm1378, %v1511, %v1512
        %v1514 = vrot.slane %v1479, 2
        %v1515 = vsel %vm1378, %v1512, %v1514
        %v1516 = vrot.slane %v1480, 2
        %v1517 = vsel %vm1378, %v1514, %v1516
        %v1518 = vrot.slane %v1481, 2
        %v1519 = vsel %vm1378, %v1516, %v1518
        %v1520 = vrot.slane %v1482, 2
        %v1521 = vsel %vm1378, %v1518, %v1520
        %v1522 = vrot.slane %v1483, 2
        %v1523 = vsel %vm1378, %v1520, %v1522
        %v1524 = vrot.slane %v1484, 2
        %v1525 = vsel %vm1378, %v1522, %v1524
        %v1526 = vrot.slane %v1485, 2
        %v1527 = vsel %vm1378, %v1524, %v1526
        %v1528 = vrot.slane %v1486, 2
        %v1529 = vsel %vm1378, %v1526, %v1528
        %v1530 = vrot.slane %v1487, 2
        %v1531 = vsel %vm1378, %v1528, %v1530
        %v1532 = vrot.slane %v1488, 2
        %v1533 = vsel %vm1378, %v1530, %v1532
        %v1534 = vrot.slane %v1489, 2
        %v1535 = vsel %vm1378, %v1532, %v1534
        %v1536 = vrot.slane %v1490, 2
        %v1537 = vsel %vm1378, %v1534, %v1536
        %v1538 = vrot.slane %v1491, 2
        %v1539 = vsel %vm1378, %v1536, %v1538
        %v1540 = vrot.slane %v1492, 2
        %v1541 = vsel %vm1378, %v1538, %v1540
        %v1542 = vrot.slane %v1493, 2
        %v1543 = vsel %vm1378, %v1540, %v1542
        %1544 = vrot.lane.b32.xlu0 %v1513, 24
        %v1545 = vpop.permute.xlu0 %1544
        %1546 = vrot.lane.b32.xlu0 %v1515, 24
        %v1547 = vpop.permute.xlu0 %1546
        %1548 = vrot.lane.b32.xlu0 %v1517, 24
        %v1549 = vpop.permute.xlu0 %1548
        %1550 = vrot.lane.b32.xlu0 %v1519, 24
        %v1551 = vpop.permute.xlu0 %1550
        %1552 = vrot.lane.b32.xlu0 %v1521, 24
        %v1553 = vpop.permute.xlu0 %1552
        %1554 = vrot.lane.b32.xlu0 %v1523, 24
        %v1555 = vpop.permute.xlu0 %1554
        %1556 = vrot.lane.b32.xlu0 %v1525, 24
        %v1557 = vpop.permute.xlu0 %1556
        %1558 = vrot.lane.b32.xlu0 %v1527, 24
        %v1559 = vpop.permute.xlu0 %1558
        %1560 = vrot.lane.b32.xlu0 %v1529, 24
        %v1561 = vpop.permute.xlu0 %1560
        %1562 = vrot.lane.b32.xlu0 %v1531, 24
        %v1563 = vpop.permute.xlu0 %1562
        %1564 = vrot.lane.b32.xlu0 %v1533, 24
        %v1565 = vpop.permute.xlu0 %1564
        %1566 = vrot.lane.b32.xlu0 %v1535, 24
        %v1567 = vpop.permute.xlu0 %1566
        %1568 = vrot.lane.b32.xlu0 %v1537, 24
        %v1569 = vpop.permute.xlu0 %1568
        %1570 = vrot.lane.b32.xlu0 %v1539, 24
        %v1571 = vpop.permute.xlu0 %1570
        %1572 = vrot.lane.b32.xlu0 %v1541, 24
        %v1573 = vpop.permute.xlu0 %1572
        %1574 = vrot.lane.b32.xlu0 %v1543, 24
        %v1575 = vpop.permute.xlu0 %1574
        %vm1592 = vcmask 228544
        %1593 = vst.msk [vmem:[#allocation3] sm:$0xff] %vm1592, %v1545
        %1594 = vst.msk [vmem:[#allocation3 + $0x8] sm:$0xff] %vm1592, %v1547
        %1595 = vst.msk [vmem:[#allocation3 + $0x10] sm:$0xff] %vm1592, %v1549
        %1596 = vst.msk [vmem:[#allocation3 + $0x18] sm:$0xff] %vm1592, %v1551
        %1597 = vst.msk [vmem:[#allocation3 + $0x20] sm:$0xff] %vm1592, %v1553
        %1598 = vst.msk [vmem:[#allocation3 + $0x28] sm:$0xff] %vm1592, %v1555
        %1599 = vst.msk [vmem:[#allocation3 + $0x30] sm:$0xff] %vm1592, %v1557
        %1600 = vst.msk [vmem:[#allocation3 + $0x38] sm:$0xff] %vm1592, %v1559
        %1601 = vst.msk [vmem:[#allocation3 + $0x40] sm:$0xff] %vm1592, %v1561
        %1602 = vst.msk [vmem:[#allocation3 + $0x48] sm:$0xff] %vm1592, %v1563
        %1603 = vst.msk [vmem:[#allocation3 + $0x50] sm:$0xff] %vm1592, %v1565
        %1604 = vst.msk [vmem:[#allocation3 + $0x58] sm:$0xff] %vm1592, %v1567
        %1605 = vst.msk [vmem:[#allocation3 + $0x60] sm:$0xff] %vm1592, %v1569
        %1606 = vst.msk [vmem:[#allocation3 + $0x68] sm:$0xff] %vm1592, %v1571
        %1607 = vst.msk [vmem:[#allocation3 + $0x70] sm:$0xff] %vm1592, %v1573
        %1608 = vst.msk [vmem:[#allocation3 + $0x78] sm:$0xff] %vm1592, %v1575
        %v1609 = vld [vmem:[#allocation2 + $0x10] sm:$0xfc]
        %v1610 = vld [vmem:[#allocation2 + $0x18] sm:$0xff]
        %v1611 = vld [vmem:[#allocation2 + $0x20] sm:$0xff]
        %v1612 = vld [vmem:[#allocation2 + $0x28] sm:$0xff]
        %v1613 = vld [vmem:[#allocation2 + $0x30] sm:$0xff]
        %v1614 = vld [vmem:[#allocation2 + $0x38] sm:$0xff]
        %v1615 = vld [vmem:[#allocation2 + $0x40] sm:$0xff]
        %v1616 = vld [vmem:[#allocation2 + $0x48] sm:$0xff]
        %v1617 = vld [vmem:[#allocation2 + $0x50] sm:$0xff]
        %v1618 = vld [vmem:[#allocation2 + $0x58] sm:$0xff]
        %v1619 = vld [vmem:[#allocation2 + $0x60] sm:$0xff]
        %v1620 = vld [vmem:[#allocation2 + $0x68] sm:$0xff]
        %v1621 = vld [vmem:[#allocation2 + $0x70] sm:$0xff]
        %v1622 = vld [vmem:[#allocation2 + $0x78] sm:$0xff]
        %v1623 = vld [vmem:[#allocation2 + $0x80] sm:$0xff]
        %v1624 = vld [vmem:[#allocation2 + $0x88] sm:$0xff]
        %v1625 = vld [vmem:[#allocation2 + $0x90] sm:$0x7]
        %vm1626 = vsmask.f32 5376
        %v1628 = vshrl.u32 %v1609, 16
        %v1630 = vrot.slane %v1628, 2
        %v1631 = vshll.u32 %v1609, 16
        %v1633 = vrot.slane %v1631, 3
        %v1634 = vor.u32 %v1630, %v1633
        %v1636 = vshrl.u32 %v1610, 16
        %v1638 = vrot.slane %v1636, 2
        %v1639 = vshll.u32 %v1610, 16
        %v1641 = vrot.slane %v1639, 3
        %v1642 = vor.u32 %v1638, %v1641
        %v1643 = vsel %vm1626, %v1634, %v1642
        %v1645 = vshrl.u32 %v1611, 16
        %v1647 = vrot.slane %v1645, 2
        %v1648 = vshll.u32 %v1611, 16
        %v1650 = vrot.slane %v1648, 3
        %v1651 = vor.u32 %v1647, %v1650
        %v1652 = vsel %vm1626, %v1642, %v1651
        %v1654 = vshrl.u32 %v1612, 16
        %v1656 = vrot.slane %v1654, 2
        %v1657 = vshll.u32 %v1612, 16
        %v1659 = vrot.slane %v1657, 3
        %v1660 = vor.u32 %v1656, %v1659
        %v1661 = vsel %vm1626, %v1651, %v1660
        %v1663 = vshrl.u32 %v1613, 16
        %v1665 = vrot.slane %v1663, 2
        %v1666 = vshll.u32 %v1613, 16
        %v1668 = vrot.slane %v1666, 3
        %v1669 = vor.u32 %v1665, %v1668
        %v1670 = vsel %vm1626, %v1660, %v1669
        %v1672 = vshrl.u32 %v1614, 16
        %v1674 = vrot.slane %v1672, 2
        %v1675 = vshll.u32 %v1614, 16
        %v1677 = vrot.slane %v1675, 3
        %v1678 = vor.u32 %v1674, %v1677
        %v1679 = vsel %vm1626, %v1669, %v1678
        %v1681 = vshrl.u32 %v1615, 16
        %v1683 = vrot.slane %v1681, 2
        %v1684 = vshll.u32 %v1615, 16
        %v1686 = vrot.slane %v1684, 3
        %v1687 = vor.u32 %v1683, %v1686
        %v1688 = vsel %vm1626, %v1678, %v1687
        %v1690 = vshrl.u32 %v1616, 16
        %v1692 = vrot.slane %v1690, 2
        %v1693 = vshll.u32 %v1616, 16
        %v1695 = vrot.slane %v1693, 3
        %v1696 = vor.u32 %v1692, %v1695
        %v1697 = vsel %vm1626, %v1687, %v1696
        %v1699 = vshrl.u32 %v1617, 16
        %v1701 = vrot.slane %v1699, 2
        %v1702 = vshll.u32 %v1617, 16
        %v1704 = vrot.slane %v1702, 3
        %v1705 = vor.u32 %v1701, %v1704
        %v1706 = vsel %vm1626, %v1696, %v1705
        %v1708 = vshrl.u32 %v1618, 16
        %v1710 = vrot.slane %v1708, 2
        %v1711 = vshll.u32 %v1618, 16
        %v1713 = vrot.slane %v1711, 3
        %v1714 = vor.u32 %v1710, %v1713
        %v1715 = vsel %vm1626, %v1705, %v1714
        %v1717 = vshrl.u32 %v1619, 16
        %v1719 = vrot.slane %v1717, 2
        %v1720 = vshll.u32 %v1619, 16
        %v1722 = vrot.slane %v1720, 3
        %v1723 = vor.u32 %v1719, %v1722
        %v1724 = vsel %vm1626, %v1714, %v1723
        %v1726 = vshrl.u32 %v1620, 16
        %v1728 = vrot.slane %v1726, 2
        %v1729 = vshll.u32 %v1620, 16
        %v1731 = vrot.slane %v1729, 3
        %v1732 = vor.u32 %v1728, %v1731
        %v1733 = vsel %vm1626, %v1723, %v1732
        %v1735 = vshrl.u32 %v1621, 16
        %v1737 = vrot.slane %v1735, 2
        %v1738 = vshll.u32 %v1621, 16
        %v1740 = vrot.slane %v1738, 3
        %v1741 = vor.u32 %v1737, %v1740
        %v1742 = vsel %vm1626, %v1732, %v1741
        %v1744 = vshrl.u32 %v1622, 16
        %v1746 = vrot.slane %v1744, 2
        %v1747 = vshll.u32 %v1622, 16
        %v1749 = vrot.slane %v1747, 3
        %v1750 = vor.u32 %v1746, %v1749
        %v1751 = vsel %vm1626, %v1741, %v1750
        %v1753 = vshrl.u32 %v1623, 16
        %v1755 = vrot.slane %v1753, 2
        %v1756 = vshll.u32 %v1623, 16
        %v1758 = vrot.slane %v1756, 3
        %v1759 = vor.u32 %v1755, %v1758
        %v1760 = vsel %vm1626, %v1750, %v1759
        %v1762 = vshrl.u32 %v1624, 16
        %v1764 = vrot.slane %v1762, 2
        %v1765 = vshll.u32 %v1624, 16
        %v1767 = vrot.slane %v1765, 3
        %v1768 = vor.u32 %v1764, %v1767
        %v1769 = vsel %vm1626, %v1759, %v1768
        %v1771 = vshrl.u32 %v1625, 16
        %v1773 = vrot.slane %v1771, 2
        %v1774 = vshll.u32 %v1625, 16
        %v1776 = vrot.slane %v1774, 3
        %v1777 = vor.u32 %v1773, %v1776
        %v1778 = vsel %vm1626, %v1768, %v1777
        %1779 = vrot.lane.b32.xlu0 %v1643, 28
        %v1780 = vpop.permute.xlu0 %1779
        %1781 = vrot.lane.b32.xlu0 %v1652, 28
        %v1782 = vpop.permute.xlu0 %1781
        %1783 = vrot.lane.b32.xlu0 %v1661, 28
        %v1784 = vpop.permute.xlu0 %1783
        %1785 = vrot.lane.b32.xlu0 %v1670, 28
        %v1786 = vpop.permute.xlu0 %1785
        %1787 = vrot.lane.b32.xlu0 %v1679, 28
        %v1788 = vpop.permute.xlu0 %1787
        %1789 = vrot.lane.b32.xlu0 %v1688, 28
        %v1790 = vpop.permute.xlu0 %1789
        %1791 = vrot.lane.b32.xlu0 %v1697, 28
        %v1792 = vpop.permute.xlu0 %1791
        %1793 = vrot.lane.b32.xlu0 %v1706, 28
        %v1794 = vpop.permute.xlu0 %1793
        %1795 = vrot.lane.b32.xlu0 %v1715, 28
        %v1796 = vpop.permute.xlu0 %1795
        %1797 = vrot.lane.b32.xlu0 %v1724, 28
        %v1798 = vpop.permute.xlu0 %1797
        %1799 = vrot.lane.b32.xlu0 %v1733, 28
        %v1800 = vpop.permute.xlu0 %1799
        %1801 = vrot.lane.b32.xlu0 %v1742, 28
        %v1802 = vpop.permute.xlu0 %1801
        %1803 = vrot.lane.b32.xlu0 %v1751, 28
        %v1804 = vpop.permute.xlu0 %1803
        %1805 = vrot.lane.b32.xlu0 %v1760, 28
        %v1806 = vpop.permute.xlu0 %1805
        %1807 = vrot.lane.b32.xlu0 %v1769, 28
        %v1808 = vpop.permute.xlu0 %1807
        %1809 = vrot.lane.b32.xlu0 %v1778, 28
        %v1810 = vpop.permute.xlu0 %1809
        %vm1827 = vcmask 261344
        %1828 = vst.msk [vmem:[#allocation3] sm:$0xff] %vm1827, %v1780
        %1829 = vst.msk [vmem:[#allocation3 + $0x8] sm:$0xff] %vm1827, %v1782
        %1830 = vst.msk [vmem:[#allocation3 + $0x10] sm:$0xff] %vm1827, %v1784
        %1831 = vst.msk [vmem:[#allocation3 + $0x18] sm:$0xff] %vm1827, %v1786
        %1832 = vst.msk [vmem:[#allocation3 + $0x20] sm:$0xff] %vm1827, %v1788
        %1833 = vst.msk [vmem:[#allocation3 + $0x28] sm:$0xff] %vm1827, %v1790
        %1834 = vst.msk [vmem:[#allocation3 + $0x30] sm:$0xff] %vm1827, %v1792
        %1835 = vst.msk [vmem:[#allocation3 + $0x38] sm:$0xff] %vm1827, %v1794
        %1836 = vst.msk [vmem:[#allocation3 + $0x40] sm:$0xff] %vm1827, %v1796
        %1837 = vst.msk [vmem:[#allocation3 + $0x48] sm:$0xff] %vm1827, %v1798
        %1838 = vst.msk [vmem:[#allocation3 + $0x50] sm:$0xff] %vm1827, %v1800
        %1839 = vst.msk [vmem:[#allocation3 + $0x58] sm:$0xff] %vm1827, %v1802
        %1840 = vst.msk [vmem:[#allocation3 + $0x60] sm:$0xff] %vm1827, %v1804
        %1841 = vst.msk [vmem:[#allocation3 + $0x68] sm:$0xff] %vm1827, %v1806
        %1842 = vst.msk [vmem:[#allocation3 + $0x70] sm:$0xff] %vm1827, %v1808
        %1843 = vst.msk [vmem:[#allocation3 + $0x78] sm:$0xff] %vm1827, %v1810
        %v1844 = vld [vmem:[#allocation2 + $0x10] sm:$0xf8]
        %v1845 = vld [vmem:[#allocation2 + $0x18] sm:$0xff]
        %v1846 = vld [vmem:[#allocation2 + $0x20] sm:$0xff]
        %v1847 = vld [vmem:[#allocation2 + $0x28] sm:$0xff]
        %v1848 = vld [vmem:[#allocation2 + $0x30] sm:$0xff]
        %v1849 = vld [vmem:[#allocation2 + $0x38] sm:$0xff]
        %v1850 = vld [vmem:[#allocation2 + $0x40] sm:$0xff]
        %v1851 = vld [vmem:[#allocation2 + $0x48] sm:$0xff]
        %v1852 = vld [vmem:[#allocation2 + $0x50] sm:$0xff]
        %v1853 = vld [vmem:[#allocation2 + $0x58] sm:$0xff]
        %v1854 = vld [vmem:[#allocation2 + $0x60] sm:$0xff]
        %v1855 = vld [vmem:[#allocation2 + $0x68] sm:$0xff]
        %v1856 = vld [vmem:[#allocation2 + $0x70] sm:$0xff]
        %v1857 = vld [vmem:[#allocation2 + $0x78] sm:$0xff]
        %v1858 = vld [vmem:[#allocation2 + $0x80] sm:$0xff]
        %v1859 = vld [vmem:[#allocation2 + $0x88] sm:$0xff]
        %v1860 = vld [vmem:[#allocation2 + $0x90] sm:$0x7]
        %vm1878 = vcmask 1044480
        %v1879 = vrot.slane %v1844, 3
        %v1880 = vrot.slane %v1845, 3
        %v1881 = vsel %vm1878, %v1879, %v1880
        %v1882 = vrot.slane %v1846, 3
        %v1883 = vsel %vm1878, %v1880, %v1882
        %v1884 = vrot.slane %v1847, 3
        %v1885 = vsel %vm1878, %v1882, %v1884
        %v1886 = vrot.slane %v1848, 3
        %v1887 = vsel %vm1878, %v1884, %v1886
        %v1888 = vrot.slane %v1849, 3
        %v1889 = vsel %vm1878, %v1886, %v1888
        %v1890 = vrot.slane %v1850, 3
        %v1891 = vsel %vm1878, %v1888, %v1890
        %v1892 = vrot.slane %v1851, 3
        %v1893 = vsel %vm1878, %v1890, %v1892
        %v1894 = vrot.slane %v1852, 3
        %v1895 = vsel %vm1878, %v1892, %v1894
        %v1896 = vrot.slane %v1853, 3
        %v1897 = vsel %vm1878, %v1894, %v1896
        %v1898 = vrot.slane %v1854, 3
        %v1899 = vsel %vm1878, %v1896, %v1898
        %v1900 = vrot.slane %v1855, 3
        %v1901 = vsel %vm1878, %v1898, %v1900
        %v1902 = vrot.slane %v1856, 3
        %v1903 = vsel %vm1878, %v1900, %v1902
        %v1904 = vrot.slane %v1857, 3
        %v1905 = vsel %vm1878, %v1902, %v1904
        %v1906 = vrot.slane %v1858, 3
        %v1907 = vsel %vm1878, %v1904, %v1906
        %v1908 = vrot.slane %v1859, 3
        %v1909 = vsel %vm1878, %v1906, %v1908
        %v1910 = vrot.slane %v1860, 3
        %v1911 = vsel %vm1878, %v1908, %v1910
        %1912 = vrot.lane.b32.xlu0 %v1881, 32
        %v1913 = vpop.permute.xlu0 %1912
        %1914 = vrot.lane.b32.xlu0 %v1883, 32
        %v1915 = vpop.permute.xlu0 %1914
        %1916 = vrot.lane.b32.xlu0 %v1885, 32
        %v1917 = vpop.permute.xlu0 %1916
        %1918 = vrot.lane.b32.xlu0 %v1887, 32
        %v1919 = vpop.permute.xlu0 %1918
        %1920 = vrot.lane.b32.xlu0 %v1889, 32
        %v1921 = vpop.permute.xlu0 %1920
        %1922 = vrot.lane.b32.xlu0 %v1891, 32
        %v1923 = vpop.permute.xlu0 %1922
        %1924 = vrot.lane.b32.xlu0 %v1893, 32
        %v1925 = vpop.permute.xlu0 %1924
        %1926 = vrot.lane.b32.xlu0 %v1895, 32
        %v1927 = vpop.permute.xlu0 %1926
        %1928 = vrot.lane.b32.xlu0 %v1897, 32
        %v1929 = vpop.permute.xlu0 %1928
        %1930 = vrot.lane.b32.xlu0 %v1899, 32
        %v1931 = vpop.permute.xlu0 %1930
        %1932 = vrot.lane.b32.xlu0 %v1901, 32
        %v1933 = vpop.permute.xlu0 %1932
        %1934 = vrot.lane.b32.xlu0 %v1903, 32
        %v1935 = vpop.permute.xlu0 %1934
        %1936 = vrot.lane.b32.xlu0 %v1905, 32
        %v1937 = vpop.permute.xlu0 %1936
        %1938 = vrot.lane.b32.xlu0 %v1907, 32
        %v1939 = vpop.permute.xlu0 %1938
        %1940 = vrot.lane.b32.xlu0 %v1909, 32
        %v1941 = vpop.permute.xlu0 %1940
        %1942 = vrot.lane.b32.xlu0 %v1911, 32
        %v1943 = vpop.permute.xlu0 %1942
        %vm1960 = vcmask 294144
        %1961 = vst.msk [vmem:[#allocation3] sm:$0xff] %vm1960, %v1913
        %1962 = vst.msk [vmem:[#allocation3 + $0x8] sm:$0xff] %vm1960, %v1915
        %1963 = vst.msk [vmem:[#allocation3 + $0x10] sm:$0xff] %vm1960, %v1917
        %1964 = vst.msk [vmem:[#allocation3 + $0x18] sm:$0xff] %vm1960, %v1919
        %1965 = vst.msk [vmem:[#allocation3 + $0x20] sm:$0xff] %vm1960, %v1921
        %1966 = vst.msk [vmem:[#allocation3 + $0x28] sm:$0xff] %vm1960, %v1923
        %1967 = vst.msk [vmem:[#allocation3 + $0x30] sm:$0xff] %vm1960, %v1925
        %1968 = vst.msk [vmem:[#allocation3 + $0x38] sm:$0xff] %vm1960, %v1927
        %1969 = vst.msk [vmem:[#allocation3 + $0x40] sm:$0xff] %vm1960, %v1929
        %1970 = vst.msk [vmem:[#allocation3 + $0x48] sm:$0xff] %vm1960, %v1931
        %1971 = vst.msk [vmem:[#allocation3 + $0x50] sm:$0xff] %vm1960, %v1933
        %1972 = vst.msk [vmem:[#allocation3 + $0x58] sm:$0xff] %vm1960, %v1935
        %1973 = vst.msk [vmem:[#allocation3 + $0x60] sm:$0xff] %vm1960, %v1937
        %1974 = vst.msk [vmem:[#allocation3 + $0x68] sm:$0xff] %vm1960, %v1939
        %1975 = vst.msk [vmem:[#allocation3 + $0x70] sm:$0xff] %vm1960, %v1941
        %1976 = vst.msk [vmem:[#allocation3 + $0x78] sm:$0xff] %vm1960, %v1943
        %v1977 = vld [vmem:[#allocation3] sm:$0xff]
        %v1978 = vld [vmem:[#allocation3 + $0x8] sm:$0xff]
        %v1979 = vld [vmem:[#allocation3 + $0x10] sm:$0xff]
        %v1980 = vld [vmem:[#allocation3 + $0x18] sm:$0xff]
        %v1981 = vld [vmem:[#allocation3 + $0x20] sm:$0xff]
        %v1982 = vld [vmem:[#allocation3 + $0x28] sm:$0xff]
        %v1983 = vld [vmem:[#allocation3 + $0x30] sm:$0xff]
        %v1984 = vld [vmem:[#allocation3 + $0x38] sm:$0xff]
        %v1985 = vld [vmem:[#allocation3 + $0x40] sm:$0xff]
        %v1986 = vld [vmem:[#allocation3 + $0x48] sm:$0xff]
        %v1987 = vld [vmem:[#allocation3 + $0x50] sm:$0xff]
        %v1988 = vld [vmem:[#allocation3 + $0x58] sm:$0xff]
        %v1989 = vld [vmem:[#allocation3 + $0x60] sm:$0xff]
        %v1990 = vld [vmem:[#allocation3 + $0x68] sm:$0xff]
        %v1991 = vld [vmem:[#allocation3 + $0x70] sm:$0xff]
        %v1992 = vld [vmem:[#allocation3 + $0x78] sm:$0xff]
        %v1993 = vld [vmem:[%s2] sm:$0xf]
        %v1994 = vld [vmem:[%s2 + $0x4] sm:$0xf]
        %v1995 = vld [vmem:[%s2 + $0x8] sm:$0xf]
        %v1996 = vld [vmem:[%s2 + $0xc] sm:$0xf]
        %v1997 = vld [vmem:[%s2 + $0x10] sm:$0x3]
        %v2003 = vunpack.c.l.b16 %v1993
        %v2004 = vunpack.c.l.b16 %v1994
        %v2005 = vunpack.c.l.b16 %v1995
        %v2006 = vunpack.c.l.b16 %v1996
        %v2007 = vunpack.c.l.b16 %v1997
        %v2008 = vpack.c.b16 %v2004, %v2003
        %v2009 = vpack.c.b16 %v2006, %v2005
        %v2010 = vpack.c.b16 %v2007, %v2007
        %vm2013 = vcmask 293888
        %v2015 = vsel %vm2013, %v1977, 0
        %v2018 = vsel %vm2013, %v1978, 0
        %v2021 = vsel %vm2013, %v1979, 0
        %v2024 = vsel %vm2013, %v1980, 0
        %v2027 = vsel %vm2013, %v1981, 0
        %v2030 = vsel %vm2013, %v1982, 0
        %v2033 = vsel %vm2013, %v1983, 0
        %v2036 = vsel %vm2013, %v1984, 0
        %v2039 = vsel %vm2013, %v1985, 0
        %v2042 = vsel %vm2013, %v1986, 0
        %v2045 = vsel %vm2013, %v1987, 0
        %v2048 = vsel %vm2013, %v1988, 0
        %v2051 = vsel %vm2013, %v1989, 0
        %v2054 = vsel %vm2013, %v1990, 0
        %v2057 = vsel %vm2013, %v1991, 0
        %v2060 = vsel %vm2013, %v1992, 0
        %vm2062 = vcmask 1041408
        %v2064 = vsel %vm2062, %v2010, 0
        %2066 = vmatprep.subr.bf16.mxu0 0
        %2067 = vmatpush1.bf16.msra.mxu0 %v2008
        %2068 = vmatprep.subr.bf16.mxu0 0
        %2069 = vmatpush1.bf16.msra.mxu0 %v2009
        %2070 = vmatprep.subr.bf16.mxu0 0
        %2071 = vmatpush1.bf16.msra.mxu0 %v2064
        %2072 = vmatprep.subr.bf16.mxu0 0
        %2073 = vmatpush1.bf16.msra.mxu0 0
        %2074 = vmatprep.subr.bf16.mxu0 0
        %2075 = vmatpush1.bf16.msra.mxu0 0
        %2076 = vmatprep.subr.bf16.mxu0 0
        %2077 = vmatpush1.bf16.msra.mxu0 0
        %2078 = vmatprep.subr.bf16.mxu0 0
        %2079 = vmatpush1.bf16.msra.mxu0 0
        %2080 = vmatprep.subr.bf16.mxu0 0
        %2081 = vmatpush1.bf16.msra.mxu0 0
        %2082 = vmatprep.subr.bf16.mxu0 0
        %2083 = vmatpush1.bf16.msra.mxu0 0
        %2084 = vmatprep.subr.bf16.mxu0 0
        %2085 = vmatpush1.bf16.msra.mxu0 0
        %2086 = vmatprep.subr.bf16.mxu0 0
        %2087 = vmatpush1.bf16.msra.mxu0 0
        %2088 = vmatprep.subr.bf16.mxu0 0
        %2089 = vmatpush1.bf16.msra.mxu0 0
        %2090 = vmatprep.subr.bf16.mxu0 0
        %2091 = vmatpush1.bf16.msra.mxu0 0
        %2092 = vmatprep.subr.bf16.mxu0 0
        %2093 = vmatpush1.bf16.msra.mxu0 0
        %2094 = vmatprep.subr.bf16.mxu0 0
        %2095 = vmatpush1.bf16.msra.mxu0 0
        %2096 = vmatprep.subr.bf16.mxu0 0
        %2097 = vmatpush1.bf16.msra.mxu0 0
        %2098 = vmatprep.mubr.bf16.mxu0 0
        %2099 = vmatmul.mubr.bf16.gmra.mrb[0].mxu0 %v2015
        %v2100 = vpop.f32.mrb[0].mxu0
        %v2101 = vadd.f32 0.0, %v2100
        %v2102 = vpop.f32.mrb[0].mxu0
        %v2103 = vpop.f32.mrb[0].mxu0
        %v2104 = vadd.f32 0.0, %v2103
        %v2105 = vpop.f32.mrb[0].mxu0
        %2106 = vmatprep.mubr.bf16.mxu0 0
        %2107 = vmatmul.mubr.bf16.gmra.mrb[0].mxu0 %v2018
        %v2108 = vpop.f32.mrb[0].mxu0
        %v2109 = vadd.f32 0.0, %v2108
        %v2110 = vpop.f32.mrb[0].mxu0
        %v2111 = vpop.f32.mrb[0].mxu0
        %v2112 = vadd.f32 0.0, %v2111
        %v2113 = vpop.f32.mrb[0].mxu0
        %2114 = vmatprep.mubr.bf16.mxu0 0
        %2115 = vmatmul.mubr.bf16.gmra.mrb[0].mxu0 %v2021
        %v2116 = vpop.f32.mrb[0].mxu0
        %v2117 = vadd.f32 0.0, %v2116
        %v2118 = vpop.f32.mrb[0].mxu0
        %v2119 = vpop.f32.mrb[0].mxu0
        %v2120 = vadd.f32 0.0, %v2119
        %v2121 = vpop.f32.mrb[0].mxu0
        %2122 = vmatprep.mubr.bf16.mxu0 0
        %2123 = vmatmul.mubr.bf16.gmra.mrb[0].mxu0 %v2024
        %v2124 = vpop.f32.mrb[0].mxu0
        %v2125 = vadd.f32 0.0, %v2124
        %v2126 = vpop.f32.mrb[0].mxu0
        %v2127 = vpop.f32.mrb[0].mxu0
        %v2128 = vadd.f32 0.0, %v2127
        %v2129 = vpop.f32.mrb[0].mxu0
        %2130 = vmatprep.mubr.bf16.mxu0 0
        %2131 = vmatmul.mubr.bf16.gmra.mrb[0].mxu0 %v2027
        %v2132 = vpop.f32.mrb[0].mxu0
        %v2133 = vadd.f32 0.0, %v2132
        %v2134 = vpop.f32.mrb[0].mxu0
        %v2135 = vpop.f32.mrb[0].mxu0
        %v2136 = vadd.f32 0.0, %v2135
        %v2137 = vpop.f32.mrb[0].mxu0
        %2138 = vmatprep.mubr.bf16.mxu0 0
        %2139 = vmatmul.mubr.bf16.gmra.mrb[0].mxu0 %v2030
        %v2140 = vpop.f32.mrb[0].mxu0
        %v2141 = vadd.f32 0.0, %v2140
        %v2142 = vpop.f32.mrb[0].mxu0
        %v2143 = vpop.f32.mrb[0].mxu0
        %v2144 = vadd.f32 0.0, %v2143
        %v2145 = vpop.f32.mrb[0].mxu0
        %2146 = vmatprep.mubr.bf16.mxu0 0
        %2147 = vmatmul.mubr.bf16.gmra.mrb[0].mxu0 %v2033
        %v2148 = vpop.f32.mrb[0].mxu0
        %v2149 = vadd.f32 0.0, %v2148
        %v2150 = vpop.f32.mrb[0].mxu0
        %v2151 = vpop.f32.mrb[0].mxu0
        %v2152 = vadd.f32 0.0, %v2151
        %v2153 = vpop.f32.mrb[0].mxu0
        %2154 = vmatprep.mubr.bf16.mxu0 0
        %2155 = vmatmul.mubr.bf16.gmra.mrb[0].mxu0 %v2036
        %v2156 = vpop.f32.mrb[0].mxu0
        %v2157 = vadd.f32 0.0, %v2156
        %v2158 = vpop.f32.mrb[0].mxu0
        %v2159 = vpop.f32.mrb[0].mxu0
        %v2160 = vadd.f32 0.0, %v2159
        %v2161 = vpop.f32.mrb[0].mxu0
        %2162 = vmatprep.mubr.bf16.mxu0 0
        %2163 = vmatmul.mubr.bf16.gmra.mrb[0].mxu0 %v2039
        %v2164 = vpop.f32.mrb[0].mxu0
        %v2165 = vadd.f32 0.0, %v2164
        %v2166 = vpop.f32.mrb[0].mxu0
        %v2167 = vpop.f32.mrb[0].mxu0
        %v2168 = vadd.f32 0.0, %v2167
        %v2169 = vpop.f32.mrb[0].mxu0
        %2170 = vmatprep.mubr.bf16.mxu0 0
        %2171 = vmatmul.mubr.bf16.gmra.mrb[0].mxu0 %v2042
        %v2172 = vpop.f32.mrb[0].mxu0
        %v2173 = vadd.f32 0.0, %v2172
        %v2174 = vpop.f32.mrb[0].mxu0
        %v2175 = vpop.f32.mrb[0].mxu0
        %v2176 = vadd.f32 0.0, %v2175
        %v2177 = vpop.f32.mrb[0].mxu0
        %2178 = vmatprep.mubr.bf16.mxu0 0
        %2179 = vmatmul.mubr.bf16.gmra.mrb[0].mxu0 %v2045
        %v2180 = vpop.f32.mrb[0].mxu0
        %v2181 = vadd.f32 0.0, %v2180
        %v2182 = vpop.f32.mrb[0].mxu0
        %v2183 = vpop.f32.mrb[0].mxu0
        %v2184 = vadd.f32 0.0, %v2183
        %v2185 = vpop.f32.mrb[0].mxu0
        %2186 = vmatprep.mubr.bf16.mxu0 0
        %2187 = vmatmul.mubr.bf16.gmra.mrb[0].mxu0 %v2048
        %v2188 = vpop.f32.mrb[0].mxu0
        %v2189 = vadd.f32 0.0, %v2188
        %v2190 = vpop.f32.mrb[0].mxu0
        %v2191 = vpop.f32.mrb[0].mxu0
        %v2192 = vadd.f32 0.0, %v2191
        %v2193 = vpop.f32.mrb[0].mxu0
        %2194 = vmatprep.mubr.bf16.mxu0 0
        %2195 = vmatmul.mubr.bf16.gmra.mrb[0].mxu0 %v2051
        %v2196 = vpop.f32.mrb[0].mxu0
        %v2197 = vadd.f32 0.0, %v2196
        %v2198 = vpop.f32.mrb[0].mxu0
        %v2199 = vpop.f32.mrb[0].mxu0
        %v2200 = vadd.f32 0.0, %v2199
        %v2201 = vpop.f32.mrb[0].mxu0
        %2202 = vmatprep.mubr.bf16.mxu0 0
        %2203 = vmatmul.mubr.bf16.gmra.mrb[0].mxu0 %v2054
        %v2204 = vpop.f32.mrb[0].mxu0
        %v2205 = vadd.f32 0.0, %v2204
        %v2206 = vpop.f32.mrb[0].mxu0
        %v2207 = vpop.f32.mrb[0].mxu0
        %v2208 = vadd.f32 0.0, %v2207
        %v2209 = vpop.f32.mrb[0].mxu0
        %2210 = vmatprep.mubr.bf16.mxu0 0
        %2211 = vmatmul.mubr.bf16.gmra.mrb[0].mxu0 %v2057
        %v2212 = vpop.f32.mrb[0].mxu0
        %v2213 = vadd.f32 0.0, %v2212
        %v2214 = vpop.f32.mrb[0].mxu0
        %v2215 = vpop.f32.mrb[0].mxu0
        %v2216 = vadd.f32 0.0, %v2215
        %v2217 = vpop.f32.mrb[0].mxu0
        %2218 = vmatprep.mubr.bf16.mxu0 0
        %2219 = vmatmul.mubr.bf16.gmra.mrb[0].mxu0 %v2060
        %v2220 = vpop.f32.mrb[0].mxu0
        %v2221 = vadd.f32 0.0, %v2220
        %v2222 = vpop.f32.mrb[0].mxu0
        %v2223 = vpop.f32.mrb[0].mxu0
        %v2224 = vadd.f32 0.0, %v2223
        %v2225 = vpop.f32.mrb[0].mxu0
        %2226 = vdwg.mxu0
        %p2227 = scmp.eq.s32.totalorder %s25, 0
        %p2228 = scmp.eq.s32.totalorder %s26, 0
        %p2229 = pnand %p2227, %p2228
        %p2230 = pneg %p2229
        // Predicated region
        $region41: #{tpu_custom_call.1} parent=39 // pred_check
          _
        $region42: #{tpu_custom_call.1} parent=39 // pred_check_branch
          %2232 = sbr.rel (%p2229) target = $region44
        $region43: #{tpu_custom_call.1} parent=39 // pred_region
          %2233 = vst [vmem:[#allocation4] sm:$0xff] 0.0
        $region44: #{tpu_custom_call.1} parent=39 // pred_fallthru
          _
        // Predicated region
        $region45: #{tpu_custom_call.1} parent=39 // pred_check
          %p2234 = pneg %p2227
        $region46: #{tpu_custom_call.1} parent=39 // pred_check_branch
          %2236 = sbr.rel (%p2234) target = $region48
        $region47: #{tpu_custom_call.1} parent=39 // pred_region
          %s2237 = smul.u32 %s26, 256
          %v2238 = vlaneseq
          %v2239 = vshrl.u32 %v2238, 7
          %v2240 = vadd.s32 %v2239, 8
          %v2241 = vadd.s32 %v2239, 16
          %v2242 = vadd.s32 %v2239, 24
          %v2243 = vadd.s32 %v2239, 32
          %v2244 = vadd.s32 %v2239, 40
          %v2245 = vadd.s32 %v2239, 48
          %v2246 = vadd.s32 %v2239, 56
          %v2247 = vadd.s32 %v2239, 64
          %v2248 = vadd.s32 %v2239, 72
          %v2249 = vadd.s32 %v2239, 80
          %v2250 = vadd.s32 %v2239, 88
          %v2251 = vadd.s32 %v2239, 96
          %v2252 = vadd.s32 %v2239, 104
          %v2253 = vadd.s32 %v2239, 112
          %v2254 = vadd.s32 %v2239, 120
          %v2255 = vadd.s32 %v2239, 128
          %v2256 = vadd.s32 %v2239, 136
          %v2257 = vadd.s32 %v2239, 144
          %v2258 = vadd.s32 %v2239, 152
          %v2259 = vadd.s32 %v2239, 160
          %v2260 = vadd.s32 %v2239, 168
          %v2261 = vadd.s32 %v2239, 176
          %v2262 = vadd.s32 %v2239, 184
          %v2263 = vadd.s32 %v2239, 192
          %v2264 = vadd.s32 %v2239, 200
          %v2265 = vadd.s32 %v2239, 208
          %v2266 = vadd.s32 %v2239, 216
          %v2267 = vadd.s32 %v2239, 224
          %v2268 = vadd.s32 %v2239, 232
          %v2269 = vadd.s32 %v2239, 240
          %v2270 = vadd.s32 %v2239, 248
          %v2271 = vstv %s2237
          %v2272 = vadd.s32 %v2271, %v2239
          %v2273 = vadd.s32 %v2271, %v2240
          %v2274 = vadd.s32 %v2271, %v2241
          %v2275 = vadd.s32 %v2271, %v2242
          %v2276 = vadd.s32 %v2271, %v2243
          %v2277 = vadd.s32 %v2271, %v2244
          %v2278 = vadd.s32 %v2271, %v2245
          %v2279 = vadd.s32 %v2271, %v2246
          %v2280 = vadd.s32 %v2271, %v2247
          %v2281 = vadd.s32 %v2271, %v2248
          %v2282 = vadd.s32 %v2271, %v2249
          %v2283 = vadd.s32 %v2271, %v2250
          %v2284 = vadd.s32 %v2271, %v2251
          %v2285 = vadd.s32 %v2271, %v2252
          %v2286 = vadd.s32 %v2271, %v2253
          %v2287 = vadd.s32 %v2271, %v2254
          %v2288 = vadd.s32 %v2271, %v2255
          %v2289 = vadd.s32 %v2271, %v2256
          %v2290 = vadd.s32 %v2271, %v2257
          %v2291 = vadd.s32 %v2271, %v2258
          %v2292 = vadd.s32 %v2271, %v2259
          %v2293 = vadd.s32 %v2271, %v2260
          %v2294 = vadd.s32 %v2271, %v2261
          %v2295 = vadd.s32 %v2271, %v2262
          %v2296 = vadd.s32 %v2271, %v2263
          %v2297 = vadd.s32 %v2271, %v2264
          %v2298 = vadd.s32 %v2271, %v2265
          %v2299 = vadd.s32 %v2271, %v2266
          %v2300 = vadd.s32 %v2271, %v2267
          %v2301 = vadd.s32 %v2271, %v2268
          %v2302 = vadd.s32 %v2271, %v2269
          %v2303 = vadd.s32 %v2271, %v2270
          %vm2304 = vcmp.lt.s32.totalorder %v2272, 0
          %v2305 = vsub.s32 0, %v2272
          %v2306 = vsel %vm2304, %v2305, %v2272
          %v2307 = vmul.u32.u64.compose %v2306, 3817748708
          %v2308 = vextract.low.u32 %v2307
          %v2309 = vextract.high.u32 %v2307
          %v2310 = vshrl.u32 %v2309, 4
          %v2311 = vmul.u32 %v2310, 18
          %v2312 = vsub.s32 %v2306, %v2311
          %v2313 = vsub.s32 0, %v2312
          %v2314 = vsel %vm2304, %v2313, %v2312
          %vm2315 = vcmp.lt.s32.totalorder %v2273, 0
          %v2316 = vsub.s32 0, %v2273
          %v2317 = vsel %vm2315, %v2316, %v2273
          %v2318 = vmul.u32.u64.compose %v2317, 3817748708
          %v2319 = vextract.low.u32 %v2318
          %v2320 = vextract.high.u32 %v2318
          %v2321 = vshrl.u32 %v2320, 4
          %v2322 = vmul.u32 %v2321, 18
          %v2323 = vsub.s32 %v2317, %v2322
          %v2324 = vsub.s32 0, %v2323
          %v2325 = vsel %vm2315, %v2324, %v2323
          %vm2326 = vcmp.lt.s32.totalorder %v2274, 0
          %v2327 = vsub.s32 0, %v2274
          %v2328 = vsel %vm2326, %v2327, %v2274
          %v2329 = vmul.u32.u64.compose %v2328, 3817748708
          %v2330 = vextract.low.u32 %v2329
          %v2331 = vextract.high.u32 %v2329
          %v2332 = vshrl.u32 %v2331, 4
          %v2333 = vmul.u32 %v2332, 18
          %v2334 = vsub.s32 %v2328, %v2333
          %v2335 = vsub.s32 0, %v2334
          %v2336 = vsel %vm2326, %v2335, %v2334
          %vm2337 = vcmp.lt.s32.totalorder %v2275, 0
          %v2338 = vsub.s32 0, %v2275
          %v2339 = vsel %vm2337, %v2338, %v2275
          %v2340 = vmul.u32.u64.compose %v2339, 3817748708
          %v2341 = vextract.low.u32 %v2340
          %v2342 = vextract.high.u32 %v2340
          %v2343 = vshrl.u32 %v2342, 4
          %v2344 = vmul.u32 %v2343, 18
          %v2345 = vsub.s32 %v2339, %v2344
          %v2346 = vsub.s32 0, %v2345
          %v2347 = vsel %vm2337, %v2346, %v2345
          %vm2348 = vcmp.lt.s32.totalorder %v2276, 0
          %v2349 = vsub.s32 0, %v2276
          %v2350 = vsel %vm2348, %v2349, %v2276
          %v2351 = vmul.u32.u64.compose %v2350, 3817748708
          %v2352 = vextract.low.u32 %v2351
          %v2353 = vextract.high.u32 %v2351
          %v2354 = vshrl.u32 %v2353, 4
          %v2355 = vmul.u32 %v2354, 18
          %v2356 = vsub.s32 %v2350, %v2355
          %v2357 = vsub.s32 0, %v2356
          %v2358 = vsel %vm2348, %v2357, %v2356
          %vm2359 = vcmp.lt.s32.totalorder %v2277, 0
          %v2360 = vsub.s32 0, %v2277
          %v2361 = vsel %vm2359, %v2360, %v2277
          %v2362 = vmul.u32.u64.compose %v2361, 3817748708
          %v2363 = vextract.low.u32 %v2362
          %v2364 = vextract.high.u32 %v2362
          %v2365 = vshrl.u32 %v2364, 4
          %v2366 = vmul.u32 %v2365, 18
          %v2367 = vsub.s32 %v2361, %v2366
          %v2368 = vsub.s32 0, %v2367
          %v2369 = vsel %vm2359, %v2368, %v2367
          %vm2370 = vcmp.lt.s32.totalorder %v2278, 0
          %v2371 = vsub.s32 0, %v2278
          %v2372 = vsel %vm2370, %v2371, %v2278
          %v2373 = vmul.u32.u64.compose %v2372, 3817748708
          %v2374 = vextract.low.u32 %v2373
          %v2375 = vextract.high.u32 %v2373
          %v2376 = vshrl.u32 %v2375, 4
          %v2377 = vmul.u32 %v2376, 18
          %v2378 = vsub.s32 %v2372, %v2377
          %v2379 = vsub.s32 0, %v2378
          %v2380 = vsel %vm2370, %v2379, %v2378
          %vm2381 = vcmp.lt.s32.totalorder %v2279, 0
          %v2382 = vsub.s32 0, %v2279
          %v2383 = vsel %vm2381, %v2382, %v2279
          %v2384 = vmul.u32.u64.compose %v2383, 3817748708
          %v2385 = vextract.low.u32 %v2384
          %v2386 = vextract.high.u32 %v2384
          %v2387 = vshrl.u32 %v2386, 4
          %v2388 = vmul.u32 %v2387, 18
          %v2389 = vsub.s32 %v2383, %v2388
          %v2390 = vsub.s32 0, %v2389
          %v2391 = vsel %vm2381, %v2390, %v2389
          %vm2392 = vcmp.lt.s32.totalorder %v2280, 0
          %v2393 = vsub.s32 0, %v2280
          %v2394 = vsel %vm2392, %v2393, %v2280
          %v2395 = vmul.u32.u64.compose %v2394, 3817748708
          %v2396 = vextract.low.u32 %v2395
          %v2397 = vextract.high.u32 %v2395
          %v2398 = vshrl.u32 %v2397, 4
          %v2399 = vmul.u32 %v2398, 18
          %v2400 = vsub.s32 %v2394, %v2399
          %v2401 = vsub.s32 0, %v2400
          %v2402 = vsel %vm2392, %v2401, %v2400
          %vm2403 = vcmp.lt.s32.totalorder %v2281, 0
          %v2404 = vsub.s32 0, %v2281
          %v2405 = vsel %vm2403, %v2404, %v2281
          %v2406 = vmul.u32.u64.compose %v2405, 3817748708
          %v2407 = vextract.low.u32 %v2406
          %v2408 = vextract.high.u32 %v2406
          %v2409 = vshrl.u32 %v2408, 4
          %v2410 = vmul.u32 %v2409, 18
          %v2411 = vsub.s32 %v2405, %v2410
          %v2412 = vsub.s32 0, %v2411
          %v2413 = vsel %vm2403, %v2412, %v2411
          %vm2414 = vcmp.lt.s32.totalorder %v2282, 0
          %v2415 = vsub.s32 0, %v2282
          %v2416 = vsel %vm2414, %v2415, %v2282
          %v2417 = vmul.u32.u64.compose %v2416, 3817748708
          %v2418 = vextract.low.u32 %v2417
          %v2419 = vextract.high.u32 %v2417
          %v2420 = vshrl.u32 %v2419, 4
          %v2421 = vmul.u32 %v2420, 18
          %v2422 = vsub.s32 %v2416, %v2421
          %v2423 = vsub.s32 0, %v2422
          %v2424 = vsel %vm2414, %v2423, %v2422
          %vm2425 = vcmp.lt.s32.totalorder %v2283, 0
          %v2426 = vsub.s32 0, %v2283
          %v2427 = vsel %vm2425, %v2426, %v2283
          %v2428 = vmul.u32.u64.compose %v2427, 3817748708
          %v2429 = vextract.low.u32 %v2428
          %v2430 = vextract.high.u32 %v2428
          %v2431 = vshrl.u32 %v2430, 4
          %v2432 = vmul.u32 %v2431, 18
          %v2433 = vsub.s32 %v2427, %v2432
          %v2434 = vsub.s32 0, %v2433
          %v2435 = vsel %vm2425, %v2434, %v2433
          %vm2436 = vcmp.lt.s32.totalorder %v2284, 0
          %v2437 = vsub.s32 0, %v2284
          %v2438 = vsel %vm2436, %v2437, %v2284
          %v2439 = vmul.u32.u64.compose %v2438, 3817748708
          %v2440 = vextract.low.u32 %v2439
          %v2441 = vextract.high.u32 %v2439
          %v2442 = vshrl.u32 %v2441, 4
          %v2443 = vmul.u32 %v2442, 18
          %v2444 = vsub.s32 %v2438, %v2443
          %v2445 = vsub.s32 0, %v2444
          %v2446 = vsel %vm2436, %v2445, %v2444
          %vm2447 = vcmp.lt.s32.totalorder %v2285, 0
          %v2448 = vsub.s32 0, %v2285
          %v2449 = vsel %vm2447, %v2448, %v2285
          %v2450 = vmul.u32.u64.compose %v2449, 3817748708
          %v2451 = vextract.low.u32 %v2450
          %v2452 = vextract.high.u32 %v2450
          %v2453 = vshrl.u32 %v2452, 4
          %v2454 = vmul.u32 %v2453, 18
          %v2455 = vsub.s32 %v2449, %v2454
          %v2456 = vsub.s32 0, %v2455
          %v2457 = vsel %vm2447, %v2456, %v2455
          %vm2458 = vcmp.lt.s32.totalorder %v2286, 0
          %v2459 = vsub.s32 0, %v2286
          %v2460 = vsel %vm2458, %v2459, %v2286
          %v2461 = vmul.u32.u64.compose %v2460, 3817748708
          %v2462 = vextract.low.u32 %v2461
          %v2463 = vextract.high.u32 %v2461
          %v2464 = vshrl.u32 %v2463, 4
          %v2465 = vmul.u32 %v2464, 18
          %v2466 = vsub.s32 %v2460, %v2465
          %v2467 = vsub.s32 0, %v2466
          %v2468 = vsel %vm2458, %v2467, %v2466
          %vm2469 = vcmp.lt.s32.totalorder %v2287, 0
          %v2470 = vsub.s32 0, %v2287
          %v2471 = vsel %vm2469, %v2470, %v2287
          %v2472 = vmul.u32.u64.compose %v2471, 3817748708
          %v2473 = vextract.low.u32 %v2472
          %v2474 = vextract.high.u32 %v2472
          %v2475 = vshrl.u32 %v2474, 4
          %v2476 = vmul.u32 %v2475, 18
          %v2477 = vsub.s32 %v2471, %v2476
          %v2478 = vsub.s32 0, %v2477
          %v2479 = vsel %vm2469, %v2478, %v2477
          %vm2480 = vcmp.lt.s32.totalorder %v2288, 0
          %v2481 = vsub.s32 0, %v2288
          %v2482 = vsel %vm2480, %v2481, %v2288
          %v2483 = vmul.u32.u64.compose %v2482, 3817748708
          %v2484 = vextract.low.u32 %v2483
          %v2485 = vextract.high.u32 %v2483
          %v2486 = vshrl.u32 %v2485, 4
          %v2487 = vmul.u32 %v2486, 18
          %v2488 = vsub.s32 %v2482, %v2487
          %v2489 = vsub.s32 0, %v2488
          %v2490 = vsel %vm2480, %v2489, %v2488
          %vm2491 = vcmp.lt.s32.totalorder %v2289, 0
          %v2492 = vsub.s32 0, %v2289
          %v2493 = vsel %vm2491, %v2492, %v2289
          %v2494 = vmul.u32.u64.compose %v2493, 3817748708
          %v2495 = vextract.low.u32 %v2494
          %v2496 = vextract.high.u32 %v2494
          %v2497 = vshrl.u32 %v2496, 4
          %v2498 = vmul.u32 %v2497, 18
          %v2499 = vsub.s32 %v2493, %v2498
          %v2500 = vsub.s32 0, %v2499
          %v2501 = vsel %vm2491, %v2500, %v2499
          %vm2502 = vcmp.lt.s32.totalorder %v2290, 0
          %v2503 = vsub.s32 0, %v2290
          %v2504 = vsel %vm2502, %v2503, %v2290
          %v2505 = vmul.u32.u64.compose %v2504, 3817748708
          %v2506 = vextract.low.u32 %v2505
          %v2507 = vextract.high.u32 %v2505
          %v2508 = vshrl.u32 %v2507, 4
          %v2509 = vmul.u32 %v2508, 18
          %v2510 = vsub.s32 %v2504, %v2509
          %v2511 = vsub.s32 0, %v2510
          %v2512 = vsel %vm2502, %v2511, %v2510
          %vm2513 = vcmp.lt.s32.totalorder %v2291, 0
          %v2514 = vsub.s32 0, %v2291
          %v2515 = vsel %vm2513, %v2514, %v2291
          %v2516 = vmul.u32.u64.compose %v2515, 3817748708
          %v2517 = vextract.low.u32 %v2516
          %v2518 = vextract.high.u32 %v2516
          %v2519 = vshrl.u32 %v2518, 4
          %v2520 = vmul.u32 %v2519, 18
          %v2521 = vsub.s32 %v2515, %v2520
          %v2522 = vsub.s32 0, %v2521
          %v2523 = vsel %vm2513, %v2522, %v2521
          %vm2524 = vcmp.lt.s32.totalorder %v2292, 0
          %v2525 = vsub.s32 0, %v2292
          %v2526 = vsel %vm2524, %v2525, %v2292
          %v2527 = vmul.u32.u64.compose %v2526, 3817748708
          %v2528 = vextract.low.u32 %v2527
          %v2529 = vextract.high.u32 %v2527
          %v2530 = vshrl.u32 %v2529, 4
          %v2531 = vmul.u32 %v2530, 18
          %v2532 = vsub.s32 %v2526, %v2531
          %v2533 = vsub.s32 0, %v2532
          %v2534 = vsel %vm2524, %v2533, %v2532
          %vm2535 = vcmp.lt.s32.totalorder %v2293, 0
          %v2536 = vsub.s32 0, %v2293
          %v2537 = vsel %vm2535, %v2536, %v2293
          %v2538 = vmul.u32.u64.compose %v2537, 3817748708
          %v2539 = vextract.low.u32 %v2538
          %v2540 = vextract.high.u32 %v2538
          %v2541 = vshrl.u32 %v2540, 4
          %v2542 = vmul.u32 %v2541, 18
          %v2543 = vsub.s32 %v2537, %v2542
          %v2544 = vsub.s32 0, %v2543
          %v2545 = vsel %vm2535, %v2544, %v2543
          %vm2546 = vcmp.lt.s32.totalorder %v2294, 0
          %v2547 = vsub.s32 0, %v2294
          %v2548 = vsel %vm2546, %v2547, %v2294
          %v2549 = vmul.u32.u64.compose %v2548, 3817748708
          %v2550 = vextract.low.u32 %v2549
          %v2551 = vextract.high.u32 %v2549
          %v2552 = vshrl.u32 %v2551, 4
          %v2553 = vmul.u32 %v2552, 18
          %v2554 = vsub.s32 %v2548, %v2553
          %v2555 = vsub.s32 0, %v2554
          %v2556 = vsel %vm2546, %v2555, %v2554
          %vm2557 = vcmp.lt.s32.totalorder %v2295, 0
          %v2558 = vsub.s32 0, %v2295
          %v2559 = vsel %vm2557, %v2558, %v2295
          %v2560 = vmul.u32.u64.compose %v2559, 3817748708
          %v2561 = vextract.low.u32 %v2560
          %v2562 = vextract.high.u32 %v2560
          %v2563 = vshrl.u32 %v2562, 4
          %v2564 = vmul.u32 %v2563, 18
          %v2565 = vsub.s32 %v2559, %v2564
          %v2566 = vsub.s32 0, %v2565
          %v2567 = vsel %vm2557, %v2566, %v2565
          %vm2568 = vcmp.lt.s32.totalorder %v2296, 0
          %v2569 = vsub.s32 0, %v2296
          %v2570 = vsel %vm2568, %v2569, %v2296
          %v2571 = vmul.u32.u64.compose %v2570, 3817748708
          %v2572 = vextract.low.u32 %v2571
          %v2573 = vextract.high.u32 %v2571
          %v2574 = vshrl.u32 %v2573, 4
          %v2575 = vmul.u32 %v2574, 18
          %v2576 = vsub.s32 %v2570, %v2575
          %v2577 = vsub.s32 0, %v2576
          %v2578 = vsel %vm2568, %v2577, %v2576
          %vm2579 = vcmp.lt.s32.totalorder %v2297, 0
          %v2580 = vsub.s32 0, %v2297
          %v2581 = vsel %vm2579, %v2580, %v2297
          %v2582 = vmul.u32.u64.compose %v2581, 3817748708
          %v2583 = vextract.low.u32 %v2582
          %v2584 = vextract.high.u32 %v2582
          %v2585 = vshrl.u32 %v2584, 4
          %v2586 = vmul.u32 %v2585, 18
          %v2587 = vsub.s32 %v2581, %v2586
          %v2588 = vsub.s32 0, %v2587
          %v2589 = vsel %vm2579, %v2588, %v2587
          %vm2590 = vcmp.lt.s32.totalorder %v2298, 0
          %v2591 = vsub.s32 0, %v2298
          %v2592 = vsel %vm2590, %v2591, %v2298
          %v2593 = vmul.u32.u64.compose %v2592, 3817748708
          %v2594 = vextract.low.u32 %v2593
          %v2595 = vextract.high.u32 %v2593
          %v2596 = vshrl.u32 %v2595, 4
          %v2597 = vmul.u32 %v2596, 18
          %v2598 = vsub.s32 %v2592, %v2597
          %v2599 = vsub.s32 0, %v2598
          %v2600 = vsel %vm2590, %v2599, %v2598
          %vm2601 = vcmp.lt.s32.totalorder %v2299, 0
          %v2602 = vsub.s32 0, %v2299
          %v2603 = vsel %vm2601, %v2602, %v2299
          %v2604 = vmul.u32.u64.compose %v2603, 3817748708
          %v2605 = vextract.low.u32 %v2604
          %v2606 = vextract.high.u32 %v2604
          %v2607 = vshrl.u32 %v2606, 4
          %v2608 = vmul.u32 %v2607, 18
          %v2609 = vsub.s32 %v2603, %v2608
          %v2610 = vsub.s32 0, %v2609
          %v2611 = vsel %vm2601, %v2610, %v2609
          %vm2612 = vcmp.lt.s32.totalorder %v2300, 0
          %v2613 = vsub.s32 0, %v2300
          %v2614 = vsel %vm2612, %v2613, %v2300
          %v2615 = vmul.u32.u64.compose %v2614, 3817748708
          %v2616 = vextract.low.u32 %v2615
          %v2617 = vextract.high.u32 %v2615
          %v2618 = vshrl.u32 %v2617, 4
          %v2619 = vmul.u32 %v2618, 18
          %v2620 = vsub.s32 %v2614, %v2619
          %v2621 = vsub.s32 0, %v2620
          %v2622 = vsel %vm2612, %v2621, %v2620
          %vm2623 = vcmp.lt.s32.totalorder %v2301, 0
          %v2624 = vsub.s32 0, %v2301
          %v2625 = vsel %vm2623, %v2624, %v2301
          %v2626 = vmul.u32.u64.compose %v2625, 3817748708
          %v2627 = vextract.low.u32 %v2626
          %v2628 = vextract.high.u32 %v2626
          %v2629 = vshrl.u32 %v2628, 4
          %v2630 = vmul.u32 %v2629, 18
          %v2631 = vsub.s32 %v2625, %v2630
          %v2632 = vsub.s32 0, %v2631
          %v2633 = vsel %vm2623, %v2632, %v2631
          %vm2634 = vcmp.lt.s32.totalorder %v2302, 0
          %v2635 = vsub.s32 0, %v2302
          %v2636 = vsel %vm2634, %v2635, %v2302
          %v2637 = vmul.u32.u64.compose %v2636, 3817748708
          %v2638 = vextract.low.u32 %v2637
          %v2639 = vextract.high.u32 %v2637
          %v2640 = vshrl.u32 %v2639, 4
          %v2641 = vmul.u32 %v2640, 18
          %v2642 = vsub.s32 %v2636, %v2641
          %v2643 = vsub.s32 0, %v2642
          %v2644 = vsel %vm2634, %v2643, %v2642
          %vm2645 = vcmp.lt.s32.totalorder %v2303, 0
          %v2646 = vsub.s32 0, %v2303
          %v2647 = vsel %vm2645, %v2646, %v2303
          %v2648 = vmul.u32.u64.compose %v2647, 3817748708
          %v2649 = vextract.low.u32 %v2648
          %v2650 = vextract.high.u32 %v2648
          %v2651 = vshrl.u32 %v2650, 4
          %v2652 = vmul.u32 %v2651, 18
          %v2653 = vsub.s32 %v2647, %v2652
          %v2654 = vsub.s32 0, %v2653
          %v2655 = vsel %vm2645, %v2654, %v2653
          %vm2656 = vcmp.ne.s32.totalorder %v2314, 0
          %vm2657 = vcmp.ne.s32.totalorder %v2325, 0
          %vm2658 = vcmp.ne.s32.totalorder %v2336, 0
          %vm2659 = vcmp.ne.s32.totalorder %v2347, 0
          %vm2660 = vcmp.ne.s32.totalorder %v2358, 0
          %vm2661 = vcmp.ne.s32.totalorder %v2369, 0
          %vm2662 = vcmp.ne.s32.totalorder %v2380, 0
          %vm2663 = vcmp.ne.s32.totalorder %v2391, 0
          %vm2664 = vcmp.ne.s32.totalorder %v2402, 0
          %vm2665 = vcmp.ne.s32.totalorder %v2413, 0
          %vm2666 = vcmp.ne.s32.totalorder %v2424, 0
          %vm2667 = vcmp.ne.s32.totalorder %v2435, 0
          %vm2668 = vcmp.ne.s32.totalorder %v2446, 0
          %vm2669 = vcmp.ne.s32.totalorder %v2457, 0
          %vm2670 = vcmp.ne.s32.totalorder %v2468, 0
          %vm2671 = vcmp.ne.s32.totalorder %v2479, 0
          %vm2672 = vcmp.ne.s32.totalorder %v2490, 0
          %vm2673 = vcmp.ne.s32.totalorder %v2501, 0
          %vm2674 = vcmp.ne.s32.totalorder %v2512, 0
          %vm2675 = vcmp.ne.s32.totalorder %v2523, 0
          %vm2676 = vcmp.ne.s32.totalorder %v2534, 0
          %vm2677 = vcmp.ne.s32.totalorder %v2545, 0
          %vm2678 = vcmp.ne.s32.totalorder %v2556, 0
          %vm2679 = vcmp.ne.s32.totalorder %v2567, 0
          %vm2680 = vcmp.ne.s32.totalorder %v2578, 0
          %vm2681 = vcmp.ne.s32.totalorder %v2589, 0
          %vm2682 = vcmp.ne.s32.totalorder %v2600, 0
          %vm2683 = vcmp.ne.s32.totalorder %v2611, 0
          %vm2684 = vcmp.ne.s32.totalorder %v2622, 0
          %vm2685 = vcmp.ne.s32.totalorder %v2633, 0
          %vm2686 = vcmp.ne.s32.totalorder %v2644, 0
          %vm2687 = vcmp.ne.s32.totalorder %v2655, 0
          %vm2688 = vcmp.lt.s32.totalorder %v2314, 0
          %vm2689 = vcmp.lt.s32.totalorder %v2325, 0
          %vm2690 = vcmp.lt.s32.totalorder %v2336, 0
          %vm2691 = vcmp.lt.s32.totalorder %v2347, 0
          %vm2692 = vcmp.lt.s32.totalorder %v2358, 0
          %vm2693 = vcmp.lt.s32.totalorder %v2369, 0
          %vm2694 = vcmp.lt.s32.totalorder %v2380, 0
          %vm2695 = vcmp.lt.s32.totalorder %v2391, 0
          %vm2696 = vcmp.lt.s32.totalorder %v2402, 0
          %vm2697 = vcmp.lt.s32.totalorder %v2413, 0
          %vm2698 = vcmp.lt.s32.totalorder %v2424, 0
          %vm2699 = vcmp.lt.s32.totalorder %v2435, 0
          %vm2700 = vcmp.lt.s32.totalorder %v2446, 0
          %vm2701 = vcmp.lt.s32.totalorder %v2457, 0
          %vm2702 = vcmp.lt.s32.totalorder %v2468, 0
          %vm2703 = vcmp.lt.s32.totalorder %v2479, 0
          %vm2704 = vcmp.lt.s32.totalorder %v2490, 0
          %vm2705 = vcmp.lt.s32.totalorder %v2501, 0
          %vm2706 = vcmp.lt.s32.totalorder %v2512, 0
          %vm2707 = vcmp.lt.s32.totalorder %v2523, 0
          %vm2708 = vcmp.lt.s32.totalorder %v2534, 0
          %vm2709 = vcmp.lt.s32.totalorder %v2545, 0
          %vm2710 = vcmp.lt.s32.totalorder %v2556, 0
          %vm2711 = vcmp.lt.s32.totalorder %v2567, 0
          %vm2712 = vcmp.lt.s32.totalorder %v2578, 0
          %vm2713 = vcmp.lt.s32.totalorder %v2589, 0
          %vm2714 = vcmp.lt.s32.totalorder %v2600, 0
          %vm2715 = vcmp.lt.s32.totalorder %v2611, 0
          %vm2716 = vcmp.lt.s32.totalorder %v2622, 0
          %vm2717 = vcmp.lt.s32.totalorder %v2633, 0
          %vm2718 = vcmp.lt.s32.totalorder %v2644, 0
          %vm2719 = vcmp.lt.s32.totalorder %v2655, 0
          %vm2720 = vmand %vm2688, %vm2656
          %vm2721 = vmand %vm2689, %vm2657
          %vm2722 = vmand %vm2690, %vm2658
          %vm2723 = vmand %vm2691, %vm2659
          %vm2724 = vmand %vm2692, %vm2660
          %vm2725 = vmand %vm2693, %vm2661
          %vm2726 = vmand %vm2694, %vm2662
          %vm2727 = vmand %vm2695, %vm2663
          %vm2728 = vmand %vm2696, %vm2664
          %vm2729 = vmand %vm2697, %vm2665
          %vm2730 = vmand %vm2698, %vm2666
          %vm2731 = vmand %vm2699, %vm2667
          %vm2732 = vmand %vm2700, %vm2668
          %vm2733 = vmand %vm2701, %vm2669
          %vm2734 = vmand %vm2702, %vm2670
          %vm2735 = vmand %vm2703, %vm2671
          %vm2736 = vmand %vm2704, %vm2672
          %vm2737 = vmand %vm2705, %vm2673
          %vm2738 = vmand %vm2706, %vm2674
          %vm2739 = vmand %vm2707, %vm2675
          %vm2740 = vmand %vm2708, %vm2676
          %vm2741 = vmand %vm2709, %vm2677
          %vm2742 = vmand %vm2710, %vm2678
          %vm2743 = vmand %vm2711, %vm2679
          %vm2744 = vmand %vm2712, %vm2680
          %vm2745 = vmand %vm2713, %vm2681
          %vm2746 = vmand %vm2714, %vm2682
          %vm2747 = vmand %vm2715, %vm2683
          %vm2748 = vmand %vm2716, %vm2684
          %vm2749 = vmand %vm2717, %vm2685
          %vm2750 = vmand %vm2718, %vm2686
          %vm2751 = vmand %vm2719, %vm2687
          %v2752 = vadd.s32 %v2314, 18
          %v2753 = vadd.s32 %v2325, 18
          %v2754 = vadd.s32 %v2336, 18
          %v2755 = vadd.s32 %v2347, 18
          %v2756 = vadd.s32 %v2358, 18
          %v2757 = vadd.s32 %v2369, 18
          %v2758 = vadd.s32 %v2380, 18
          %v2759 = vadd.s32 %v2391, 18
          %v2760 = vadd.s32 %v2402, 18
          %v2761 = vadd.s32 %v2413, 18
          %v2762 = vadd.s32 %v2424, 18
          %v2763 = vadd.s32 %v2435, 18
          %v2764 = vadd.s32 %v2446, 18
          %v2765 = vadd.s32 %v2457, 18
          %v2766 = vadd.s32 %v2468, 18
          %v2767 = vadd.s32 %v2479, 18
          %v2768 = vadd.s32 %v2490, 18
          %v2769 = vadd.s32 %v2501, 18
          %v2770 = vadd.s32 %v2512, 18
          %v2771 = vadd.s32 %v2523, 18
          %v2772 = vadd.s32 %v2534, 18
          %v2773 = vadd.s32 %v2545, 18
          %v2774 = vadd.s32 %v2556, 18
          %v2775 = vadd.s32 %v2567, 18
          %v2776 = vadd.s32 %v2578, 18
          %v2777 = vadd.s32 %v2589, 18
          %v2778 = vadd.s32 %v2600, 18
          %v2779 = vadd.s32 %v2611, 18
          %v2780 = vadd.s32 %v2622, 18
          %v2781 = vadd.s32 %v2633, 18
          %v2782 = vadd.s32 %v2644, 18
          %v2783 = vadd.s32 %v2655, 18
          %v2784 = vsel %vm2720, %v2752, %v2314
          %v2785 = vsel %vm2721, %v2753, %v2325
          %v2786 = vsel %vm2722, %v2754, %v2336
          %v2787 = vsel %vm2723, %v2755, %v2347
          %v2788 = vsel %vm2724, %v2756, %v2358
          %v2789 = vsel %vm2725, %v2757, %v2369
          %v2790 = vsel %vm2726, %v2758, %v2380
          %v2791 = vsel %vm2727, %v2759, %v2391
          %v2792 = vsel %vm2728, %v2760, %v2402
          %v2793 = vsel %vm2729, %v2761, %v2413
          %v2794 = vsel %vm2730, %v2762, %v2424
          %v2795 = vsel %vm2731, %v2763, %v2435
          %v2796 = vsel %vm2732, %v2764, %v2446
          %v2797 = vsel %vm2733, %v2765, %v2457
          %v2798 = vsel %vm2734, %v2766, %v2468
          %v2799 = vsel %vm2735, %v2767, %v2479
          %v2800 = vsel %vm2736, %v2768, %v2490
          %v2801 = vsel %vm2737, %v2769, %v2501
          %v2802 = vsel %vm2738, %v2770, %v2512
          %v2803 = vsel %vm2739, %v2771, %v2523
          %v2804 = vsel %vm2740, %v2772, %v2534
          %v2805 = vsel %vm2741, %v2773, %v2545
          %v2806 = vsel %vm2742, %v2774, %v2556
          %v2807 = vsel %vm2743, %v2775, %v2567
          %v2808 = vsel %vm2744, %v2776, %v2578
          %v2809 = vsel %vm2745, %v2777, %v2589
          %v2810 = vsel %vm2746, %v2778, %v2600
          %v2811 = vsel %vm2747, %v2779, %v2611
          %v2812 = vsel %vm2748, %v2780, %v2622
          %v2813 = vsel %vm2749, %v2781, %v2633
          %v2814 = vsel %vm2750, %v2782, %v2644
          %v2815 = vsel %vm2751, %v2783, %v2655
          %vm2816 = vcmp.lt.s32.totalorder %v2784, 16
          %vm2817 = vcmp.lt.s32.totalorder %v2785, 16
          %vm2818 = vcmp.lt.s32.totalorder %v2786, 16
          %vm2819 = vcmp.lt.s32.totalorder %v2787, 16
          %vm2820 = vcmp.lt.s32.totalorder %v2788, 16
          %vm2821 = vcmp.lt.s32.totalorder %v2789, 16
          %vm2822 = vcmp.lt.s32.totalorder %v2790, 16
          %vm2823 = vcmp.lt.s32.totalorder %v2791, 16
          %vm2824 = vcmp.lt.s32.totalorder %v2792, 16
          %vm2825 = vcmp.lt.s32.totalorder %v2793, 16
          %vm2826 = vcmp.lt.s32.totalorder %v2794, 16
          %vm2827 = vcmp.lt.s32.totalorder %v2795, 16
          %vm2828 = vcmp.lt.s32.totalorder %v2796, 16
          %vm2829 = vcmp.lt.s32.totalorder %v2797, 16
          %vm2830 = vcmp.lt.s32.totalorder %v2798, 16
          %vm2831 = vcmp.lt.s32.totalorder %v2799, 16
          %vm2832 = vcmp.lt.s32.totalorder %v2800, 16
          %vm2833 = vcmp.lt.s32.totalorder %v2801, 16
          %vm2834 = vcmp.lt.s32.totalorder %v2802, 16
          %vm2835 = vcmp.lt.s32.totalorder %v2803, 16
          %vm2836 = vcmp.lt.s32.totalorder %v2804, 16
          %vm2837 = vcmp.lt.s32.totalorder %v2805, 16
          %vm2838 = vcmp.lt.s32.totalorder %v2806, 16
          %vm2839 = vcmp.lt.s32.totalorder %v2807, 16
          %vm2840 = vcmp.lt.s32.totalorder %v2808, 16
          %vm2841 = vcmp.lt.s32.totalorder %v2809, 16
          %vm2842 = vcmp.lt.s32.totalorder %v2810, 16
          %vm2843 = vcmp.lt.s32.totalorder %v2811, 16
          %vm2844 = vcmp.lt.s32.totalorder %v2812, 16
          %vm2845 = vcmp.lt.s32.totalorder %v2813, 16
          %vm2846 = vcmp.lt.s32.totalorder %v2814, 16
          %vm2847 = vcmp.lt.s32.totalorder %v2815, 16
          %vm2848 = vcmp.lt.s32.totalorder %v2272, 288
          %vm2849 = vcmp.lt.s32.totalorder %v2273, 288
          %vm2850 = vcmp.lt.s32.totalorder %v2274, 288
          %vm2851 = vcmp.lt.s32.totalorder %v2275, 288
          %vm2852 = vcmp.lt.s32.totalorder %v2276, 288
          %vm2853 = vcmp.lt.s32.totalorder %v2277, 288
          %vm2854 = vcmp.lt.s32.totalorder %v2278, 288
          %vm2855 = vcmp.lt.s32.totalorder %v2279, 288
          %vm2856 = vcmp.lt.s32.totalorder %v2280, 288
          %vm2857 = vcmp.lt.s32.totalorder %v2281, 288
          %vm2858 = vcmp.lt.s32.totalorder %v2282, 288
          %vm2859 = vcmp.lt.s32.totalorder %v2283, 288
          %vm2860 = vcmp.lt.s32.totalorder %v2284, 288
          %vm2861 = vcmp.lt.s32.totalorder %v2285, 288
          %vm2862 = vcmp.lt.s32.totalorder %v2286, 288
          %vm2863 = vcmp.lt.s32.totalorder %v2287, 288
          %vm2864 = vcmp.lt.s32.totalorder %v2288, 288
          %vm2865 = vcmp.lt.s32.totalorder %v2289, 288
          %vm2866 = vcmp.lt.s32.totalorder %v2290, 288
          %vm2867 = vcmp.lt.s32.totalorder %v2291, 288
          %vm2868 = vcmp.lt.s32.totalorder %v2292, 288
          %vm2869 = vcmp.lt.s32.totalorder %v2293, 288
          %vm2870 = vcmp.lt.s32.totalorder %v2294, 288
          %vm2871 = vcmp.lt.s32.totalorder %v2295, 288
          %vm2872 = vcmp.lt.s32.totalorder %v2296, 288
          %vm2873 = vcmp.lt.s32.totalorder %v2297, 288
          %vm2874 = vcmp.lt.s32.totalorder %v2298, 288
          %vm2875 = vcmp.lt.s32.totalorder %v2299, 288
          %vm2876 = vcmp.lt.s32.totalorder %v2300, 288
          %vm2877 = vcmp.lt.s32.totalorder %v2301, 288
          %vm2878 = vcmp.lt.s32.totalorder %v2302, 288
          %vm2879 = vcmp.lt.s32.totalorder %v2303, 288
          %vm2880 = vmand %vm2816, %vm2848
          %vm2881 = vmand %vm2817, %vm2849
          %vm2882 = vmand %vm2818, %vm2850
          %vm2883 = vmand %vm2819, %vm2851
          %vm2884 = vmand %vm2820, %vm2852
          %vm2885 = vmand %vm2821, %vm2853
          %vm2886 = vmand %vm2822, %vm2854
          %vm2887 = vmand %vm2823, %vm2855
          %vm2888 = vmand %vm2824, %vm2856
          %vm2889 = vmand %vm2825, %vm2857
          %vm2890 = vmand %vm2826, %vm2858
          %vm2891 = vmand %vm2827, %vm2859
          %vm2892 = vmand %vm2828, %vm2860
          %vm2893 = vmand %vm2829, %vm2861
          %vm2894 = vmand %vm2830, %vm2862
          %vm2895 = vmand %vm2831, %vm2863
          %vm2896 = vmand %vm2832, %vm2864
          %vm2897 = vmand %vm2833, %vm2865
          %vm2898 = vmand %vm2834, %vm2866
          %vm2899 = vmand %vm2835, %vm2867
          %vm2900 = vmand %vm2836, %vm2868
          %vm2901 = vmand %vm2837, %vm2869
          %vm2902 = vmand %vm2838, %vm2870
          %vm2903 = vmand %vm2839, %vm2871
          %vm2904 = vmand %vm2840, %vm2872
          %vm2905 = vmand %vm2841, %vm2873
          %vm2906 = vmand %vm2842, %vm2874
          %vm2907 = vmand %vm2843, %vm2875
          %vm2908 = vmand %vm2844, %vm2876
          %vm2909 = vmand %vm2845, %vm2877
          %vm2910 = vmand %vm2846, %vm2878
          %vm2911 = vmand %vm2847, %vm2879
          %v2912 = vsel %vm2880, 1, 0
          %v2913 = vsel %vm2881, 1, 0
          %v2914 = vsel %vm2882, 1, 0
          %v2915 = vsel %vm2883, 1, 0
          %v2916 = vsel %vm2884, 1, 0
          %v2917 = vsel %vm2885, 1, 0
          %v2918 = vsel %vm2886, 1, 0
          %v2919 = vsel %vm2887, 1, 0
          %v2920 = vsel %vm2888, 1, 0
          %v2921 = vsel %vm2889, 1, 0
          %v2922 = vsel %vm2890, 1, 0
          %v2923 = vsel %vm2891, 1, 0
          %v2924 = vsel %vm2892, 1, 0
          %v2925 = vsel %vm2893, 1, 0
          %v2926 = vsel %vm2894, 1, 0
          %v2927 = vsel %vm2895, 1, 0
          %v2928 = vsel %vm2896, 1, 0
          %v2929 = vsel %vm2897, 1, 0
          %v2930 = vsel %vm2898, 1, 0
          %v2931 = vsel %vm2899, 1, 0
          %v2932 = vsel %vm2900, 1, 0
          %v2933 = vsel %vm2901, 1, 0
          %v2934 = vsel %vm2902, 1, 0
          %v2935 = vsel %vm2903, 1, 0
          %v2936 = vsel %vm2904, 1, 0
          %v2937 = vsel %vm2905, 1, 0
          %v2938 = vsel %vm2906, 1, 0
          %v2939 = vsel %vm2907, 1, 0
          %v2940 = vsel %vm2908, 1, 0
          %v2941 = vsel %vm2909, 1, 0
          %v2942 = vsel %vm2910, 1, 0
          %v2943 = vsel %vm2911, 1, 0
          %vm2944 = vcmp.eq.s32.totalorder %v2912, 1
          %vm2945 = vcmp.eq.s32.totalorder %v2913, 1
          %vm2946 = vcmp.eq.s32.totalorder %v2914, 1
          %vm2947 = vcmp.eq.s32.totalorder %v2915, 1
          %vm2948 = vcmp.eq.s32.totalorder %v2916, 1
          %vm2949 = vcmp.eq.s32.totalorder %v2917, 1
          %vm2950 = vcmp.eq.s32.totalorder %v2918, 1
          %vm2951 = vcmp.eq.s32.totalorder %v2919, 1
          %vm2952 = vcmp.eq.s32.totalorder %v2920, 1
          %vm2953 = vcmp.eq.s32.totalorder %v2921, 1
          %vm2954 = vcmp.eq.s32.totalorder %v2922, 1
          %vm2955 = vcmp.eq.s32.totalorder %v2923, 1
          %vm2956 = vcmp.eq.s32.totalorder %v2924, 1
          %vm2957 = vcmp.eq.s32.totalorder %v2925, 1
          %vm2958 = vcmp.eq.s32.totalorder %v2926, 1
          %vm2959 = vcmp.eq.s32.totalorder %v2927, 1
          %vm2960 = vcmp.eq.s32.totalorder %v2928, 1
          %vm2961 = vcmp.eq.s32.totalorder %v2929, 1
          %vm2962 = vcmp.eq.s32.totalorder %v2930, 1
          %vm2963 = vcmp.eq.s32.totalorder %v2931, 1
          %vm2964 = vcmp.eq.s32.totalorder %v2932, 1
          %vm2965 = vcmp.eq.s32.totalorder %v2933, 1
          %vm2966 = vcmp.eq.s32.totalorder %v2934, 1
          %vm2967 = vcmp.eq.s32.totalorder %v2935, 1
          %vm2968 = vcmp.eq.s32.totalorder %v2936, 1
          %vm2969 = vcmp.eq.s32.totalorder %v2937, 1
          %vm2970 = vcmp.eq.s32.totalorder %v2938, 1
          %vm2971 = vcmp.eq.s32.totalorder %v2939, 1
          %vm2972 = vcmp.eq.s32.totalorder %v2940, 1
          %vm2973 = vcmp.eq.s32.totalorder %v2941, 1
          %vm2974 = vcmp.eq.s32.totalorder %v2942, 1
          %vm2975 = vcmp.eq.s32.totalorder %v2943, 1
          %v2976 = vsel %vm2944, %v2101, 0.0
          %v2977 = vsel %vm2945, %v2104, 0.0
          %v2978 = vsel %vm2946, %v2109, 0.0
          %v2979 = vsel %vm2947, %v2112, 0.0
          %v2980 = vsel %vm2948, %v2117, 0.0
          %v2981 = vsel %vm2949, %v2120, 0.0
          %v2982 = vsel %vm2950, %v2125, 0.0
          %v2983 = vsel %vm2951, %v2128, 0.0
          %v2984 = vsel %vm2952, %v2133, 0.0
          %v2985 = vsel %vm2953, %v2136, 0.0
          %v2986 = vsel %vm2954, %v2141, 0.0
          %v2987 = vsel %vm2955, %v2144, 0.0
          %v2988 = vsel %vm2956, %v2149, 0.0
          %v2989 = vsel %vm2957, %v2152, 0.0
          %v2990 = vsel %vm2958, %v2157, 0.0
          %v2991 = vsel %vm2959, %v2160, 0.0
          %v2992 = vsel %vm2960, %v2165, 0.0
          %v2993 = vsel %vm2961, %v2168, 0.0
          %v2994 = vsel %vm2962, %v2173, 0.0
          %v2995 = vsel %vm2963, %v2176, 0.0
          %v2996 = vsel %vm2964, %v2181, 0.0
          %v2997 = vsel %vm2965, %v2184, 0.0
          %v2998 = vsel %vm2966, %v2189, 0.0
          %v2999 = vsel %vm2967, %v2192, 0.0
          %v3000 = vsel %vm2968, %v2197, 0.0
          %v3001 = vsel %vm2969, %v2200, 0.0
          %v3002 = vsel %vm2970, %v2205, 0.0
          %v3003 = vsel %vm2971, %v2208, 0.0
          %v3004 = vsel %vm2972, %v2213, 0.0
          %v3005 = vsel %vm2973, %v2216, 0.0
          %v3006 = vsel %vm2974, %v2221, 0.0
          %v3007 = vsel %vm2975, %v2224, 0.0
          %v3008 = vld [vmem:[#allocation4] sm:$0x1]
          %v3009 = vadd.f32 %v2976, %v2977
          %v3010 = vadd.f32 %v3009, %v2978
          %v3011 = vadd.f32 %v3010, %v2979
          %v3012 = vadd.f32 %v3011, %v2980
          %v3013 = vadd.f32 %v3012, %v2981
          %v3014 = vadd.f32 %v3013, %v2982
          %v3015 = vadd.f32 %v3014, %v2983
          %v3016 = vadd.f32 %v3015, %v2984
          %v3017 = vadd.f32 %v3016, %v2985
          %v3018 = vadd.f32 %v3017, %v2986
          %v3019 = vadd.f32 %v3018, %v2987
          %v3020 = vadd.f32 %v3019, %v2988
          %v3021 = vadd.f32 %v3020, %v2989
          %v3022 = vadd.f32 %v3021, %v2990
          %v3023 = vadd.f32 %v3022, %v2991
          %v3024 = vadd.f32 %v3023, %v2992
          %v3025 = vadd.f32 %v3024, %v2993
          %v3026 = vadd.f32 %v3025, %v2994
          %v3027 = vadd.f32 %v3026, %v2995
          %v3028 = vadd.f32 %v3027, %v2996
          %v3029 = vadd.f32 %v3028, %v2997
          %v3030 = vadd.f32 %v3029, %v2998
          %v3031 = vadd.f32 %v3030, %v2999
          %v3032 = vadd.f32 %v3031, %v3000
          %v3033 = vadd.f32 %v3032, %v3001
          %v3034 = vadd.f32 %v3033, %v3002
          %v3035 = vadd.f32 %v3034, %v3003
          %v3036 = vadd.f32 %v3035, %v3004
          %v3037 = vadd.f32 %v3036, %v3005
          %v3038 = vadd.f32 %v3037, %v3006
          %v3039 = vadd.f32 %v3038, %v3007
          %v3040 = vrot.slane %v3039, 4
          %v3041 = vadd.f32 %v3039, %v3040
          %v3042 = vrot.slane %v3041, 2
          %v3043 = vadd.f32 %v3041, %v3042
          %v3044 = vrot.slane %v3043, 1
          %v3045 = vadd.f32 %v3043, %v3044
          %v3046 = vadd.f32 %v3008, %v3045
          %3047 = vst [vmem:[#allocation4] sm:$0x1] %v3046
          %v3048 = vld [vmem:[#allocation4 + $0x1] sm:$0x1]
          %v3049 = vmul.f32 %v2976, %v2101
          %v3050 = vmul.f32 %v2977, %v2104
          %v3051 = vmul.f32 %v2978, %v2109
          %v3052 = vmul.f32 %v2979, %v2112
          %v3053 = vmul.f32 %v2980, %v2117
          %v3054 = vmul.f32 %v2981, %v2120
          %v3055 = vmul.f32 %v2982, %v2125
          %v3056 = vmul.f32 %v2983, %v2128
          %v3057 = vmul.f32 %v2984, %v2133
          %v3058 = vmul.f32 %v2985, %v2136
          %v3059 = vmul.f32 %v2986, %v2141
          %v3060 = vmul.f32 %v2987, %v2144
          %v3061 = vmul.f32 %v2988, %v2149
          %v3062 = vmul.f32 %v2989, %v2152
          %v3063 = vmul.f32 %v2990, %v2157
          %v3064 = vmul.f32 %v2991, %v2160
          %v3065 = vmul.f32 %v2992, %v2165
          %v3066 = vmul.f32 %v2993, %v2168
          %v3067 = vmul.f32 %v2994, %v2173
          %v3068 = vmul.f32 %v2995, %v2176
          %v3069 = vmul.f32 %v2996, %v2181
          %v3070 = vmul.f32 %v2997, %v2184
          %v3071 = vmul.f32 %v2998, %v2189
          %v3072 = vmul.f32 %v2999, %v2192
          %v3073 = vmul.f32 %v3000, %v2197
          %v3074 = vmul.f32 %v3001, %v2200
          %v3075 = vmul.f32 %v3002, %v2205
          %v3076 = vmul.f32 %v3003, %v2208
          %v3077 = vmul.f32 %v3004, %v2213
          %v3078 = vmul.f32 %v3005, %v2216
          %v3079 = vmul.f32 %v3006, %v2221
          %v3080 = vmul.f32 %v3007, %v2224
          %v3081 = vadd.f32 %v3049, %v3050
          %v3082 = vadd.f32 %v3081, %v3051
          %v3083 = vadd.f32 %v3082, %v3052
          %v3084 = vadd.f32 %v3083, %v3053
          %v3085 = vadd.f32 %v3084, %v3054
          %v3086 = vadd.f32 %v3085, %v3055
          %v3087 = vadd.f32 %v3086, %v3056
          %v3088 = vadd.f32 %v3087, %v3057
          %v3089 = vadd.f32 %v3088, %v3058
          %v3090 = vadd.f32 %v3089, %v3059
          %v3091 = vadd.f32 %v3090, %v3060
          %v3092 = vadd.f32 %v3091, %v3061
          %v3093 = vadd.f32 %v3092, %v3062
          %v3094 = vadd.f32 %v3093, %v3063
          %v3095 = vadd.f32 %v3094, %v3064
          %v3096 = vadd.f32 %v3095, %v3065
          %v3097 = vadd.f32 %v3096, %v3066
          %v3098 = vadd.f32 %v3097, %v3067
          %v3099 = vadd.f32 %v3098, %v3068
          %v3100 = vadd.f32 %v3099, %v3069
          %v3101 = vadd.f32 %v3100, %v3070
          %v3102 = vadd.f32 %v3101, %v3071
          %v3103 = vadd.f32 %v3102, %v3072
          %v3104 = vadd.f32 %v3103, %v3073
          %v3105 = vadd.f32 %v3104, %v3074
          %v3106 = vadd.f32 %v3105, %v3075
          %v3107 = vadd.f32 %v3106, %v3076
          %v3108 = vadd.f32 %v3107, %v3077
          %v3109 = vadd.f32 %v3108, %v3078
          %v3110 = vadd.f32 %v3109, %v3079
          %v3111 = vadd.f32 %v3110, %v3080
          %v3112 = vrot.slane %v3111, 4
          %v3113 = vadd.f32 %v3111, %v3112
          %v3114 = vrot.slane %v3113, 2
          %v3115 = vadd.f32 %v3113, %v3114
          %v3116 = vrot.slane %v3115, 1
          %v3117 = vadd.f32 %v3115, %v3116
          %v3118 = vadd.f32 %v3048, %v3117
          %3119 = vst [vmem:[#allocation4 + $0x1] sm:$0x1] %v3118
        $region48: #{tpu_custom_call.1} parent=39 // pred_fallthru
          _
        %p3120 = scmp.eq.s32.totalorder %s25, 1
        // Predicated region
        $region49: #{tpu_custom_call.1} parent=39 // pred_check
          %p3121 = pneg %p3120
        $region50: #{tpu_custom_call.1} parent=39 // pred_check_branch
          %3123 = sbr.rel (%p3121) target = $region52
        $region51: #{tpu_custom_call.1} parent=39 // pred_region
          %v3124 = vld [vmem:[#allocation4] sm:$0x1]
          %v3125 = vmul.f32 %v3124, 0.00390625
          %v3126 = vld [vmem:[#allocation4 + $0x1] sm:$0x1]
          %v3127 = vmul.f32 %v3126, 0.00390625
          %v3128 = vmul.f32 %v3125, %v3125
          %v3129 = vsub.f32 %v3127, %v3128
          %v3130 = vadd.f32 %v3129, 1e-05
          %v3131 = vrsqrt.pop %v3130
          %v3132 = vld [vmem:[%s3] sm:$0x1]
          %v3133 = vmul.f32 %v3131, %v3132
          %v3134 = vld [vmem:[%s4] sm:$0x1]
          %v3135 = vmul.f32 %v3125, %v3133
          %v3136 = vsub.f32 %v3134, %v3135
          %v3137 = vlaneseq
          %v3138 = vshrl.u32 %v3137, 7
          %v3139 = vsub.s32 0, %v3138
          %v3140 = vrot.slane %v3133, %v3139
          %v3141 = vmul.f32 %v2101, %v3140
          %v3142 = vmul.f32 %v2104, %v3140
          %v3143 = vmul.f32 %v2109, %v3140
          %v3144 = vmul.f32 %v2112, %v3140
          %v3145 = vmul.f32 %v2117, %v3140
          %v3146 = vmul.f32 %v2120, %v3140
          %v3147 = vmul.f32 %v2125, %v3140
          %v3148 = vmul.f32 %v2128, %v3140
          %v3149 = vmul.f32 %v2133, %v3140
          %v3150 = vmul.f32 %v2136, %v3140
          %v3151 = vmul.f32 %v2141, %v3140
          %v3152 = vmul.f32 %v2144, %v3140
          %v3153 = vmul.f32 %v2149, %v3140
          %v3154 = vmul.f32 %v2152, %v3140
          %v3155 = vmul.f32 %v2157, %v3140
          %v3156 = vmul.f32 %v2160, %v3140
          %v3157 = vmul.f32 %v2165, %v3140
          %v3158 = vmul.f32 %v2168, %v3140
          %v3159 = vmul.f32 %v2173, %v3140
          %v3160 = vmul.f32 %v2176, %v3140
          %v3161 = vmul.f32 %v2181, %v3140
          %v3162 = vmul.f32 %v2184, %v3140
          %v3163 = vmul.f32 %v2189, %v3140
          %v3164 = vmul.f32 %v2192, %v3140
          %v3165 = vmul.f32 %v2197, %v3140
          %v3166 = vmul.f32 %v2200, %v3140
          %v3167 = vmul.f32 %v2205, %v3140
          %v3168 = vmul.f32 %v2208, %v3140
          %v3169 = vmul.f32 %v2213, %v3140
          %v3170 = vmul.f32 %v2216, %v3140
          %v3171 = vmul.f32 %v2221, %v3140
          %v3172 = vmul.f32 %v2224, %v3140
          %v3174 = vlaneseq
          %v3175 = vshrl.u32 %v3174, 7
          %v3176 = vsub.s32 0, %v3175
          %v3177 = vrot.slane %v3136, %v3176
          %v3179 = vadd.f32 %v3141, %v3177
          %v3180 = vadd.f32 %v3142, %v3177
          %v3181 = vadd.f32 %v3143, %v3177
          %v3182 = vadd.f32 %v3144, %v3177
          %v3183 = vadd.f32 %v3145, %v3177
          %v3184 = vadd.f32 %v3146, %v3177
          %v3185 = vadd.f32 %v3147, %v3177
          %v3186 = vadd.f32 %v3148, %v3177
          %v3187 = vadd.f32 %v3149, %v3177
          %v3188 = vadd.f32 %v3150, %v3177
          %v3189 = vadd.f32 %v3151, %v3177
          %v3190 = vadd.f32 %v3152, %v3177
          %v3191 = vadd.f32 %v3153, %v3177
          %v3192 = vadd.f32 %v3154, %v3177
          %v3193 = vadd.f32 %v3155, %v3177
          %v3194 = vadd.f32 %v3156, %v3177
          %v3195 = vadd.f32 %v3157, %v3177
          %v3196 = vadd.f32 %v3158, %v3177
          %v3197 = vadd.f32 %v3159, %v3177
          %v3198 = vadd.f32 %v3160, %v3177
          %v3199 = vadd.f32 %v3161, %v3177
          %v3200 = vadd.f32 %v3162, %v3177
          %v3201 = vadd.f32 %v3163, %v3177
          %v3202 = vadd.f32 %v3164, %v3177
          %v3203 = vadd.f32 %v3165, %v3177
          %v3204 = vadd.f32 %v3166, %v3177
          %v3205 = vadd.f32 %v3167, %v3177
          %v3206 = vadd.f32 %v3168, %v3177
          %v3207 = vadd.f32 %v3169, %v3177
          %v3208 = vadd.f32 %v3170, %v3177
          %v3209 = vadd.f32 %v3171, %v3177
          %v3210 = vadd.f32 %v3172, %v3177
          %v3211 = vmax.f32 %v3179, 0.0
          %v3212 = vmax.f32 %v3180, 0.0
          %v3213 = vmax.f32 %v3181, 0.0
          %v3214 = vmax.f32 %v3182, 0.0
          %v3215 = vmax.f32 %v3183, 0.0
          %v3216 = vmax.f32 %v3184, 0.0
          %v3217 = vmax.f32 %v3185, 0.0
          %v3218 = vmax.f32 %v3186, 0.0
          %v3219 = vmax.f32 %v3187, 0.0
          %v3220 = vmax.f32 %v3188, 0.0
          %v3221 = vmax.f32 %v3189, 0.0
          %v3222 = vmax.f32 %v3190, 0.0
          %v3223 = vmax.f32 %v3191, 0.0
          %v3224 = vmax.f32 %v3192, 0.0
          %v3225 = vmax.f32 %v3193, 0.0
          %v3226 = vmax.f32 %v3194, 0.0
          %v3227 = vmax.f32 %v3195, 0.0
          %v3228 = vmax.f32 %v3196, 0.0
          %v3229 = vmax.f32 %v3197, 0.0
          %v3230 = vmax.f32 %v3198, 0.0
          %v3231 = vmax.f32 %v3199, 0.0
          %v3232 = vmax.f32 %v3200, 0.0
          %v3233 = vmax.f32 %v3201, 0.0
          %v3234 = vmax.f32 %v3202, 0.0
          %v3235 = vmax.f32 %v3203, 0.0
          %v3236 = vmax.f32 %v3204, 0.0
          %v3237 = vmax.f32 %v3205, 0.0
          %v3238 = vmax.f32 %v3206, 0.0
          %v3239 = vmax.f32 %v3207, 0.0
          %v3240 = vmax.f32 %v3208, 0.0
          %v3241 = vmax.f32 %v3209, 0.0
          %v3242 = vmax.f32 %v3210, 0.0
          %3243 = vst [vmem:[%s282] sm:$0xff] %v3211
          %3244 = vst [vmem:[%s282 + $0x8] sm:$0xff] %v3212
          %3245 = vst [vmem:[%s282 + $0x10] sm:$0xff] %v3213
          %3246 = vst [vmem:[%s282 + $0x18] sm:$0xff] %v3214
          %3247 = vst [vmem:[%s282 + $0x20] sm:$0xff] %v3215
          %3248 = vst [vmem:[%s282 + $0x28] sm:$0xff] %v3216
          %3249 = vst [vmem:[%s282 + $0x30] sm:$0xff] %v3217
          %3250 = vst [vmem:[%s282 + $0x38] sm:$0xff] %v3218
          %3251 = vst [vmem:[%s282 + $0x40] sm:$0xff] %v3219
          %3252 = vst [vmem:[%s282 + $0x48] sm:$0xff] %v3220
          %3253 = vst [vmem:[%s282 + $0x50] sm:$0xff] %v3221
          %3254 = vst [vmem:[%s282 + $0x58] sm:$0xff] %v3222
          %3255 = vst [vmem:[%s282 + $0x60] sm:$0xff] %v3223
          %3256 = vst [vmem:[%s282 + $0x68] sm:$0xff] %v3224
          %3257 = vst [vmem:[%s282 + $0x70] sm:$0xff] %v3225
          %3258 = vst [vmem:[%s282 + $0x78] sm:$0xff] %v3226
          %3259 = vst [vmem:[%s282 + $0x80] sm:$0xff] %v3227
          %3260 = vst [vmem:[%s282 + $0x88] sm:$0xff] %v3228
          %3261 = vst [vmem:[%s282 + $0x90] sm:$0xff] %v3229
          %3262 = vst [vmem:[%s282 + $0x98] sm:$0xff] %v3230
          %3263 = vst [vmem:[%s282 + $0xa0] sm:$0xff] %v3231
          %3264 = vst [vmem:[%s282 + $0xa8] sm:$0xff] %v3232
          %3265 = vst [vmem:[%s282 + $0xb0] sm:$0xff] %v3233
          %3266 = vst [vmem:[%s282 + $0xb8] sm:$0xff] %v3234
          %3267 = vst [vmem:[%s282 + $0xc0] sm:$0xff] %v3235
          %3268 = vst [vmem:[%s282 + $0xc8] sm:$0xff] %v3236
          %3269 = vst [vmem:[%s282 + $0xd0] sm:$0xff] %v3237
          %3270 = vst [vmem:[%s282 + $0xd8] sm:$0xff] %v3238
          %3271 = vst [vmem:[%s282 + $0xe0] sm:$0xff] %v3239
          %3272 = vst [vmem:[%s282 + $0xe8] sm:$0xff] %v3240
          %3273 = vst [vmem:[%s282 + $0xf0] sm:$0xff] %v3241
          %3274 = vst [vmem:[%s282 + $0xf8] sm:$0xff] %v3242
        $region52: #{tpu_custom_call.1} parent=39 // pred_fallthru
          _
        %s3275 = sand.u32 %s171, 1
        %s3276 = scalar_lea.sflag [#allocation6], %s3275
        %s3277 = sand.u32 %s171, 1
        %s3278 = smul.addr %s3277, 256
        %s3279 = scalar_lea.vmem [#allocation5], %s3278
        // Predicated region
        $region53: #{tpu_custom_call.1} parent=39 // pred_check
          %p3280 = pneg %p181
        $region54: #{tpu_custom_call.1} parent=39 // pred_check_branch
          %3282 = sbr.rel (%p3280) target = $region56
        $region55: #{tpu_custom_call.1} parent=39 // pred_region
          %s3283 = smul.u32 %s25, %s26
          %s3284 = smul.u32 32, %s3283
          %s3286 = ssub.s32 4096, 4096
          %3287 = vsyncadd %s3276, %s3286
          %s3288 = smul.addr %s24, 64
          %s3289 = sadd.s32 %s3284, %s3288
          %s3290 = smul.addr %s3289, 128
          %s3291 = scalar_lea.hbm %s5, %s3290
          %s3292 = sshll.u32 %s3279, 4
          %s3293 = int_to_ptr.vmem [resolvable:$true] %s3292
          %3298 = dma.vmem_to_hbm [thread:$0]  %s3293, 4096, %s3291, %s3276, 128, 128, 8
        $region56: #{tpu_custom_call.1} parent=39 // pred_fallthru
          _
      $region40: #{tpu_custom_call.1} parent=5 // pred_fallthru
        _
      %p3299 = scmp.le.s32.totalorder 2, %s14
      // Predicated region
      $region57: #{tpu_custom_call.1} parent=5 // pred_check
        %p3300 = pneg %p3299
      $region58: #{tpu_custom_call.1} parent=5 // pred_check_branch
        %3302 = sbr.rel (%p3300) target = $region60
      $region59: #{tpu_custom_call.1} parent=5 // pred_region
        %s3303 = ssub.s32 %s14, 2
        // Predicated region
        $region61: #{tpu_custom_call.1} parent=59 // pred_check
          %p3304 = pneg %p187
        $region62: #{tpu_custom_call.1} parent=59 // pred_check_branch
          %3306 = sbr.rel (%p3304) target = $region64
        $region63: #{tpu_custom_call.1} parent=59 // pred_region
          %s3307 = sand.u32 %s172, 1
          %s3308 = scalar_lea.sflag [#allocation6], %s3307
          %s3309 = sand.u32 %s172, 1
          %s3310 = smul.addr %s3309, 256
          %s3311 = scalar_lea.vmem [#allocation5], %s3310
          %3312 = dma.done %s3308, 4096
        $region64: #{tpu_custom_call.1} parent=59 // pred_fallthru
          _
      $region60: #{tpu_custom_call.1} parent=5 // pred_fallthru
        _
    $region6: #{tpu_custom_call.1} parent=1 // loop_footer
      %s18 = sadd.s32 1, %s14
    $region7: #{tpu_custom_call.1} parent=1 // loop_footer_branch
      %13 = sbr.rel target = $region3
    $region8: #{tpu_custom_call.1} parent=1 // loop_exit
      _
    %3313 = vsyncpa [#allocation6], 1
    %s3314 = scalar_lea.sflag [#allocation6], 1
    %3315 = vsyncpa %s3314, 1

</llo_original>
